<compile_context>
chip_gen: v7x
topology: tpu7x:2x2x1
jax: 0.10.0
libtpu: 0.0.40
codegen_flags: <defaults>
</compile_context>

<pallas_src>
import functools

import jax
import jax.numpy as jnp
from jax import lax
from jax.experimental import pallas as pl
from jax.experimental.pallas import tpu as pltpu


def _attn_kernel(x_ref, wq_ref, wk_ref, wv_ref, wu_ref, bu_ref, fill_ref,
                 o_ref, *, heads):
    h = heads
    x = x_ref[0]                                    # (t, e)  bf16
    t, e = x.shape

    # Broadcast x over heads once; every projection is then one batched
    # MXU matmul (h, t, e) @ (h, e, e) with f32 accumulation.
    xb = jnp.broadcast_to(x[None, :, :], (h, t, e))

    q = jnp.einsum("hti,hid->htd", xb, wq_ref[...],
                   preferred_element_type=jnp.float32)   # 1/sqrt(e) pre-folded
    k = jnp.einsum("hti,hid->htd", xb, wk_ref[...],
                   preferred_element_type=jnp.float32)
    v = jnp.einsum("hti,hid->htd", xb, wv_ref[...],
                   preferred_element_type=jnp.float32)

    # (h, t, t) logits; contract last dims directly (no k transpose).
    s = jnp.einsum("hqd,hkd->hqk", q, k, preferred_element_type=jnp.float32)

    # Masking: fill == 0 means "keep the logit", otherwise replace with the
    # precomputed fill value (-1e9 pad-mask / -inf causal).  Exact reference
    # semantics with a single compare + select.
    fill = jnp.broadcast_to(fill_ref[...][None, :, :], s.shape)
    s = jnp.where(fill == 0.0, s, fill)

    # Softmax over the key axis (f32).
    m = jnp.max(s, axis=-1, keepdims=True)
    p = jnp.exp(s - m)
    p = p * pl.reciprocal(jnp.sum(p, axis=-1, keepdims=True), approx=True)

    # Per-head outputs, then unifyheads as per-head (e, e) slices, summed over
    # heads; bias added once at the end.
    oh = jnp.einsum("hqk,hkd->hqd", p, v, preferred_element_type=jnp.float32)
    contrib = jnp.einsum("hqd,hde->hqe", oh, wu_ref[...],
                         preferred_element_type=jnp.float32)
    out = jnp.sum(contrib, axis=0) + bu_ref[...]          # (t, e) + (1, e)
    o_ref[0] = out.astype(o_ref.dtype)


def self_attention_pallas(x, params, mask, *, heads, causal=False):
    """x: (b, t, e) f32; mask: (t, t) (0 = masked); returns (b, t, e)."""
    b, t, e = x.shape
    h = heads

    # PyTorch nn.Linear layout (out, in) -> per-head (h, e_in, e_out) so that
    # x @ w[hi] is head hi's projection.
    def per_head_in(w):
        return jnp.transpose(w.reshape(h, e, e), (0, 2, 1))

    scale = jnp.float32(e) ** jnp.float32(-0.5)          # (e**-0.25)**2
    wq = per_head_in(params["wq"]) * scale               # fold logit scale
    wk = per_head_in(params["wk"])
    wv = per_head_in(params["wv"])
    # unifyheads weight (e, h*e) -> (h, e, e): wu[hi] = Wu[:, hi*e:(hi+1)*e].T
    wu = jnp.transpose(params["wu"].reshape(e, h, e), (1, 2, 0)).astype(jnp.float32)
    bu = params["bu"].reshape(1, e).astype(jnp.float32)

    # Loop-invariant mask, precomputed once: 0.0 = keep, -1e9 = masked_fill
    # (mask == 0, applied last so it wins), -inf = strict-upper causal.
    fill = jnp.where(mask == 0, jnp.float32(-1e9), jnp.float32(0.0))
    if causal:
        rows = lax.broadcasted_iota(jnp.int32, (t, t), 0)
        cols = lax.broadcasted_iota(jnp.int32, (t, t), 1)
        fill = jnp.where((cols > rows) & (mask != 0), -jnp.inf, fill)
    fill = fill.astype(jnp.float32)

    # bf16 operands for the projection matmuls (f32 accumulation in-kernel).
    x_c = x.astype(jnp.bfloat16)
    wq_c = wq.astype(jnp.bfloat16)
    wk_c = wk.astype(jnp.bfloat16)
    wv_c = wv.astype(jnp.bfloat16)

    kernel = functools.partial(_attn_kernel, heads=h)

    const3 = lambda bi: (0, 0, 0)
    const2 = lambda bi: (0, 0)

    grid_spec = pltpu.PrefetchScalarGridSpec(
        num_scalar_prefetch=0,
        grid=(b,),
        in_specs=[
            pl.BlockSpec((1, t, e), lambda bi: (bi, 0, 0)),   # x (per batch)
            pl.BlockSpec((h, e, e), const3),                  # wq (resident)
            pl.BlockSpec((h, e, e), const3),                  # wk (resident)
            pl.BlockSpec((h, e, e), const3),                  # wv (resident)
            pl.BlockSpec((h, e, e), const3),                  # wu (resident)
            pl.BlockSpec((1, e), const2),                     # bias
            pl.BlockSpec((t, t), const2),                     # fill mask
        ],
        out_specs=pl.BlockSpec((1, t, e), lambda bi: (bi, 0, 0)),
    )

    return pl.pallas_call(
        kernel,
        out_shape=jax.ShapeDtypeStruct((b, t, e), x.dtype),
        grid_spec=grid_spec,
        compiler_params=pltpu.CompilerParams(
            dimension_semantics=("parallel",)),   # batch across TCs (v7x)
    )(x_c, wq_c, wk_c, wv_c, wu, bu, fill)


def self_attention_reference(x, params, mask, *, heads, causal=False):
    """Pure-JAX reference mirroring the PyTorch forward."""
    b, t, e = x.shape
    h = heads
    keys = (x @ params["wk"].T).reshape(b, t, h, e)
    queries = (x @ params["wq"].T).reshape(b, t, h, e)
    values = (x @ params["wv"].T).reshape(b, t, h, e)
    keys = jnp.transpose(keys, (0, 2, 1, 3)).reshape(b * h, t, e)
    queries = jnp.transpose(queries, (0, 2, 1, 3)).reshape(b * h, t, e)
    values = jnp.transpose(values, (0, 2, 1, 3)).reshape(b * h, t, e)
    queries = queries / e ** 0.25
    keys = keys / e ** 0.25
    dot = jnp.einsum("bqe,bke->bqk", queries, keys)
    if causal:
        rows = lax.broadcasted_iota(jnp.int32, (t, t), 0)
        cols = lax.broadcasted_iota(jnp.int32, (t, t), 1)
        dot = jnp.where(cols > rows, -jnp.inf, dot)
    dot = jnp.where(mask == 0, -1e9, dot)
    dot = jax.nn.softmax(dot, axis=2)
    out = jnp.einsum("bqk,bke->bqe", dot, values).reshape(b, h, t, e)
    out = jnp.transpose(out, (0, 2, 1, 3)).reshape(b, t, h * e)
    return out @ params["wu"].T + params["bu"]


if __name__ == "__main__":
    b, t, e, heads = 2, 8, 32, 8

    key = jax.random.PRNGKey(0)
    kx, kq, kk, kv, ku, kb, km = jax.random.split(key, 7)

    # Deterministic synthetic parameters (PyTorch nn.Linear layout: (out, in)).
    bound_e = 1.0 / (e ** 0.5)
    bound_he = 1.0 / ((heads * e) ** 0.5)
    params = {
        "wq": jax.random.uniform(kq, (heads * e, e), jnp.float32, -bound_e, bound_e),
        "wk": jax.random.uniform(kk, (heads * e, e), jnp.float32, -bound_e, bound_e),
        "wv": jax.random.uniform(kv, (heads * e, e), jnp.float32, -bound_e, bound_e),
        "wu": jax.random.uniform(ku, (e, heads * e), jnp.float32, -bound_he, bound_he),
        "bu": jax.random.uniform(kb, (e,), jnp.float32, -bound_he, bound_he),
    }

    x = jax.random.normal(kx, (b, t, e), jnp.float32)
    # Attention mask (broadcast over b*heads, like masked_fill with a (t,t) mask).
    mask = (jax.random.uniform(km, (t, t)) > 0.2).astype(jnp.float32)

    out = self_attention_pallas(x, params, mask, heads=heads, causal=False)
    out = jax.block_until_ready(out)
    ref = self_attention_reference(x, params, mask, heads=heads, causal=False)
    if not bool(jnp.allclose(out, ref, rtol=2e-2, atol=2e-2)):
        raise AssertionError("Pallas output mismatch vs reference (causal=False)")

    out_c = self_attention_pallas(x, params, mask, heads=heads, causal=True)
    out_c = jax.block_until_ready(out_c)
    ref_c = self_attention_reference(x, params, mask, heads=heads, causal=True)
    if not bool(jnp.allclose(out_c, ref_c, rtol=2e-2, atol=2e-2)):
        raise AssertionError("Pallas output mismatch vs reference (causal=True)")

    print("KERNEL_OK")
</pallas_src>

<mosaic_0001>
module attributes {stable_mosaic.version = 11 : i64} {
  func.func @_attn_kernel(%arg0: i32, %arg1: memref<1x8x32xbf16, #tpu.memory_space<vmem>>, %arg2: memref<8x32x32xbf16, #tpu.memory_space<vmem>>, %arg3: memref<8x32x32xbf16, #tpu.memory_space<vmem>>, %arg4: memref<8x32x32xbf16, #tpu.memory_space<vmem>>, %arg5: memref<8x32x32xf32, #tpu.memory_space<vmem>>, %arg6: memref<1x32xf32, #tpu.memory_space<vmem>>, %arg7: memref<8x8xf32, #tpu.memory_space<vmem>>, %arg8: memref<1x8x32xf32, #tpu.memory_space<vmem>>) attributes {dimension_semantics = [#tpu.dimension_semantics<parallel>], iteration_bounds = array<i64: 2>, scalar_prefetch = 0 : i64, scratch_operands = 0 : i64, tpu.core_type = #tpu.core_type<tc>, window_params = [{transform_indices = @transform_0, window_bounds = array<i64: 1, 8, 32>}, {pipeline_mode = #tpu.pipeline_mode<synchronous>, transform_indices = @transform_1, window_bounds = array<i64: 8, 32, 32>}, {pipeline_mode = #tpu.pipeline_mode<synchronous>, transform_indices = @transform_2, window_bounds = array<i64: 8, 32, 32>}, {pipeline_mode = #tpu.pipeline_mode<synchronous>, transform_indices = @transform_3, window_bounds = array<i64: 8, 32, 32>}, {pipeline_mode = #tpu.pipeline_mode<synchronous>, transform_indices = @transform_4, window_bounds = array<i64: 8, 32, 32>}, {pipeline_mode = #tpu.pipeline_mode<synchronous>, transform_indices = @transform_5, window_bounds = array<i64: 1, 32>}, {pipeline_mode = #tpu.pipeline_mode<synchronous>, transform_indices = @transform_6, window_bounds = array<i64: 8, 8>}, {transform_indices = @transform_7, window_bounds = array<i64: 1, 8, 32>}]} {
    %c0 = arith.constant 0 : index
    %c0_0 = arith.constant 0 : index
    %c0_1 = arith.constant 0 : index
    %0 = vector.load %arg1[%c0, %c0_0, %c0_1] : memref<1x8x32xbf16, #tpu.memory_space<vmem>>, vector<1x8x32xbf16>
    %1 = vector.shape_cast %0 : vector<1x8x32xbf16> to vector<8x32xbf16>
    %2 = vector.shape_cast %1 : vector<8x32xbf16> to vector<1x8x32xbf16>
    %3 = vector.shape_cast %2 : vector<1x8x32xbf16> to vector<1x8x32xbf16>
    %4 = vector.broadcast %3 : vector<1x8x32xbf16> to vector<8x8x32xbf16>
    %c0_2 = arith.constant 0 : index
    %c0_3 = arith.constant 0 : index
    %c0_4 = arith.constant 0 : index
    %5 = vector.load %arg2[%c0_2, %c0_3, %c0_4] : memref<8x32x32xbf16, #tpu.memory_space<vmem>>, vector<8x32x32xbf16>
    "tpu.trace_start"() <{level = 10 : i32, message = "hti,hid->htd"}> : () -> ()
    %cst = arith.constant dense<0.000000e+00> : vector<8x8x32xf32>
    %6 = tpu.matmul %4, %5, %cst {dimension_numbers = #tpu.dot_dimension_numbers<[2], [1], [1], [2], [0, 0, 0, 1, 1, 2], [0], [0]>} : vector<8x8x32xbf16>, vector<8x32x32xbf16>, vector<8x8x32xf32> -> vector<8x8x32xf32>
    "tpu.trace_stop"() : () -> ()
    %c0_5 = arith.constant 0 : index
    %c0_6 = arith.constant 0 : index
    %c0_7 = arith.constant 0 : index
    %7 = vector.load %arg3[%c0_5, %c0_6, %c0_7] : memref<8x32x32xbf16, #tpu.memory_space<vmem>>, vector<8x32x32xbf16>
    "tpu.trace_start"() <{level = 10 : i32, message = "hti,hid->htd"}> : () -> ()
    %cst_8 = arith.constant dense<0.000000e+00> : vector<8x8x32xf32>
    %8 = tpu.matmul %4, %7, %cst_8 {dimension_numbers = #tpu.dot_dimension_numbers<[2], [1], [1], [2], [0, 0, 0, 1, 1, 2], [0], [0]>} : vector<8x8x32xbf16>, vector<8x32x32xbf16>, vector<8x8x32xf32> -> vector<8x8x32xf32>
    "tpu.trace_stop"() : () -> ()
    %c0_9 = arith.constant 0 : index
    %c0_10 = arith.constant 0 : index
    %c0_11 = arith.constant 0 : index
    %9 = vector.load %arg4[%c0_9, %c0_10, %c0_11] : memref<8x32x32xbf16, #tpu.memory_space<vmem>>, vector<8x32x32xbf16>
    "tpu.trace_start"() <{level = 10 : i32, message = "hti,hid->htd"}> : () -> ()
    %cst_12 = arith.constant dense<0.000000e+00> : vector<8x8x32xf32>
    %10 = tpu.matmul %4, %9, %cst_12 {dimension_numbers = #tpu.dot_dimension_numbers<[2], [1], [1], [2], [0, 0, 0, 1, 1, 2], [0], [0]>} : vector<8x8x32xbf16>, vector<8x32x32xbf16>, vector<8x8x32xf32> -> vector<8x8x32xf32>
    "tpu.trace_stop"() : () -> ()
    "tpu.trace_start"() <{level = 10 : i32, message = "hqd,hkd->hqk"}> : () -> ()
    %cst_13 = arith.constant dense<0.000000e+00> : vector<8x8x8xf32>
    %11 = tpu.matmul %6, %8, %cst_13 {dimension_numbers = #tpu.dot_dimension_numbers<[2], [2], [1], [1], [0, 0, 0, 1, 1, 1], [0], [0]>} : vector<8x8x32xf32>, vector<8x8x32xf32>, vector<8x8x8xf32> -> vector<8x8x8xf32>
    "tpu.trace_stop"() : () -> ()
    %c0_14 = arith.constant 0 : index
    %c0_15 = arith.constant 0 : index
    %12 = vector.load %arg7[%c0_14, %c0_15] : memref<8x8xf32, #tpu.memory_space<vmem>>, vector<8x8xf32>
    %13 = vector.shape_cast %12 : vector<8x8xf32> to vector<1x8x8xf32>
    %14 = vector.shape_cast %13 : vector<1x8x8xf32> to vector<1x8x8xf32>
    %15 = vector.broadcast %14 : vector<1x8x8xf32> to vector<8x8x8xf32>
    %cst_16 = arith.constant 0.000000e+00 : f32
    %16 = vector.broadcast %cst_16 : f32 to vector<8x8x8xf32>
    %17 = arith.cmpf oeq, %15, %16 : vector<8x8x8xf32>
    %18 = arith.select %17, %11, %15 : vector<8x8x8xi1>, vector<8x8x8xf32>
    %cst_17 = arith.constant dense<0xFF800000> : vector<8x8xf32>
    %19 = vector.multi_reduction <maximumf>, %18, %cst_17 [2] : vector<8x8x8xf32> to vector<8x8xf32>
    %20 = vector.shape_cast %19 : vector<8x8xf32> to vector<8x8x1xf32>
    %21 = vector.broadcast %20 : vector<8x8x1xf32> to vector<8x8x8xf32>
    %22 = arith.subf %18, %21 : vector<8x8x8xf32>
    %23 = math.exp %22 : vector<8x8x8xf32>
    %cst_18 = arith.constant dense<0.000000e+00> : vector<8x8xf32>
    %24 = vector.multi_reduction <add>, %23, %cst_18 [2] : vector<8x8x8xf32> to vector<8x8xf32>
    %25 = vector.shape_cast %24 : vector<8x8xf32> to vector<8x8x1xf32>
    %26 = tpu.reciprocal %25 {approx = true} : vector<8x8x1xf32> -> vector<8x8x1xf32>
    %27 = vector.broadcast %26 : vector<8x8x1xf32> to vector<8x8x8xf32>
    %28 = arith.mulf %23, %27 : vector<8x8x8xf32>
    "tpu.trace_start"() <{level = 10 : i32, message = "hqk,hkd->hqd"}> : () -> ()
    %cst_19 = arith.constant dense<0.000000e+00> : vector<8x8x32xf32>
    %29 = tpu.matmul %28, %10, %cst_19 {dimension_numbers = #tpu.dot_dimension_numbers<[2], [1], [1], [2], [0, 0, 0, 1, 1, 2], [0], [0]>} : vector<8x8x8xf32>, vector<8x8x32xf32>, vector<8x8x32xf32> -> vector<8x8x32xf32>
    "tpu.trace_stop"() : () -> ()
    %c0_20 = arith.constant 0 : index
    %c0_21 = arith.constant 0 : index
    %c0_22 = arith.constant 0 : index
    %30 = vector.load %arg5[%c0_20, %c0_21, %c0_22] : memref<8x32x32xf32, #tpu.memory_space<vmem>>, vector<8x32x32xf32>
    "tpu.trace_start"() <{level = 10 : i32, message = "hqd,hde->hqe"}> : () -> ()
    %cst_23 = arith.constant dense<0.000000e+00> : vector<8x8x32xf32>
    %31 = tpu.matmul %29, %30, %cst_23 {dimension_numbers = #tpu.dot_dimension_numbers<[2], [1], [1], [2], [0, 0, 0, 1, 1, 2], [0], [0]>} : vector<8x8x32xf32>, vector<8x32x32xf32>, vector<8x8x32xf32> -> vector<8x8x32xf32>
    "tpu.trace_stop"() : () -> ()
    %cst_24 = arith.constant dense<0.000000e+00> : vector<8x32xf32>
    %32 = vector.multi_reduction <add>, %31, %cst_24 [0] : vector<8x8x32xf32> to vector<8x32xf32>
    %c0_25 = arith.constant 0 : index
    %c0_26 = arith.constant 0 : index
    %33 = vector.load %arg6[%c0_25, %c0_26] : memref<1x32xf32, #tpu.memory_space<vmem>>, vector<1x32xf32>
    %34 = vector.broadcast %33 : vector<1x32xf32> to vector<8x32xf32>
    %35 = arith.addf %32, %34 : vector<8x32xf32>
    %c0_27 = arith.constant 0 : index
    %c0_28 = arith.constant 0 : index
    %c0_29 = arith.constant 0 : index
    %36 = vector.load %arg8[%c0_27, %c0_28, %c0_29] : memref<1x8x32xf32, #tpu.memory_space<vmem>>, vector<1x8x32xf32>
    %37 = vector.shape_cast %36 : vector<1x8x32xf32> to vector<8x32xf32>
    %38 = vector.shape_cast %35 : vector<8x32xf32> to vector<1x8x32xf32>
    tpu.vector_store %arg8[%c0_27, %c0_28, %c0_29], %38 {strides = array<i32>} : memref<1x8x32xf32, #tpu.memory_space<vmem>>, vector<1x8x32xf32>,
    return
  }
  func.func @transform_0(%arg0: i32) -> (i32, i32, i32) {
    %c0_i32 = arith.constant 0 : i32
    %c0_i32_0 = arith.constant 0 : i32
    %c0_i32_1 = arith.constant 0 : i32
    return %arg0, %c0_i32, %c0_i32_0 : i32, i32, i32
  }
  func.func @transform_1(%arg0: i32) -> (i32, i32, i32) {
    %c0_i32 = arith.constant 0 : i32
    %c0_i32_0 = arith.constant 0 : i32
    %c0_i32_1 = arith.constant 0 : i32
    %c0_i32_2 = arith.constant 0 : i32
    return %c0_i32, %c0_i32_0, %c0_i32_1 : i32, i32, i32
  }
  func.func @transform_2(%arg0: i32) -> (i32, i32, i32) {
    %c0_i32 = arith.constant 0 : i32
    %c0_i32_0 = arith.constant 0 : i32
    %c0_i32_1 = arith.constant 0 : i32
    %c0_i32_2 = arith.constant 0 : i32
    return %c0_i32, %c0_i32_0, %c0_i32_1 : i32, i32, i32
  }
  func.func @transform_3(%arg0: i32) -> (i32, i32, i32) {
    %c0_i32 = arith.constant 0 : i32
    %c0_i32_0 = arith.constant 0 : i32
    %c0_i32_1 = arith.constant 0 : i32
    %c0_i32_2 = arith.constant 0 : i32
    return %c0_i32, %c0_i32_0, %c0_i32_1 : i32, i32, i32
  }
  func.func @transform_4(%arg0: i32) -> (i32, i32, i32) {
    %c0_i32 = arith.constant 0 : i32
    %c0_i32_0 = arith.constant 0 : i32
    %c0_i32_1 = arith.constant 0 : i32
    %c0_i32_2 = arith.constant 0 : i32
    return %c0_i32, %c0_i32_0, %c0_i32_1 : i32, i32, i32
  }
  func.func @transform_5(%arg0: i32) -> (i32, i32) {
    %c0_i32 = arith.constant 0 : i32
    %c0_i32_0 = arith.constant 0 : i32
    %c0_i32_1 = arith.constant 0 : i32
    return %c0_i32, %c0_i32_0 : i32, i32
  }
  func.func @transform_6(%arg0: i32) -> (i32, i32) {
    %c0_i32 = arith.constant 0 : i32
    %c0_i32_0 = arith.constant 0 : i32
    %c0_i32_1 = arith.constant 0 : i32
    return %c0_i32, %c0_i32_0 : i32, i32
  }
  func.func @transform_7(%arg0: i32) -> (i32, i32, i32) {
    %c0_i32 = arith.constant 0 : i32
    %c0_i32_0 = arith.constant 0 : i32
    %c0_i32_1 = arith.constant 0 : i32
    return %arg0, %c0_i32, %c0_i32_0 : i32, i32, i32
  }
}

</mosaic_0001>

<llo_original>
// kernel: tpu_custom_call.1
$region0: #{tpu_custom_call.1}
  #allocation0 [shape = 'u32[]', space=smem, size = 0x4, offset = 0x4, fixed_abs, tag = 'smem constant byte address 0x4 - core index']
  #allocation1 [shape = 'u32[144,128]{1,0:T(1,128)}', space=vmem, size = 0x12000, scoped, tag = 'internal scratch']
  %s0 = inlined_call_operand.hbm [shape: bf16[2,8,32], index: 0, kind: input, shape index: {}]
  %s1 = inlined_call_operand.hbm [shape: bf16[8,32,32], index: 1, kind: input, shape index: {}]
  %s2 = inlined_call_operand.hbm [shape: bf16[8,32,32], index: 2, kind: input, shape index: {}]
  %s3 = inlined_call_operand.hbm [shape: bf16[8,32,32], index: 3, kind: input, shape index: {}]
  %s4 = inlined_call_operand.hbm [shape: f32[8,32,32], index: 4, kind: input, shape index: {}]
  %s5 = inlined_call_operand.vmem [shape: f32[1,32], index: 5, kind: input, shape index: {}]
  %s6 = inlined_call_operand.vmem [shape: f32[8,8], index: 6, kind: input, shape index: {}]
  %s7 = inlined_call_operand.hbm [shape: f32[2,8,32], index: 7, kind: output, shape index: {}]
  %s8 = sld [smem:[#allocation0]]
  $region81: #{tpu_custom_call.1} parent=0
    _
  %s10 = ssub.s32 1, %s8
  %s11 = scalar_select 0, %s10, %s8
  $region1: #{tpu_custom_call.1} parent=0
    #allocation2 [shape = 'u8[4096]{0}', space=vmem, size = 0x1000, scoped, tag = 'input window, operand 0']
    #allocation3 [shape = 's32[2]{0}', space=sflag, size = 0x8, scoped, tag = 'scoped memory for tpu_custom_call.1']
    #allocation4 [shape = 's32[2]{0}', space=sflag, size = 0x8, scoped, tag = 'scoped memory for tpu_custom_call.1']
    #allocation5 [shape = 'u8[65536]{0}', space=vmem, size = 0x10000, scoped, tag = 'input window, operand 1, single buffered']
    #allocation6 [shape = 's32[1]{0}', space=sflag, size = 0x4, scoped, tag = 'scoped memory for tpu_custom_call.1']
    #allocation7 [shape = 'u8[65536]{0}', space=vmem, size = 0x10000, scoped, tag = 'input window, operand 2, single buffered']
    #allocation8 [shape = 'u8[65536]{0}', space=vmem, size = 0x10000, scoped, tag = 'input window, operand 3, single buffered']
    #allocation9 [shape = 's32[1]{0}', space=sflag, size = 0x4, scoped, tag = 'scoped memory for tpu_custom_call.1']
    #allocation10 [shape = 'u8[131072]{0}', space=vmem, size = 0x20000, scoped, tag = 'input window, operand 4, single buffered']
    #allocation11 [shape = 'u8[8192]{0}', space=vmem, size = 0x2000, scoped, tag = 'output window, operand 0']
    %12 = vsyncpa [#allocation3], 0
    %s13 = scalar_lea.sflag [#allocation3], 1
    %14 = vsyncpa %s13, 0
    %15 = vsyncpa [#allocation6], 0
    %16 = vsyncpa [#allocation9], 0
    %17 = vsyncpa [#allocation4], 0
    %s18 = scalar_lea.sflag [#allocation4], 1
    %19 = vsyncpa %s18, 0
    loop: start=0, step=1, limit=4
    $region2: #{tpu_custom_call.1} parent=1 // loop_pre_header
      _
    $region3: #{tpu_custom_call.1} parent=1 // loop_header
      %s21 = sphi 0, %s25
      %p22 = scmp.ge.s32.totalorder %s21, 4
      %s31 = sphi 0, %s33
      %s34 = sphi 0, %s31
      %s35 = sphi 0, %s34
      %s51 = sphi 0, %s35
      %s55 = sphi 0, %s55
      %s57 = sphi 0, %s55
      %s58 = sphi 0, %s57
      %s72 = sphi 0, %s58
      %s76 = sphi 0, %s76
      %s78 = sphi 0, %s76
      %s79 = sphi 0, %s78
      %s93 = sphi 0, %s79
      %s97 = sphi 0, %s97
      %s99 = sphi 0, %s97
      %s100 = sphi 0, %s99
      %s114 = sphi 0, %s100
      %s118 = sphi 0, %s118
      %s120 = sphi 0, %s118
      %s121 = sphi 0, %s120
      %s135 = sphi 0, %s121
      %s139 = sphi 0, %s139
      %s141 = sphi 0, %s139
      %s142 = sphi 0, %s141
      %s156 = sphi 0, %s142
      %s160 = sphi 0, %s160
      %s162 = sphi 0, %s160
      %s163 = sphi 0, %s162
      %s177 = sphi 0, %s163
      %s183 = sphi 0, %s185
      %s186 = sphi 0, %s183
      %s187 = sphi 0, %s186
      %s203 = sphi 0, %s187
    $region4: #{tpu_custom_call.1} parent=1 // loop_header_branch
      %24 = sbr.rel (%p22) target = $region8
    $region5: #{tpu_custom_call.1} parent=1 // loop_body
      %s26 = ssub.s32 %s21, 1
      %s27 = ssub.s32 %s21, 2
      %s28 = sadd.s32 %s21, 1
      %s29 = ssub.s32 %s21, %s28
      %p30 = scmp.eq.s32.totalorder %s29, 0
      %s32 = sadd.s32 %s31, 1
      %s33 = scalar_select %p30, %s31, %s32
      %p36 = pneg %p30
      %p37 = scmp.eq.s32.totalorder %s21, 1
      %p38 = por %p36, %p37
      %p39 = scmp.ne.s32.totalorder %s31, %s34
      %p40 = scmp.eq.s32.totalorder %s21, 0
      %p41 = por %p39, %p40
      %p42 = scmp.ne.s32.totalorder %s31, %s34
      %p43 = scmp.eq.s32.totalorder %s26, 1
      %p44 = por %p42, %p43
      %p45 = scmp.ne.s32.totalorder %s34, %s35
      %p46 = scmp.eq.s32.totalorder %s26, 0
      %p47 = por %p45, %p46
      %p48 = scmp.ne.s32.totalorder %s34, %s35
      %p49 = scmp.eq.s32.totalorder %s27, 1
      %p50 = por %p48, %p49
      %p52 = scmp.ne.s32.totalorder %s35, %s51
      %p53 = scmp.eq.s32.totalorder %s27, 0
      %p54 = por %p52, %p53
      %s56 = sadd.s32 %s55, 1
      %p59 = scmp.eq.s32.totalorder %s21, 1
      %p60 = scmp.ne.s32.totalorder %s55, %s57
      %p61 = scmp.eq.s32.totalorder %s21, 0
      %p62 = por %p60, %p61
      %p63 = scmp.ne.s32.totalorder %s55, %s57
      %p64 = scmp.eq.s32.totalorder %s26, 1
      %p65 = por %p63, %p64
      %p66 = scmp.ne.s32.totalorder %s57, %s58
      %p67 = scmp.eq.s32.totalorder %s26, 0
      %p68 = por %p66, %p67
      %p69 = scmp.ne.s32.totalorder %s57, %s58
      %p70 = scmp.eq.s32.totalorder %s27, 1
      %p71 = por %p69, %p70
      %p73 = scmp.ne.s32.totalorder %s58, %s72
      %p74 = scmp.eq.s32.totalorder %s27, 0
      %p75 = por %p73, %p74
      %s77 = sadd.s32 %s76, 1
      %p80 = scmp.eq.s32.totalorder %s21, 1
      %p81 = scmp.ne.s32.totalorder %s76, %s78
      %p82 = scmp.eq.s32.totalorder %s21, 0
      %p83 = por %p81, %p82
      %p84 = scmp.ne.s32.totalorder %s76, %s78
      %p85 = scmp.eq.s32.totalorder %s26, 1
      %p86 = por %p84, %p85
      %p87 = scmp.ne.s32.totalorder %s78, %s79
      %p88 = scmp.eq.s32.totalorder %s26, 0
      %p89 = por %p87, %p88
      %p90 = scmp.ne.s32.totalorder %s78, %s79
      %p91 = scmp.eq.s32.totalorder %s27, 1
      %p92 = por %p90, %p91
      %p94 = scmp.ne.s32.totalorder %s79, %s93
      %p95 = scmp.eq.s32.totalorder %s27, 0
      %p96 = por %p94, %p95
      %s98 = sadd.s32 %s97, 1
      %p101 = scmp.eq.s32.totalorder %s21, 1
      %p102 = scmp.ne.s32.totalorder %s97, %s99
      %p103 = scmp.eq.s32.totalorder %s21, 0
      %p104 = por %p102, %p103
      %p105 = scmp.ne.s32.totalorder %s97, %s99
      %p106 = scmp.eq.s32.totalorder %s26, 1
      %p107 = por %p105, %p106
      %p108 = scmp.ne.s32.totalorder %s99, %s100
      %p109 = scmp.eq.s32.totalorder %s26, 0
      %p110 = por %p108, %p109
      %p111 = scmp.ne.s32.totalorder %s99, %s100
      %p112 = scmp.eq.s32.totalorder %s27, 1
      %p113 = por %p111, %p112
      %p115 = scmp.ne.s32.totalorder %s100, %s114
      %p116 = scmp.eq.s32.totalorder %s27, 0
      %p117 = por %p115, %p116
      %s119 = sadd.s32 %s118, 1
      %p122 = scmp.eq.s32.totalorder %s21, 1
      %p123 = scmp.ne.s32.totalorder %s118, %s120
      %p124 = scmp.eq.s32.totalorder %s21, 0
      %p125 = por %p123, %p124
      %p126 = scmp.ne.s32.totalorder %s118, %s120
      %p127 = scmp.eq.s32.totalorder %s26, 1
      %p128 = por %p126, %p127
      %p129 = scmp.ne.s32.totalorder %s120, %s121
      %p130 = scmp.eq.s32.totalorder %s26, 0
      %p131 = por %p129, %p130
      %p132 = scmp.ne.s32.totalorder %s120, %s121
      %p133 = scmp.eq.s32.totalorder %s27, 1
      %p134 = por %p132, %p133
      %p136 = scmp.ne.s32.totalorder %s121, %s135
      %p137 = scmp.eq.s32.totalorder %s27, 0
      %p138 = por %p136, %p137
      %s140 = sadd.s32 %s139, 1
      %p143 = scmp.eq.s32.totalorder %s21, 1
      %p144 = scmp.ne.s32.totalorder %s139, %s141
      %p145 = scmp.eq.s32.totalorder %s21, 0
      %p146 = por %p144, %p145
      %p147 = scmp.ne.s32.totalorder %s139, %s141
      %p148 = scmp.eq.s32.totalorder %s26, 1
      %p149 = por %p147, %p148
      %p150 = scmp.ne.s32.totalorder %s141, %s142
      %p151 = scmp.eq.s32.totalorder %s26, 0
      %p152 = por %p150, %p151
      %p153 = scmp.ne.s32.totalorder %s141, %s142
      %p154 = scmp.eq.s32.totalorder %s27, 1
      %p155 = por %p153, %p154
      %p157 = scmp.ne.s32.totalorder %s142, %s156
      %p158 = scmp.eq.s32.totalorder %s27, 0
      %p159 = por %p157, %p158
      %s161 = sadd.s32 %s160, 1
      %p164 = scmp.eq.s32.totalorder %s21, 1
      %p165 = scmp.ne.s32.totalorder %s160, %s162
      %p166 = scmp.eq.s32.totalorder %s21, 0
      %p167 = por %p165, %p166
      %p168 = scmp.ne.s32.totalorder %s160, %s162
      %p169 = scmp.eq.s32.totalorder %s26, 1
      %p170 = por %p168, %p169
      %p171 = scmp.ne.s32.totalorder %s162, %s163
      %p172 = scmp.eq.s32.totalorder %s26, 0
      %p173 = por %p171, %p172
      %p174 = scmp.ne.s32.totalorder %s162, %s163
      %p175 = scmp.eq.s32.totalorder %s27, 1
      %p176 = por %p174, %p175
      %p178 = scmp.ne.s32.totalorder %s163, %s177
      %p179 = scmp.eq.s32.totalorder %s27, 0
      %p180 = por %p178, %p179
      %s181 = ssub.s32 %s21, %s28
      %p182 = scmp.eq.s32.totalorder %s181, 0
      %s184 = sadd.s32 %s183, 1
      %s185 = scalar_select %p182, %s183, %s184
      %p188 = pneg %p182
      %p189 = scmp.eq.s32.totalorder %s21, 1
      %p190 = por %p188, %p189
      %p191 = scmp.ne.s32.totalorder %s183, %s186
      %p192 = scmp.eq.s32.totalorder %s21, 0
      %p193 = por %p191, %p192
      %p194 = scmp.ne.s32.totalorder %s183, %s186
      %p195 = scmp.eq.s32.totalorder %s26, 1
      %p196 = por %p194, %p195
      %p197 = scmp.ne.s32.totalorder %s186, %s187
      %p198 = scmp.eq.s32.totalorder %s26, 0
      %p199 = por %p197, %p198
      %p200 = scmp.ne.s32.totalorder %s186, %s187
      %p201 = scmp.eq.s32.totalorder %s27, 1
      %p202 = por %p200, %p201
      %p204 = scmp.ne.s32.totalorder %s187, %s203
      %p205 = scmp.eq.s32.totalorder %s27, 0
      %p206 = por %p204, %p205
      %p207 = scmp.le.s32.totalorder 1, %s21
      %p208 = scmp.lt.s32.totalorder %s21, 3
      %p209 = pnand %p207, %p208
      %p210 = pneg %p209
      // Predicated region
      $region9: #{tpu_custom_call.1} parent=5 // pred_check
        _
      $region10: #{tpu_custom_call.1} parent=5 // pred_check_branch
        %212 = sbr.rel (%p209) target = $region12
      $region11: #{tpu_custom_call.1} parent=5 // pred_region
        %s213 = ssub.s32 %s21, 1
        // Predicated region
        $region13: #{tpu_custom_call.1} parent=11 // pred_check
          %p214 = pneg %p68
        $region14: #{tpu_custom_call.1} parent=11 // pred_check_branch
          %216 = sbr.rel (%p214) target = $region16
        $region15: #{tpu_custom_call.1} parent=11 // pred_region
          %s218 = ssub.s32 2048, 2048
          %219 = vsyncadd [#allocation6], %s218
          %s220 = sshll.u32 [#allocation5], 4
          %s221 = int_to_ptr.vmem [resolvable:$true] %s220
          %226 = dma.hbm_to_vmem [thread:$0]  %s1, 2048, %s221, [#allocation6], 64, 64, 4
        $region16: #{tpu_custom_call.1} parent=11 // pred_fallthru
          _
        // Predicated region
        $region17: #{tpu_custom_call.1} parent=11 // pred_check
          %p227 = pneg %p89
        $region18: #{tpu_custom_call.1} parent=11 // pred_check_branch
          %229 = sbr.rel (%p227) target = $region20
        $region19: #{tpu_custom_call.1} parent=11 // pred_region
          %s231 = ssub.s32 2048, 2048
          %232 = vsyncadd [#allocation6], %s231
          %s233 = sshll.u32 [#allocation7], 4
          %s234 = int_to_ptr.vmem [resolvable:$true] %s233
          %239 = dma.hbm_to_vmem [thread:$0]  %s2, 2048, %s234, [#allocation6], 64, 64, 4
        $region20: #{tpu_custom_call.1} parent=11 // pred_fallthru
          _
        // Predicated region
        $region21: #{tpu_custom_call.1} parent=11 // pred_check
          %p240 = pneg %p110
        $region22: #{tpu_custom_call.1} parent=11 // pred_check_branch
          %242 = sbr.rel (%p240) target = $region24
        $region23: #{tpu_custom_call.1} parent=11 // pred_region
          %s244 = ssub.s32 2048, 2048
          %245 = vsyncadd [#allocation9], %s244
          %s246 = sshll.u32 [#allocation8], 4
          %s247 = int_to_ptr.vmem [resolvable:$true] %s246
          %252 = dma.hbm_to_vmem [thread:$0]  %s3, 2048, %s247, [#allocation9], 64, 64, 4
        $region24: #{tpu_custom_call.1} parent=11 // pred_fallthru
          _
        // Predicated region
        $region25: #{tpu_custom_call.1} parent=11 // pred_check
          %p253 = pneg %p131
        $region26: #{tpu_custom_call.1} parent=11 // pred_check_branch
          %255 = sbr.rel (%p253) target = $region28
        $region27: #{tpu_custom_call.1} parent=11 // pred_region
          %s257 = ssub.s32 4096, 4096
          %258 = vsyncadd [#allocation9], %s257
          %s259 = sshll.u32 [#allocation10], 4
          %s260 = int_to_ptr.vmem [resolvable:$true] %s259
          %265 = dma.hbm_to_vmem [thread:$0]  %s4, 4096, %s260, [#allocation9], 128, 128, 8
        $region28: #{tpu_custom_call.1} parent=11 // pred_fallthru
          _
        // Predicated region
        $region29: #{tpu_custom_call.1} parent=11 // pred_check
          %p266 = pneg %p152
        $region30: #{tpu_custom_call.1} parent=11 // pred_check_branch
          %268 = sbr.rel (%p266) target = $region32
        $region31: #{tpu_custom_call.1} parent=11 // pred_region
          _
        $region32: #{tpu_custom_call.1} parent=11 // pred_fallthru
          _
        // Predicated region
        $region33: #{tpu_custom_call.1} parent=11 // pred_check
          %p269 = pneg %p173
        $region34: #{tpu_custom_call.1} parent=11 // pred_check_branch
          %271 = sbr.rel (%p269) target = $region36
        $region35: #{tpu_custom_call.1} parent=11 // pred_region
          _
        $region36: #{tpu_custom_call.1} parent=11 // pred_fallthru
          _
      $region12: #{tpu_custom_call.1} parent=5 // pred_fallthru
        _
      %p272 = scmp.lt.s32.totalorder %s21, 2
      // Predicated region
      $region37: #{tpu_custom_call.1} parent=5 // pred_check
        %p273 = pneg %p272
      $region38: #{tpu_custom_call.1} parent=5 // pred_check_branch
        %275 = sbr.rel (%p273) target = $region40
      $region39: #{tpu_custom_call.1} parent=5 // pred_region
        // Predicated region
        $region41: #{tpu_custom_call.1} parent=39 // pred_check
          %p276 = pneg %p41
        $region42: #{tpu_custom_call.1} parent=39 // pred_check_branch
          %278 = sbr.rel (%p276) target = $region44
        $region43: #{tpu_custom_call.1} parent=39 // pred_region
          %s279 = sand.u32 %s31, 1
          %s280 = scalar_lea.sflag [#allocation3], %s279
          %s281 = sand.u32 %s31, 1
          %s282 = smul.addr %s281, 4
          %s283 = scalar_lea.vmem [#allocation2], %s282
          %s285 = ssub.s32 64, 64
          %286 = vsyncadd %s280, %s285
          %s287 = smul.addr %s21, 64
          %s288 = scalar_lea.hbm %s0, %s287
          %s290 = sshll.u32 %s283, 4
          %s291 = int_to_ptr.vmem [resolvable:$true] %s290
          %293 = dma.hbm_to_vmem [thread:$0]  %s288, 64, %s291, %s280
        $region44: #{tpu_custom_call.1} parent=39 // pred_fallthru
          _
      $region40: #{tpu_custom_call.1} parent=5 // pred_fallthru
        _
      %p294 = scmp.le.s32.totalorder 1, %s21
      %p295 = scmp.lt.s32.totalorder %s21, 3
      %p296 = pnand %p294, %p295
      %p297 = pneg %p296
      // Predicated region
      $region45: #{tpu_custom_call.1} parent=5 // pred_check
        _
      $region46: #{tpu_custom_call.1} parent=5 // pred_check_branch
        %299 = sbr.rel (%p296) target = $region48
      $region47: #{tpu_custom_call.1} parent=5 // pred_region
        %s300 = ssub.s32 %s21, 1
        %s301 = sand.u32 %s34, 1
        %s302 = scalar_lea.sflag [#allocation3], %s301
        %s303 = sand.u32 %s34, 1
        %s304 = smul.addr %s303, 4
        %s305 = scalar_lea.vmem [#allocation2], %s304
        // Predicated region
        $region49: #{tpu_custom_call.1} parent=47 // pred_check
          %p306 = pneg %p47
        $region50: #{tpu_custom_call.1} parent=47 // pred_check_branch
          %308 = sbr.rel (%p306) target = $region52
        $region51: #{tpu_custom_call.1} parent=47 // pred_region
          %309 = dma.done %s302, 64
        $region52: #{tpu_custom_call.1} parent=47 // pred_fallthru
          _
        // Predicated region
        $region53: #{tpu_custom_call.1} parent=47 // pred_check
          %p310 = pneg %p68
        $region54: #{tpu_custom_call.1} parent=47 // pred_check_branch
          %312 = sbr.rel (%p310) target = $region56
        $region55: #{tpu_custom_call.1} parent=47 // pred_region
          %313 = dma.done [#allocation6], 2048
        $region56: #{tpu_custom_call.1} parent=47 // pred_fallthru
          _
        // Predicated region
        $region57: #{tpu_custom_call.1} parent=47 // pred_check
          %p314 = pneg %p89
        $region58: #{tpu_custom_call.1} parent=47 // pred_check_branch
          %316 = sbr.rel (%p314) target = $region60
        $region59: #{tpu_custom_call.1} parent=47 // pred_region
          %317 = dma.done [#allocation6], 2048
        $region60: #{tpu_custom_call.1} parent=47 // pred_fallthru
          _
        // Predicated region
        $region61: #{tpu_custom_call.1} parent=47 // pred_check
          %p318 = pneg %p110
        $region62: #{tpu_custom_call.1} parent=47 // pred_check_branch
          %320 = sbr.rel (%p318) target = $region64
        $region63: #{tpu_custom_call.1} parent=47 // pred_region
          %321 = dma.done [#allocation9], 2048
        $region64: #{tpu_custom_call.1} parent=47 // pred_fallthru
          _
        // Predicated region
        $region65: #{tpu_custom_call.1} parent=47 // pred_check
          %p322 = pneg %p131
        $region66: #{tpu_custom_call.1} parent=47 // pred_check_branch
          %324 = sbr.rel (%p322) target = $region68
        $region67: #{tpu_custom_call.1} parent=47 // pred_region
          %325 = dma.done [#allocation9], 4096
        $region68: #{tpu_custom_call.1} parent=47 // pred_fallthru
          _
        %s326 = sand.u32 %s34, 1
        %s327 = scalar_lea.sflag [#allocation3], %s326
        %s328 = sand.u32 %s34, 1
        %s329 = smul.addr %s328, 4
        %s330 = scalar_lea.vmem [#allocation2], %s329
        %p331 = pneg %p47
        %p332 = pneg %p44
        %p333 = pneg %p68
        %p334 = pneg %p65
        %p335 = pneg %p89
        %p336 = pneg %p86
        %p337 = pneg %p110
        %p338 = pneg %p107
        %p339 = pneg %p131
        %p340 = pneg %p128
        %p341 = pneg %p152
        %p342 = pneg %p149
        %p343 = pneg %p173
        %p344 = pneg %p170
        %p345 = pneg %p199
        %p346 = pneg %p196
        %s347 = sand.u32 %s186, 1
        %s348 = scalar_lea.sflag [#allocation4], %s347
        %s349 = sand.u32 %s186, 1
        %s350 = smul.addr %s349, 8
        %s351 = scalar_lea.vmem [#allocation11], %s350
        %v353 = vld [vmem:[%s305] sm:$0xf]
        %v354 = vld [vmem:[#allocation5] sm:$0xf]
        %v355 = vld [vmem:[#allocation5 + $0x4] sm:$0xf]
        %v356 = vld [vmem:[#allocation5 + $0x8] sm:$0xf]
        %v357 = vld [vmem:[#allocation5 + $0xc] sm:$0xf]
        %v358 = vld [vmem:[#allocation5 + $0x10] sm:$0xf]
        %v359 = vld [vmem:[#allocation5 + $0x14] sm:$0xf]
        %v360 = vld [vmem:[#allocation5 + $0x18] sm:$0xf]
        %v361 = vld [vmem:[#allocation5 + $0x1c] sm:$0xf]
        %v362 = vld [vmem:[#allocation5 + $0x20] sm:$0xf]
        %v363 = vld [vmem:[#allocation5 + $0x24] sm:$0xf]
        %v364 = vld [vmem:[#allocation5 + $0x28] sm:$0xf]
        %v365 = vld [vmem:[#allocation5 + $0x2c] sm:$0xf]
        %v366 = vld [vmem:[#allocation5 + $0x30] sm:$0xf]
        %v367 = vld [vmem:[#allocation5 + $0x34] sm:$0xf]
        %v368 = vld [vmem:[#allocation5 + $0x38] sm:$0xf]
        %v369 = vld [vmem:[#allocation5 + $0x3c] sm:$0xf]
        %v370 = vld [vmem:[#allocation5 + $0x40] sm:$0xf]
        %v371 = vld [vmem:[#allocation5 + $0x44] sm:$0xf]
        %v372 = vld [vmem:[#allocation5 + $0x48] sm:$0xf]
        %v373 = vld [vmem:[#allocation5 + $0x4c] sm:$0xf]
        %v374 = vld [vmem:[#allocation5 + $0x50] sm:$0xf]
        %v375 = vld [vmem:[#allocation5 + $0x54] sm:$0xf]
        %v376 = vld [vmem:[#allocation5 + $0x58] sm:$0xf]
        %v377 = vld [vmem:[#allocation5 + $0x5c] sm:$0xf]
        %v378 = vld [vmem:[#allocation5 + $0x60] sm:$0xf]
        %v379 = vld [vmem:[#allocation5 + $0x64] sm:$0xf]
        %v380 = vld [vmem:[#allocation5 + $0x68] sm:$0xf]
        %v381 = vld [vmem:[#allocation5 + $0x6c] sm:$0xf]
        %v382 = vld [vmem:[#allocation5 + $0x70] sm:$0xf]
        %v383 = vld [vmem:[#allocation5 + $0x74] sm:$0xf]
        %v384 = vld [vmem:[#allocation5 + $0x78] sm:$0xf]
        %v385 = vld [vmem:[#allocation5 + $0x7c] sm:$0xf]
        %v390 = vunpack.c.l.b16 %v354
        %v391 = vunpack.c.l.b16 %v355
        %v392 = vunpack.c.l.b16 %v356
        %v393 = vunpack.c.l.b16 %v357
        %v394 = vpack.c.b16 %v391, %v390
        %v395 = vpack.c.b16 %v393, %v392
        %vm398 = vcmask 261120
        %v400 = vsel %vm398, %v353, 0
        %402 = vmatprep.subr.bf16.mxu0 0
        %403 = vmatpush1.bf16.msra.mxu0 %v394
        %404 = vmatprep.subr.bf16.mxu0 0
        %405 = vmatpush1.bf16.msra.mxu0 %v395
        %406 = vmatprep.subr.bf16.mxu0 0
        %407 = vmatpush1.bf16.msra.mxu0 0
        %408 = vmatprep.subr.bf16.mxu0 0
        %409 = vmatpush1.bf16.msra.mxu0 0
        %410 = vmatprep.subr.bf16.mxu0 0
        %411 = vmatpush1.bf16.msra.mxu0 0
        %412 = vmatprep.subr.bf16.mxu0 0
        %413 = vmatpush1.bf16.msra.mxu0 0
        %414 = vmatprep.subr.bf16.mxu0 0
        %415 = vmatpush1.bf16.msra.mxu0 0
        %416 = vmatprep.subr.bf16.mxu0 0
        %417 = vmatpush1.bf16.msra.mxu0 0
        %418 = vmatprep.subr.bf16.mxu0 0
        %419 = vmatpush1.bf16.msra.mxu0 0
        %420 = vmatprep.subr.bf16.mxu0 0
        %421 = vmatpush1.bf16.msra.mxu0 0
        %422 = vmatprep.subr.bf16.mxu0 0
        %423 = vmatpush1.bf16.msra.mxu0 0
        %424 = vmatprep.subr.bf16.mxu0 0
        %425 = vmatpush1.bf16.msra.mxu0 0
        %426 = vmatprep.subr.bf16.mxu0 0
        %427 = vmatpush1.bf16.msra.mxu0 0
        %428 = vmatprep.subr.bf16.mxu0 0
        %429 = vmatpush1.bf16.msra.mxu0 0
        %430 = vmatprep.subr.bf16.mxu0 0
        %431 = vmatpush1.bf16.msra.mxu0 0
        %432 = vmatprep.subr.bf16.mxu0 0
        %433 = vmatpush1.bf16.msra.mxu0 0
        %434 = vmatprep.mubr.bf16.mxu0 0
        %435 = vmatmul.mubr.bf16.gmra.mrb[0].mxu0 %v400
        %v436 = vpop.f32.mrb[0].mxu0
        %v437 = vadd.f32 0.0, %v436
        %v438 = vpop.f32.mrb[0].mxu0
        %v439 = vpop.f32.mrb[0].mxu0
        %v440 = vpop.f32.mrb[0].mxu0
        %441 = vdwg.mxu0
        %v446 = vunpack.c.l.b16 %v358
        %v447 = vunpack.c.l.b16 %v359
        %v448 = vunpack.c.l.b16 %v360
        %v449 = vunpack.c.l.b16 %v361
        %v450 = vpack.c.b16 %v447, %v446
        %v451 = vpack.c.b16 %v449, %v448
        %454 = vmatprep.subr.bf16.mxu0 0
        %455 = vmatpush1.bf16.msra.mxu0 %v450
        %456 = vmatprep.subr.bf16.mxu0 0
        %457 = vmatpush1.bf16.msra.mxu0 %v451
        %458 = vmatprep.subr.bf16.mxu0 0
        %459 = vmatpush1.bf16.msra.mxu0 0
        %460 = vmatprep.subr.bf16.mxu0 0
        %461 = vmatpush1.bf16.msra.mxu0 0
        %462 = vmatprep.subr.bf16.mxu0 0
        %463 = vmatpush1.bf16.msra.mxu0 0
        %464 = vmatprep.subr.bf16.mxu0 0
        %465 = vmatpush1.bf16.msra.mxu0 0
        %466 = vmatprep.subr.bf16.mxu0 0
        %467 = vmatpush1.bf16.msra.mxu0 0
        %468 = vmatprep.subr.bf16.mxu0 0
        %469 = vmatpush1.bf16.msra.mxu0 0
        %470 = vmatprep.subr.bf16.mxu0 0
        %471 = vmatpush1.bf16.msra.mxu0 0
        %472 = vmatprep.subr.bf16.mxu0 0
        %473 = vmatpush1.bf16.msra.mxu0 0
        %474 = vmatprep.subr.bf16.mxu0 0
        %475 = vmatpush1.bf16.msra.mxu0 0
        %476 = vmatprep.subr.bf16.mxu0 0
        %477 = vmatpush1.bf16.msra.mxu0 0
        %478 = vmatprep.subr.bf16.mxu0 0
        %479 = vmatpush1.bf16.msra.mxu0 0
        %480 = vmatprep.subr.bf16.mxu0 0
        %481 = vmatpush1.bf16.msra.mxu0 0
        %482 = vmatprep.subr.bf16.mxu0 0
        %483 = vmatpush1.bf16.msra.mxu0 0
        %484 = vmatprep.subr.bf16.mxu0 0
        %485 = vmatpush1.bf16.msra.mxu0 0
        %486 = vmatprep.mubr.bf16.mxu0 0
        %487 = vmatmul.mubr.bf16.gmra.mrb[0].mxu0 %v400
        %v488 = vpop.f32.mrb[0].mxu0
        %v489 = vadd.f32 0.0, %v488
        %v490 = vpop.f32.mrb[0].mxu0
        %v491 = vpop.f32.mrb[0].mxu0
        %v492 = vpop.f32.mrb[0].mxu0
        %493 = vdwg.mxu0
        %v498 = vunpack.c.l.b16 %v362
        %v499 = vunpack.c.l.b16 %v363
        %v500 = vunpack.c.l.b16 %v364
        %v501 = vunpack.c.l.b16 %v365
        %v502 = vpack.c.b16 %v499, %v498
        %v503 = vpack.c.b16 %v501, %v500
        %506 = vmatprep.subr.bf16.mxu0 0
        %507 = vmatpush1.bf16.msra.mxu0 %v502
        %508 = vmatprep.subr.bf16.mxu0 0
        %509 = vmatpush1.bf16.msra.mxu0 %v503
        %510 = vmatprep.subr.bf16.mxu0 0
        %511 = vmatpush1.bf16.msra.mxu0 0
        %512 = vmatprep.subr.bf16.mxu0 0
        %513 = vmatpush1.bf16.msra.mxu0 0
        %514 = vmatprep.subr.bf16.mxu0 0
        %515 = vmatpush1.bf16.msra.mxu0 0
        %516 = vmatprep.subr.bf16.mxu0 0
        %517 = vmatpush1.bf16.msra.mxu0 0
        %518 = vmatprep.subr.bf16.mxu0 0
        %519 = vmatpush1.bf16.msra.mxu0 0
        %520 = vmatprep.subr.bf16.mxu0 0
        %521 = vmatpush1.bf16.msra.mxu0 0
        %522 = vmatprep.subr.bf16.mxu0 0
        %523 = vmatpush1.bf16.msra.mxu0 0
        %524 = vmatprep.subr.bf16.mxu0 0
        %525 = vmatpush1.bf16.msra.mxu0 0
        %526 = vmatprep.subr.bf16.mxu0 0
        %527 = vmatpush1.bf16.msra.mxu0 0
        %528 = vmatprep.subr.bf16.mxu0 0
        %529 = vmatpush1.bf16.msra.mxu0 0
        %530 = vmatprep.subr.bf16.mxu0 0
        %531 = vmatpush1.bf16.msra.mxu0 0
        %532 = vmatprep.subr.bf16.mxu0 0
        %533 = vmatpush1.bf16.msra.mxu0 0
        %534 = vmatprep.subr.bf16.mxu0 0
        %535 = vmatpush1.bf16.msra.mxu0 0
        %536 = vmatprep.subr.bf16.mxu0 0
        %537 = vmatpush1.bf16.msra.mxu0 0
        %538 = vmatprep.mubr.bf16.mxu0 0
        %539 = vmatmul.mubr.bf16.gmra.mrb[0].mxu0 %v400
        %v540 = vpop.f32.mrb[0].mxu0
        %v541 = vadd.f32 0.0, %v540
        %v542 = vpop.f32.mrb[0].mxu0
        %v543 = vpop.f32.mrb[0].mxu0
        %v544 = vpop.f32.mrb[0].mxu0
        %545 = vdwg.mxu0
        %v550 = vunpack.c.l.b16 %v366
        %v551 = vunpack.c.l.b16 %v367
        %v552 = vunpack.c.l.b16 %v368
        %v553 = vunpack.c.l.b16 %v369
        %v554 = vpack.c.b16 %v551, %v550
        %v555 = vpack.c.b16 %v553, %v552
        %558 = vmatprep.subr.bf16.mxu0 0
        %559 = vmatpush1.bf16.msra.mxu0 %v554
        %560 = vmatprep.subr.bf16.mxu0 0
        %561 = vmatpush1.bf16.msra.mxu0 %v555
        %562 = vmatprep.subr.bf16.mxu0 0
        %563 = vmatpush1.bf16.msra.mxu0 0
        %564 = vmatprep.subr.bf16.mxu0 0
        %565 = vmatpush1.bf16.msra.mxu0 0
        %566 = vmatprep.subr.bf16.mxu0 0
        %567 = vmatpush1.bf16.msra.mxu0 0
        %568 = vmatprep.subr.bf16.mxu0 0
        %569 = vmatpush1.bf16.msra.mxu0 0
        %570 = vmatprep.subr.bf16.mxu0 0
        %571 = vmatpush1.bf16.msra.mxu0 0
        %572 = vmatprep.subr.bf16.mxu0 0
        %573 = vmatpush1.bf16.msra.mxu0 0
        %574 = vmatprep.subr.bf16.mxu0 0
        %575 = vmatpush1.bf16.msra.mxu0 0
        %576 = vmatprep.subr.bf16.mxu0 0
        %577 = vmatpush1.bf16.msra.mxu0 0
        %578 = vmatprep.subr.bf16.mxu0 0
        %579 = vmatpush1.bf16.msra.mxu0 0
        %580 = vmatprep.subr.bf16.mxu0 0
        %581 = vmatpush1.bf16.msra.mxu0 0
        %582 = vmatprep.subr.bf16.mxu0 0
        %583 = vmatpush1.bf16.msra.mxu0 0
        %584 = vmatprep.subr.bf16.mxu0 0
        %585 = vmatpush1.bf16.msra.mxu0 0
        %586 = vmatprep.subr.bf16.mxu0 0
        %587 = vmatpush1.bf16.msra.mxu0 0
        %588 = vmatprep.subr.bf16.mxu0 0
        %589 = vmatpush1.bf16.msra.mxu0 0
        %590 = vmatprep.mubr.bf16.mxu0 0
        %591 = vmatmul.mubr.bf16.gmra.mrb[0].mxu0 %v400
        %v592 = vpop.f32.mrb[0].mxu0
        %v593 = vadd.f32 0.0, %v592
        %v594 = vpop.f32.mrb[0].mxu0
        %v595 = vpop.f32.mrb[0].mxu0
        %v596 = vpop.f32.mrb[0].mxu0
        %597 = vdwg.mxu0
        %v602 = vunpack.c.l.b16 %v370
        %v603 = vunpack.c.l.b16 %v371
        %v604 = vunpack.c.l.b16 %v372
        %v605 = vunpack.c.l.b16 %v373
        %v606 = vpack.c.b16 %v603, %v602
        %v607 = vpack.c.b16 %v605, %v604
        %610 = vmatprep.subr.bf16.mxu0 0
        %611 = vmatpush1.bf16.msra.mxu0 %v606
        %612 = vmatprep.subr.bf16.mxu0 0
        %613 = vmatpush1.bf16.msra.mxu0 %v607
        %614 = vmatprep.subr.bf16.mxu0 0
        %615 = vmatpush1.bf16.msra.mxu0 0
        %616 = vmatprep.subr.bf16.mxu0 0
        %617 = vmatpush1.bf16.msra.mxu0 0
        %618 = vmatprep.subr.bf16.mxu0 0
        %619 = vmatpush1.bf16.msra.mxu0 0
        %620 = vmatprep.subr.bf16.mxu0 0
        %621 = vmatpush1.bf16.msra.mxu0 0
        %622 = vmatprep.subr.bf16.mxu0 0
        %623 = vmatpush1.bf16.msra.mxu0 0
        %624 = vmatprep.subr.bf16.mxu0 0
        %625 = vmatpush1.bf16.msra.mxu0 0
        %626 = vmatprep.subr.bf16.mxu0 0
        %627 = vmatpush1.bf16.msra.mxu0 0
        %628 = vmatprep.subr.bf16.mxu0 0
        %629 = vmatpush1.bf16.msra.mxu0 0
        %630 = vmatprep.subr.bf16.mxu0 0
        %631 = vmatpush1.bf16.msra.mxu0 0
        %632 = vmatprep.subr.bf16.mxu0 0
        %633 = vmatpush1.bf16.msra.mxu0 0
        %634 = vmatprep.subr.bf16.mxu0 0
        %635 = vmatpush1.bf16.msra.mxu0 0
        %636 = vmatprep.subr.bf16.mxu0 0
        %637 = vmatpush1.bf16.msra.mxu0 0
        %638 = vmatprep.subr.bf16.mxu0 0
        %639 = vmatpush1.bf16.msra.mxu0 0
        %640 = vmatprep.subr.bf16.mxu0 0
        %641 = vmatpush1.bf16.msra.mxu0 0
        %642 = vmatprep.mubr.bf16.mxu0 0
        %643 = vmatmul.mubr.bf16.gmra.mrb[0].mxu0 %v400
        %v644 = vpop.f32.mrb[0].mxu0
        %v645 = vadd.f32 0.0, %v644
        %v646 = vpop.f32.mrb[0].mxu0
        %v647 = vpop.f32.mrb[0].mxu0
        %v648 = vpop.f32.mrb[0].mxu0
        %649 = vdwg.mxu0
        %v654 = vunpack.c.l.b16 %v374
        %v655 = vunpack.c.l.b16 %v375
        %v656 = vunpack.c.l.b16 %v376
        %v657 = vunpack.c.l.b16 %v377
        %v658 = vpack.c.b16 %v655, %v654
        %v659 = vpack.c.b16 %v657, %v656
        %662 = vmatprep.subr.bf16.mxu0 0
        %663 = vmatpush1.bf16.msra.mxu0 %v658
        %664 = vmatprep.subr.bf16.mxu0 0
        %665 = vmatpush1.bf16.msra.mxu0 %v659
        %666 = vmatprep.subr.bf16.mxu0 0
        %667 = vmatpush1.bf16.msra.mxu0 0
        %668 = vmatprep.subr.bf16.mxu0 0
        %669 = vmatpush1.bf16.msra.mxu0 0
        %670 = vmatprep.subr.bf16.mxu0 0
        %671 = vmatpush1.bf16.msra.mxu0 0
        %672 = vmatprep.subr.bf16.mxu0 0
        %673 = vmatpush1.bf16.msra.mxu0 0
        %674 = vmatprep.subr.bf16.mxu0 0
        %675 = vmatpush1.bf16.msra.mxu0 0
        %676 = vmatprep.subr.bf16.mxu0 0
        %677 = vmatpush1.bf16.msra.mxu0 0
        %678 = vmatprep.subr.bf16.mxu0 0
        %679 = vmatpush1.bf16.msra.mxu0 0
        %680 = vmatprep.subr.bf16.mxu0 0
        %681 = vmatpush1.bf16.msra.mxu0 0
        %682 = vmatprep.subr.bf16.mxu0 0
        %683 = vmatpush1.bf16.msra.mxu0 0
        %684 = vmatprep.subr.bf16.mxu0 0
        %685 = vmatpush1.bf16.msra.mxu0 0
        %686 = vmatprep.subr.bf16.mxu0 0
        %687 = vmatpush1.bf16.msra.mxu0 0
        %688 = vmatprep.subr.bf16.mxu0 0
        %689 = vmatpush1.bf16.msra.mxu0 0
        %690 = vmatprep.subr.bf16.mxu0 0
        %691 = vmatpush1.bf16.msra.mxu0 0
        %692 = vmatprep.subr.bf16.mxu0 0
        %693 = vmatpush1.bf16.msra.mxu0 0
        %694 = vmatprep.mubr.bf16.mxu0 0
        %695 = vmatmul.mubr.bf16.gmra.mrb[0].mxu0 %v400
        %v696 = vpop.f32.mrb[0].mxu0
        %v697 = vadd.f32 0.0, %v696
        %v698 = vpop.f32.mrb[0].mxu0
        %v699 = vpop.f32.mrb[0].mxu0
        %v700 = vpop.f32.mrb[0].mxu0
        %701 = vdwg.mxu0
        %v706 = vunpack.c.l.b16 %v378
        %v707 = vunpack.c.l.b16 %v379
        %v708 = vunpack.c.l.b16 %v380
        %v709 = vunpack.c.l.b16 %v381
        %v710 = vpack.c.b16 %v707, %v706
        %v711 = vpack.c.b16 %v709, %v708
        %714 = vmatprep.subr.bf16.mxu0 0
        %715 = vmatpush1.bf16.msra.mxu0 %v710
        %716 = vmatprep.subr.bf16.mxu0 0
        %717 = vmatpush1.bf16.msra.mxu0 %v711
        %718 = vmatprep.subr.bf16.mxu0 0
        %719 = vmatpush1.bf16.msra.mxu0 0
        %720 = vmatprep.subr.bf16.mxu0 0
        %721 = vmatpush1.bf16.msra.mxu0 0
        %722 = vmatprep.subr.bf16.mxu0 0
        %723 = vmatpush1.bf16.msra.mxu0 0
        %724 = vmatprep.subr.bf16.mxu0 0
        %725 = vmatpush1.bf16.msra.mxu0 0
        %726 = vmatprep.subr.bf16.mxu0 0
        %727 = vmatpush1.bf16.msra.mxu0 0
        %728 = vmatprep.subr.bf16.mxu0 0
        %729 = vmatpush1.bf16.msra.mxu0 0
        %730 = vmatprep.subr.bf16.mxu0 0
        %731 = vmatpush1.bf16.msra.mxu0 0
        %732 = vmatprep.subr.bf16.mxu0 0
        %733 = vmatpush1.bf16.msra.mxu0 0
        %734 = vmatprep.subr.bf16.mxu0 0
        %735 = vmatpush1.bf16.msra.mxu0 0
        %736 = vmatprep.subr.bf16.mxu0 0
        %737 = vmatpush1.bf16.msra.mxu0 0
        %738 = vmatprep.subr.bf16.mxu0 0
        %739 = vmatpush1.bf16.msra.mxu0 0
        %740 = vmatprep.subr.bf16.mxu0 0
        %741 = vmatpush1.bf16.msra.mxu0 0
        %742 = vmatprep.subr.bf16.mxu0 0
        %743 = vmatpush1.bf16.msra.mxu0 0
        %744 = vmatprep.subr.bf16.mxu0 0
        %745 = vmatpush1.bf16.msra.mxu0 0
        %746 = vmatprep.mubr.bf16.mxu0 0
        %747 = vmatmul.mubr.bf16.gmra.mrb[0].mxu0 %v400
        %v748 = vpop.f32.mrb[0].mxu0
        %v749 = vadd.f32 0.0, %v748
        %v750 = vpop.f32.mrb[0].mxu0
        %v751 = vpop.f32.mrb[0].mxu0
        %v752 = vpop.f32.mrb[0].mxu0
        %753 = vdwg.mxu0
        %v758 = vunpack.c.l.b16 %v382
        %v759 = vunpack.c.l.b16 %v383
        %v760 = vunpack.c.l.b16 %v384
        %v761 = vunpack.c.l.b16 %v385
        %v762 = vpack.c.b16 %v759, %v758
        %v763 = vpack.c.b16 %v761, %v760
        %766 = vmatprep.subr.bf16.mxu0 0
        %767 = vmatpush1.bf16.msra.mxu0 %v762
        %768 = vmatprep.subr.bf16.mxu0 0
        %769 = vmatpush1.bf16.msra.mxu0 %v763
        %770 = vmatprep.subr.bf16.mxu0 0
        %771 = vmatpush1.bf16.msra.mxu0 0
        %772 = vmatprep.subr.bf16.mxu0 0
        %773 = vmatpush1.bf16.msra.mxu0 0
        %774 = vmatprep.subr.bf16.mxu0 0
        %775 = vmatpush1.bf16.msra.mxu0 0
        %776 = vmatprep.subr.bf16.mxu0 0
        %777 = vmatpush1.bf16.msra.mxu0 0
        %778 = vmatprep.subr.bf16.mxu0 0
        %779 = vmatpush1.bf16.msra.mxu0 0
        %780 = vmatprep.subr.bf16.mxu0 0
        %781 = vmatpush1.bf16.msra.mxu0 0
        %782 = vmatprep.subr.bf16.mxu0 0
        %783 = vmatpush1.bf16.msra.mxu0 0
        %784 = vmatprep.subr.bf16.mxu0 0
        %785 = vmatpush1.bf16.msra.mxu0 0
        %786 = vmatprep.subr.bf16.mxu0 0
        %787 = vmatpush1.bf16.msra.mxu0 0
        %788 = vmatprep.subr.bf16.mxu0 0
        %789 = vmatpush1.bf16.msra.mxu0 0
        %790 = vmatprep.subr.bf16.mxu0 0
        %791 = vmatpush1.bf16.msra.mxu0 0
        %792 = vmatprep.subr.bf16.mxu0 0
        %793 = vmatpush1.bf16.msra.mxu0 0
        %794 = vmatprep.subr.bf16.mxu0 0
        %795 = vmatpush1.bf16.msra.mxu0 0
        %796 = vmatprep.subr.bf16.mxu0 0
        %797 = vmatpush1.bf16.msra.mxu0 0
        %798 = vmatprep.mubr.bf16.mxu0 0
        %799 = vmatmul.mubr.bf16.gmra.mrb[0].mxu0 %v400
        %v800 = vpop.f32.mrb[0].mxu0
        %v801 = vadd.f32 0.0, %v800
        %v802 = vpop.f32.mrb[0].mxu0
        %v803 = vpop.f32.mrb[0].mxu0
        %v804 = vpop.f32.mrb[0].mxu0
        %805 = vdwg.mxu0
        %v806 = vld [vmem:[#allocation7] sm:$0xf]
        %v807 = vld [vmem:[#allocation7 + $0x4] sm:$0xf]
        %v808 = vld [vmem:[#allocation7 + $0x8] sm:$0xf]
        %v809 = vld [vmem:[#allocation7 + $0xc] sm:$0xf]
        %v810 = vld [vmem:[#allocation7 + $0x10] sm:$0xf]
        %v811 = vld [vmem:[#allocation7 + $0x14] sm:$0xf]
        %v812 = vld [vmem:[#allocation7 + $0x18] sm:$0xf]
        %v813 = vld [vmem:[#allocation7 + $0x1c] sm:$0xf]
        %v814 = vld [vmem:[#allocation7 + $0x20] sm:$0xf]
        %v815 = vld [vmem:[#allocation7 + $0x24] sm:$0xf]
        %v816 = vld [vmem:[#allocation7 + $0x28] sm:$0xf]
        %v817 = vld [vmem:[#allocation7 + $0x2c] sm:$0xf]
        %v818 = vld [vmem:[#allocation7 + $0x30] sm:$0xf]
        %v819 = vld [vmem:[#allocation7 + $0x34] sm:$0xf]
        %v820 = vld [vmem:[#allocation7 + $0x38] sm:$0xf]
        %v821 = vld [vmem:[#allocation7 + $0x3c] sm:$0xf]
        %v822 = vld [vmem:[#allocation7 + $0x40] sm:$0xf]
        %v823 = vld [vmem:[#allocation7 + $0x44] sm:$0xf]
        %v824 = vld [vmem:[#allocation7 + $0x48] sm:$0xf]
        %v825 = vld [vmem:[#allocation7 + $0x4c] sm:$0xf]
        %v826 = vld [vmem:[#allocation7 + $0x50] sm:$0xf]
        %v827 = vld [vmem:[#allocation7 + $0x54] sm:$0xf]
        %v828 = vld [vmem:[#allocation7 + $0x58] sm:$0xf]
        %v829 = vld [vmem:[#allocation7 + $0x5c] sm:$0xf]
        %v830 = vld [vmem:[#allocation7 + $0x60] sm:$0xf]
        %v831 = vld [vmem:[#allocation7 + $0x64] sm:$0xf]
        %v832 = vld [vmem:[#allocation7 + $0x68] sm:$0xf]
        %v833 = vld [vmem:[#allocation7 + $0x6c] sm:$0xf]
        %v834 = vld [vmem:[#allocation7 + $0x70] sm:$0xf]
        %v835 = vld [vmem:[#allocation7 + $0x74] sm:$0xf]
        %v836 = vld [vmem:[#allocation7 + $0x78] sm:$0xf]
        %v837 = vld [vmem:[#allocation7 + $0x7c] sm:$0xf]
        %v842 = vunpack.c.l.b16 %v806
        %v843 = vunpack.c.l.b16 %v807
        %v844 = vunpack.c.l.b16 %v808
        %v845 = vunpack.c.l.b16 %v809
        %v846 = vpack.c.b16 %v843, %v842
        %v847 = vpack.c.b16 %v845, %v844
        %850 = vmatprep.subr.bf16.mxu0 0
        %851 = vmatpush1.bf16.msra.mxu0 %v846
        %852 = vmatprep.subr.bf16.mxu0 0
        %853 = vmatpush1.bf16.msra.mxu0 %v847
        %854 = vmatprep.subr.bf16.mxu0 0
        %855 = vmatpush1.bf16.msra.mxu0 0
        %856 = vmatprep.subr.bf16.mxu0 0
        %857 = vmatpush1.bf16.msra.mxu0 0
        %858 = vmatprep.subr.bf16.mxu0 0
        %859 = vmatpush1.bf16.msra.mxu0 0
        %860 = vmatprep.subr.bf16.mxu0 0
        %861 = vmatpush1.bf16.msra.mxu0 0
        %862 = vmatprep.subr.bf16.mxu0 0
        %863 = vmatpush1.bf16.msra.mxu0 0
        %864 = vmatprep.subr.bf16.mxu0 0
        %865 = vmatpush1.bf16.msra.mxu0 0
        %866 = vmatprep.subr.bf16.mxu0 0
        %867 = vmatpush1.bf16.msra.mxu0 0
        %868 = vmatprep.subr.bf16.mxu0 0
        %869 = vmatpush1.bf16.msra.mxu0 0
        %870 = vmatprep.subr.bf16.mxu0 0
        %871 = vmatpush1.bf16.msra.mxu0 0
        %872 = vmatprep.subr.bf16.mxu0 0
        %873 = vmatpush1.bf16.msra.mxu0 0
        %874 = vmatprep.subr.bf16.mxu0 0
        %875 = vmatpush1.bf16.msra.mxu0 0
        %876 = vmatprep.subr.bf16.mxu0 0
        %877 = vmatpush1.bf16.msra.mxu0 0
        %878 = vmatprep.subr.bf16.mxu0 0
        %879 = vmatpush1.bf16.msra.mxu0 0
        %880 = vmatprep.subr.bf16.mxu0 0
        %881 = vmatpush1.bf16.msra.mxu0 0
        %882 = vmatprep.mubr.bf16.mxu0 0
        %883 = vmatmul.mubr.bf16.gmra.mrb[0].mxu0 %v400
        %v884 = vpop.f32.mrb[0].mxu0
        %v885 = vadd.f32 0.0, %v884
        %v886 = vpop.f32.mrb[0].mxu0
        %v887 = vpop.f32.mrb[0].mxu0
        %v888 = vpop.f32.mrb[0].mxu0
        %889 = vdwg.mxu0
        %v894 = vunpack.c.l.b16 %v810
        %v895 = vunpack.c.l.b16 %v811
        %v896 = vunpack.c.l.b16 %v812
        %v897 = vunpack.c.l.b16 %v813
        %v898 = vpack.c.b16 %v895, %v894
        %v899 = vpack.c.b16 %v897, %v896
        %902 = vmatprep.subr.bf16.mxu0 0
        %903 = vmatpush1.bf16.msra.mxu0 %v898
        %904 = vmatprep.subr.bf16.mxu0 0
        %905 = vmatpush1.bf16.msra.mxu0 %v899
        %906 = vmatprep.subr.bf16.mxu0 0
        %907 = vmatpush1.bf16.msra.mxu0 0
        %908 = vmatprep.subr.bf16.mxu0 0
        %909 = vmatpush1.bf16.msra.mxu0 0
        %910 = vmatprep.subr.bf16.mxu0 0
        %911 = vmatpush1.bf16.msra.mxu0 0
        %912 = vmatprep.subr.bf16.mxu0 0
        %913 = vmatpush1.bf16.msra.mxu0 0
        %914 = vmatprep.subr.bf16.mxu0 0
        %915 = vmatpush1.bf16.msra.mxu0 0
        %916 = vmatprep.subr.bf16.mxu0 0
        %917 = vmatpush1.bf16.msra.mxu0 0
        %918 = vmatprep.subr.bf16.mxu0 0
        %919 = vmatpush1.bf16.msra.mxu0 0
        %920 = vmatprep.subr.bf16.mxu0 0
        %921 = vmatpush1.bf16.msra.mxu0 0
        %922 = vmatprep.subr.bf16.mxu0 0
        %923 = vmatpush1.bf16.msra.mxu0 0
        %924 = vmatprep.subr.bf16.mxu0 0
        %925 = vmatpush1.bf16.msra.mxu0 0
        %926 = vmatprep.subr.bf16.mxu0 0
        %927 = vmatpush1.bf16.msra.mxu0 0
        %928 = vmatprep.subr.bf16.mxu0 0
        %929 = vmatpush1.bf16.msra.mxu0 0
        %930 = vmatprep.subr.bf16.mxu0 0
        %931 = vmatpush1.bf16.msra.mxu0 0
        %932 = vmatprep.subr.bf16.mxu0 0
        %933 = vmatpush1.bf16.msra.mxu0 0
        %934 = vmatprep.mubr.bf16.mxu0 0
        %935 = vmatmul.mubr.bf16.gmra.mrb[0].mxu0 %v400
        %v936 = vpop.f32.mrb[0].mxu0
        %v937 = vadd.f32 0.0, %v936
        %v938 = vpop.f32.mrb[0].mxu0
        %v939 = vpop.f32.mrb[0].mxu0
        %v940 = vpop.f32.mrb[0].mxu0
        %941 = vdwg.mxu0
        %v946 = vunpack.c.l.b16 %v814
        %v947 = vunpack.c.l.b16 %v815
        %v948 = vunpack.c.l.b16 %v816
        %v949 = vunpack.c.l.b16 %v817
        %v950 = vpack.c.b16 %v947, %v946
        %v951 = vpack.c.b16 %v949, %v948
        %954 = vmatprep.subr.bf16.mxu0 0
        %955 = vmatpush1.bf16.msra.mxu0 %v950
        %956 = vmatprep.subr.bf16.mxu0 0
        %957 = vmatpush1.bf16.msra.mxu0 %v951
        %958 = vmatprep.subr.bf16.mxu0 0
        %959 = vmatpush1.bf16.msra.mxu0 0
        %960 = vmatprep.subr.bf16.mxu0 0
        %961 = vmatpush1.bf16.msra.mxu0 0
        %962 = vmatprep.subr.bf16.mxu0 0
        %963 = vmatpush1.bf16.msra.mxu0 0
        %964 = vmatprep.subr.bf16.mxu0 0
        %965 = vmatpush1.bf16.msra.mxu0 0
        %966 = vmatprep.subr.bf16.mxu0 0
        %967 = vmatpush1.bf16.msra.mxu0 0
        %968 = vmatprep.subr.bf16.mxu0 0
        %969 = vmatpush1.bf16.msra.mxu0 0
        %970 = vmatprep.subr.bf16.mxu0 0
        %971 = vmatpush1.bf16.msra.mxu0 0
        %972 = vmatprep.subr.bf16.mxu0 0
        %973 = vmatpush1.bf16.msra.mxu0 0
        %974 = vmatprep.subr.bf16.mxu0 0
        %975 = vmatpush1.bf16.msra.mxu0 0
        %976 = vmatprep.subr.bf16.mxu0 0
        %977 = vmatpush1.bf16.msra.mxu0 0
        %978 = vmatprep.subr.bf16.mxu0 0
        %979 = vmatpush1.bf16.msra.mxu0 0
        %980 = vmatprep.subr.bf16.mxu0 0
        %981 = vmatpush1.bf16.msra.mxu0 0
        %982 = vmatprep.subr.bf16.mxu0 0
        %983 = vmatpush1.bf16.msra.mxu0 0
        %984 = vmatprep.subr.bf16.mxu0 0
        %985 = vmatpush1.bf16.msra.mxu0 0
        %986 = vmatprep.mubr.bf16.mxu0 0
        %987 = vmatmul.mubr.bf16.gmra.mrb[0].mxu0 %v400
        %v988 = vpop.f32.mrb[0].mxu0
        %v989 = vadd.f32 0.0, %v988
        %v990 = vpop.f32.mrb[0].mxu0
        %v991 = vpop.f32.mrb[0].mxu0
        %v992 = vpop.f32.mrb[0].mxu0
        %993 = vdwg.mxu0
        %v998 = vunpack.c.l.b16 %v818
        %v999 = vunpack.c.l.b16 %v819
        %v1000 = vunpack.c.l.b16 %v820
        %v1001 = vunpack.c.l.b16 %v821
        %v1002 = vpack.c.b16 %v999, %v998
        %v1003 = vpack.c.b16 %v1001, %v1000
        %1006 = vmatprep.subr.bf16.mxu0 0
        %1007 = vmatpush1.bf16.msra.mxu0 %v1002
        %1008 = vmatprep.subr.bf16.mxu0 0
        %1009 = vmatpush1.bf16.msra.mxu0 %v1003
        %1010 = vmatprep.subr.bf16.mxu0 0
        %1011 = vmatpush1.bf16.msra.mxu0 0
        %1012 = vmatprep.subr.bf16.mxu0 0
        %1013 = vmatpush1.bf16.msra.mxu0 0
        %1014 = vmatprep.subr.bf16.mxu0 0
        %1015 = vmatpush1.bf16.msra.mxu0 0
        %1016 = vmatprep.subr.bf16.mxu0 0
        %1017 = vmatpush1.bf16.msra.mxu0 0
        %1018 = vmatprep.subr.bf16.mxu0 0
        %1019 = vmatpush1.bf16.msra.mxu0 0
        %1020 = vmatprep.subr.bf16.mxu0 0
        %1021 = vmatpush1.bf16.msra.mxu0 0
        %1022 = vmatprep.subr.bf16.mxu0 0
        %1023 = vmatpush1.bf16.msra.mxu0 0
        %1024 = vmatprep.subr.bf16.mxu0 0
        %1025 = vmatpush1.bf16.msra.mxu0 0
        %1026 = vmatprep.subr.bf16.mxu0 0
        %1027 = vmatpush1.bf16.msra.mxu0 0
        %1028 = vmatprep.subr.bf16.mxu0 0
        %1029 = vmatpush1.bf16.msra.mxu0 0
        %1030 = vmatprep.subr.bf16.mxu0 0
        %1031 = vmatpush1.bf16.msra.mxu0 0
        %1032 = vmatprep.subr.bf16.mxu0 0
        %1033 = vmatpush1.bf16.msra.mxu0 0
        %1034 = vmatprep.subr.bf16.mxu0 0
        %1035 = vmatpush1.bf16.msra.mxu0 0
        %1036 = vmatprep.subr.bf16.mxu0 0
        %1037 = vmatpush1.bf16.msra.mxu0 0
        %1038 = vmatprep.mubr.bf16.mxu0 0
        %1039 = vmatmul.mubr.bf16.gmra.mrb[0].mxu0 %v400
        %v1040 = vpop.f32.mrb[0].mxu0
        %v1041 = vadd.f32 0.0, %v1040
        %v1042 = vpop.f32.mrb[0].mxu0
        %v1043 = vpop.f32.mrb[0].mxu0
        %v1044 = vpop.f32.mrb[0].mxu0
        %1045 = vdwg.mxu0
        %v1050 = vunpack.c.l.b16 %v822
        %v1051 = vunpack.c.l.b16 %v823
        %v1052 = vunpack.c.l.b16 %v824
        %v1053 = vunpack.c.l.b16 %v825
        %v1054 = vpack.c.b16 %v1051, %v1050
        %v1055 = vpack.c.b16 %v1053, %v1052
        %1058 = vmatprep.subr.bf16.mxu0 0
        %1059 = vmatpush1.bf16.msra.mxu0 %v1054
        %1060 = vmatprep.subr.bf16.mxu0 0
        %1061 = vmatpush1.bf16.msra.mxu0 %v1055
        %1062 = vmatprep.subr.bf16.mxu0 0
        %1063 = vmatpush1.bf16.msra.mxu0 0
        %1064 = vmatprep.subr.bf16.mxu0 0
        %1065 = vmatpush1.bf16.msra.mxu0 0
        %1066 = vmatprep.subr.bf16.mxu0 0
        %1067 = vmatpush1.bf16.msra.mxu0 0
        %1068 = vmatprep.subr.bf16.mxu0 0
        %1069 = vmatpush1.bf16.msra.mxu0 0
        %1070 = vmatprep.subr.bf16.mxu0 0
        %1071 = vmatpush1.bf16.msra.mxu0 0
        %1072 = vmatprep.subr.bf16.mxu0 0
        %1073 = vmatpush1.bf16.msra.mxu0 0
        %1074 = vmatprep.subr.bf16.mxu0 0
        %1075 = vmatpush1.bf16.msra.mxu0 0
        %1076 = vmatprep.subr.bf16.mxu0 0
        %1077 = vmatpush1.bf16.msra.mxu0 0
        %1078 = vmatprep.subr.bf16.mxu0 0
        %1079 = vmatpush1.bf16.msra.mxu0 0
        %1080 = vmatprep.subr.bf16.mxu0 0
        %1081 = vmatpush1.bf16.msra.mxu0 0
        %1082 = vmatprep.subr.bf16.mxu0 0
        %1083 = vmatpush1.bf16.msra.mxu0 0
        %1084 = vmatprep.subr.bf16.mxu0 0
        %1085 = vmatpush1.bf16.msra.mxu0 0
        %1086 = vmatprep.subr.bf16.mxu0 0
        %1087 = vmatpush1.bf16.msra.mxu0 0
        %1088 = vmatprep.subr.bf16.mxu0 0
        %1089 = vmatpush1.bf16.msra.mxu0 0
        %1090 = vmatprep.mubr.bf16.mxu0 0
        %1091 = vmatmul.mubr.bf16.gmra.mrb[0].mxu0 %v400
        %v1092 = vpop.f32.mrb[0].mxu0
        %v1093 = vadd.f32 0.0, %v1092
        %v1094 = vpop.f32.mrb[0].mxu0
        %v1095 = vpop.f32.mrb[0].mxu0
        %v1096 = vpop.f32.mrb[0].mxu0
        %1097 = vdwg.mxu0
        %v1102 = vunpack.c.l.b16 %v826
        %v1103 = vunpack.c.l.b16 %v827
        %v1104 = vunpack.c.l.b16 %v828
        %v1105 = vunpack.c.l.b16 %v829
        %v1106 = vpack.c.b16 %v1103, %v1102
        %v1107 = vpack.c.b16 %v1105, %v1104
        %1110 = vmatprep.subr.bf16.mxu0 0
        %1111 = vmatpush1.bf16.msra.mxu0 %v1106
        %1112 = vmatprep.subr.bf16.mxu0 0
        %1113 = vmatpush1.bf16.msra.mxu0 %v1107
        %1114 = vmatprep.subr.bf16.mxu0 0
        %1115 = vmatpush1.bf16.msra.mxu0 0
        %1116 = vmatprep.subr.bf16.mxu0 0
        %1117 = vmatpush1.bf16.msra.mxu0 0
        %1118 = vmatprep.subr.bf16.mxu0 0
        %1119 = vmatpush1.bf16.msra.mxu0 0
        %1120 = vmatprep.subr.bf16.mxu0 0
        %1121 = vmatpush1.bf16.msra.mxu0 0
        %1122 = vmatprep.subr.bf16.mxu0 0
        %1123 = vmatpush1.bf16.msra.mxu0 0
        %1124 = vmatprep.subr.bf16.mxu0 0
        %1125 = vmatpush1.bf16.msra.mxu0 0
        %1126 = vmatprep.subr.bf16.mxu0 0
        %1127 = vmatpush1.bf16.msra.mxu0 0
        %1128 = vmatprep.subr.bf16.mxu0 0
        %1129 = vmatpush1.bf16.msra.mxu0 0
        %1130 = vmatprep.subr.bf16.mxu0 0
        %1131 = vmatpush1.bf16.msra.mxu0 0
        %1132 = vmatprep.subr.bf16.mxu0 0
        %1133 = vmatpush1.bf16.msra.mxu0 0
        %1134 = vmatprep.subr.bf16.mxu0 0
        %1135 = vmatpush1.bf16.msra.mxu0 0
        %1136 = vmatprep.subr.bf16.mxu0 0
        %1137 = vmatpush1.bf16.msra.mxu0 0
        %1138 = vmatprep.subr.bf16.mxu0 0
        %1139 = vmatpush1.bf16.msra.mxu0 0
        %1140 = vmatprep.subr.bf16.mxu0 0
        %1141 = vmatpush1.bf16.msra.mxu0 0
        %1142 = vmatprep.mubr.bf16.mxu0 0
        %1143 = vmatmul.mubr.bf16.gmra.mrb[0].mxu0 %v400
        %v1144 = vpop.f32.mrb[0].mxu0
        %v1145 = vadd.f32 0.0, %v1144
        %v1146 = vpop.f32.mrb[0].mxu0
        %v1147 = vpop.f32.mrb[0].mxu0
        %v1148 = vpop.f32.mrb[0].mxu0
        %1149 = vdwg.mxu0
        %v1154 = vunpack.c.l.b16 %v830
        %v1155 = vunpack.c.l.b16 %v831
        %v1156 = vunpack.c.l.b16 %v832
        %v1157 = vunpack.c.l.b16 %v833
        %v1158 = vpack.c.b16 %v1155, %v1154
        %v1159 = vpack.c.b16 %v1157, %v1156
        %1162 = vmatprep.subr.bf16.mxu0 0
        %1163 = vmatpush1.bf16.msra.mxu0 %v1158
        %1164 = vmatprep.subr.bf16.mxu0 0
        %1165 = vmatpush1.bf16.msra.mxu0 %v1159
        %1166 = vmatprep.subr.bf16.mxu0 0
        %1167 = vmatpush1.bf16.msra.mxu0 0
        %1168 = vmatprep.subr.bf16.mxu0 0
        %1169 = vmatpush1.bf16.msra.mxu0 0
        %1170 = vmatprep.subr.bf16.mxu0 0
        %1171 = vmatpush1.bf16.msra.mxu0 0
        %1172 = vmatprep.subr.bf16.mxu0 0
        %1173 = vmatpush1.bf16.msra.mxu0 0
        %1174 = vmatprep.subr.bf16.mxu0 0
        %1175 = vmatpush1.bf16.msra.mxu0 0
        %1176 = vmatprep.subr.bf16.mxu0 0
        %1177 = vmatpush1.bf16.msra.mxu0 0
        %1178 = vmatprep.subr.bf16.mxu0 0
        %1179 = vmatpush1.bf16.msra.mxu0 0
        %1180 = vmatprep.subr.bf16.mxu0 0
        %1181 = vmatpush1.bf16.msra.mxu0 0
        %1182 = vmatprep.subr.bf16.mxu0 0
        %1183 = vmatpush1.bf16.msra.mxu0 0
        %1184 = vmatprep.subr.bf16.mxu0 0
        %1185 = vmatpush1.bf16.msra.mxu0 0
        %1186 = vmatprep.subr.bf16.mxu0 0
        %1187 = vmatpush1.bf16.msra.mxu0 0
        %1188 = vmatprep.subr.bf16.mxu0 0
        %1189 = vmatpush1.bf16.msra.mxu0 0
        %1190 = vmatprep.subr.bf16.mxu0 0
        %1191 = vmatpush1.bf16.msra.mxu0 0
        %1192 = vmatprep.subr.bf16.mxu0 0
        %1193 = vmatpush1.bf16.msra.mxu0 0
        %1194 = vmatprep.mubr.bf16.mxu0 0
        %1195 = vmatmul.mubr.bf16.gmra.mrb[0].mxu0 %v400
        %v1196 = vpop.f32.mrb[0].mxu0
        %v1197 = vadd.f32 0.0, %v1196
        %v1198 = vpop.f32.mrb[0].mxu0
        %v1199 = vpop.f32.mrb[0].mxu0
        %v1200 = vpop.f32.mrb[0].mxu0
        %1201 = vdwg.mxu0
        %v1206 = vunpack.c.l.b16 %v834
        %v1207 = vunpack.c.l.b16 %v835
        %v1208 = vunpack.c.l.b16 %v836
        %v1209 = vunpack.c.l.b16 %v837
        %v1210 = vpack.c.b16 %v1207, %v1206
        %v1211 = vpack.c.b16 %v1209, %v1208
        %1214 = vmatprep.subr.bf16.mxu0 0
        %1215 = vmatpush1.bf16.msra.mxu0 %v1210
        %1216 = vmatprep.subr.bf16.mxu0 0
        %1217 = vmatpush1.bf16.msra.mxu0 %v1211
        %1218 = vmatprep.subr.bf16.mxu0 0
        %1219 = vmatpush1.bf16.msra.mxu0 0
        %1220 = vmatprep.subr.bf16.mxu0 0
        %1221 = vmatpush1.bf16.msra.mxu0 0
        %1222 = vmatprep.subr.bf16.mxu0 0
        %1223 = vmatpush1.bf16.msra.mxu0 0
        %1224 = vmatprep.subr.bf16.mxu0 0
        %1225 = vmatpush1.bf16.msra.mxu0 0
        %1226 = vmatprep.subr.bf16.mxu0 0
        %1227 = vmatpush1.bf16.msra.mxu0 0
        %1228 = vmatprep.subr.bf16.mxu0 0
        %1229 = vmatpush1.bf16.msra.mxu0 0
        %1230 = vmatprep.subr.bf16.mxu0 0
        %1231 = vmatpush1.bf16.msra.mxu0 0
        %1232 = vmatprep.subr.bf16.mxu0 0
        %1233 = vmatpush1.bf16.msra.mxu0 0
        %1234 = vmatprep.subr.bf16.mxu0 0
        %1235 = vmatpush1.bf16.msra.mxu0 0
        %1236 = vmatprep.subr.bf16.mxu0 0
        %1237 = vmatpush1.bf16.msra.mxu0 0
        %1238 = vmatprep.subr.bf16.mxu0 0
        %1239 = vmatpush1.bf16.msra.mxu0 0
        %1240 = vmatprep.subr.bf16.mxu0 0
        %1241 = vmatpush1.bf16.msra.mxu0 0
        %1242 = vmatprep.subr.bf16.mxu0 0
        %1243 = vmatpush1.bf16.msra.mxu0 0
        %1244 = vmatprep.subr.bf16.mxu0 0
        %1245 = vmatpush1.bf16.msra.mxu0 0
        %1246 = vmatprep.mubr.bf16.mxu0 0
        %1247 = vmatmul.mubr.bf16.gmra.mrb[0].mxu0 %v400
        %v1248 = vpop.f32.mrb[0].mxu0
        %v1249 = vadd.f32 0.0, %v1248
        %v1250 = vpop.f32.mrb[0].mxu0
        %v1251 = vpop.f32.mrb[0].mxu0
        %v1252 = vpop.f32.mrb[0].mxu0
        %1253 = vdwg.mxu0
        %v1254 = vld [vmem:[#allocation8] sm:$0xf]
        %v1255 = vld [vmem:[#allocation8 + $0x4] sm:$0xf]
        %v1256 = vld [vmem:[#allocation8 + $0x8] sm:$0xf]
        %v1257 = vld [vmem:[#allocation8 + $0xc] sm:$0xf]
        %v1258 = vld [vmem:[#allocation8 + $0x10] sm:$0xf]
        %v1259 = vld [vmem:[#allocation8 + $0x14] sm:$0xf]
        %v1260 = vld [vmem:[#allocation8 + $0x18] sm:$0xf]
        %v1261 = vld [vmem:[#allocation8 + $0x1c] sm:$0xf]
        %v1262 = vld [vmem:[#allocation8 + $0x20] sm:$0xf]
        %v1263 = vld [vmem:[#allocation8 + $0x24] sm:$0xf]
        %v1264 = vld [vmem:[#allocation8 + $0x28] sm:$0xf]
        %v1265 = vld [vmem:[#allocation8 + $0x2c] sm:$0xf]
        %v1266 = vld [vmem:[#allocation8 + $0x30] sm:$0xf]
        %v1267 = vld [vmem:[#allocation8 + $0x34] sm:$0xf]
        %v1268 = vld [vmem:[#allocation8 + $0x38] sm:$0xf]
        %v1269 = vld [vmem:[#allocation8 + $0x3c] sm:$0xf]
        %v1270 = vld [vmem:[#allocation8 + $0x40] sm:$0xf]
        %v1271 = vld [vmem:[#allocation8 + $0x44] sm:$0xf]
        %v1272 = vld [vmem:[#allocation8 + $0x48] sm:$0xf]
        %v1273 = vld [vmem:[#allocation8 + $0x4c] sm:$0xf]
        %v1274 = vld [vmem:[#allocation8 + $0x50] sm:$0xf]
        %v1275 = vld [vmem:[#allocation8 + $0x54] sm:$0xf]
        %v1276 = vld [vmem:[#allocation8 + $0x58] sm:$0xf]
        %v1277 = vld [vmem:[#allocation8 + $0x5c] sm:$0xf]
        %v1278 = vld [vmem:[#allocation8 + $0x60] sm:$0xf]
        %v1279 = vld [vmem:[#allocation8 + $0x64] sm:$0xf]
        %v1280 = vld [vmem:[#allocation8 + $0x68] sm:$0xf]
        %v1281 = vld [vmem:[#allocation8 + $0x6c] sm:$0xf]
        %v1282 = vld [vmem:[#allocation8 + $0x70] sm:$0xf]
        %v1283 = vld [vmem:[#allocation8 + $0x74] sm:$0xf]
        %v1284 = vld [vmem:[#allocation8 + $0x78] sm:$0xf]
        %v1285 = vld [vmem:[#allocation8 + $0x7c] sm:$0xf]
        %v1290 = vunpack.c.l.b16 %v1254
        %v1291 = vunpack.c.l.b16 %v1255
        %v1292 = vunpack.c.l.b16 %v1256
        %v1293 = vunpack.c.l.b16 %v1257
        %v1294 = vpack.c.b16 %v1291, %v1290
        %v1295 = vpack.c.b16 %v1293, %v1292
        %1298 = vmatprep.subr.bf16.mxu0 0
        %1299 = vmatpush1.bf16.msra.mxu0 %v1294
        %1300 = vmatprep.subr.bf16.mxu0 0
        %1301 = vmatpush1.bf16.msra.mxu0 %v1295
        %1302 = vmatprep.subr.bf16.mxu0 0
        %1303 = vmatpush1.bf16.msra.mxu0 0
        %1304 = vmatprep.subr.bf16.mxu0 0
        %1305 = vmatpush1.bf16.msra.mxu0 0
        %1306 = vmatprep.subr.bf16.mxu0 0
        %1307 = vmatpush1.bf16.msra.mxu0 0
        %1308 = vmatprep.subr.bf16.mxu0 0
        %1309 = vmatpush1.bf16.msra.mxu0 0
        %1310 = vmatprep.subr.bf16.mxu0 0
        %1311 = vmatpush1.bf16.msra.mxu0 0
        %1312 = vmatprep.subr.bf16.mxu0 0
        %1313 = vmatpush1.bf16.msra.mxu0 0
        %1314 = vmatprep.subr.bf16.mxu0 0
        %1315 = vmatpush1.bf16.msra.mxu0 0
        %1316 = vmatprep.subr.bf16.mxu0 0
        %1317 = vmatpush1.bf16.msra.mxu0 0
        %1318 = vmatprep.subr.bf16.mxu0 0
        %1319 = vmatpush1.bf16.msra.mxu0 0
        %1320 = vmatprep.subr.bf16.mxu0 0
        %1321 = vmatpush1.bf16.msra.mxu0 0
        %1322 = vmatprep.subr.bf16.mxu0 0
        %1323 = vmatpush1.bf16.msra.mxu0 0
        %1324 = vmatprep.subr.bf16.mxu0 0
        %1325 = vmatpush1.bf16.msra.mxu0 0
        %1326 = vmatprep.subr.bf16.mxu0 0
        %1327 = vmatpush1.bf16.msra.mxu0 0
        %1328 = vmatprep.subr.bf16.mxu0 0
        %1329 = vmatpush1.bf16.msra.mxu0 0
        %1330 = vmatprep.mubr.bf16.mxu0 0
        %1331 = vmatmul.mubr.bf16.gmra.mrb[0].mxu0 %v400
        %v1332 = vpop.f32.mrb[0].mxu0
        %v1333 = vadd.f32 0.0, %v1332
        %v1334 = vpop.f32.mrb[0].mxu0
        %v1335 = vpop.f32.mrb[0].mxu0
        %v1336 = vpop.f32.mrb[0].mxu0
        %1337 = vdwg.mxu0
        %v1342 = vunpack.c.l.b16 %v1258
        %v1343 = vunpack.c.l.b16 %v1259
        %v1344 = vunpack.c.l.b16 %v1260
        %v1345 = vunpack.c.l.b16 %v1261
        %v1346 = vpack.c.b16 %v1343, %v1342
        %v1347 = vpack.c.b16 %v1345, %v1344
        %1350 = vmatprep.subr.bf16.mxu0 0
        %1351 = vmatpush1.bf16.msra.mxu0 %v1346
        %1352 = vmatprep.subr.bf16.mxu0 0
        %1353 = vmatpush1.bf16.msra.mxu0 %v1347
        %1354 = vmatprep.subr.bf16.mxu0 0
        %1355 = vmatpush1.bf16.msra.mxu0 0
        %1356 = vmatprep.subr.bf16.mxu0 0
        %1357 = vmatpush1.bf16.msra.mxu0 0
        %1358 = vmatprep.subr.bf16.mxu0 0
        %1359 = vmatpush1.bf16.msra.mxu0 0
        %1360 = vmatprep.subr.bf16.mxu0 0
        %1361 = vmatpush1.bf16.msra.mxu0 0
        %1362 = vmatprep.subr.bf16.mxu0 0
        %1363 = vmatpush1.bf16.msra.mxu0 0
        %1364 = vmatprep.subr.bf16.mxu0 0
        %1365 = vmatpush1.bf16.msra.mxu0 0
        %1366 = vmatprep.subr.bf16.mxu0 0
        %1367 = vmatpush1.bf16.msra.mxu0 0
        %1368 = vmatprep.subr.bf16.mxu0 0
        %1369 = vmatpush1.bf16.msra.mxu0 0
        %1370 = vmatprep.subr.bf16.mxu0 0
        %1371 = vmatpush1.bf16.msra.mxu0 0
        %1372 = vmatprep.subr.bf16.mxu0 0
        %1373 = vmatpush1.bf16.msra.mxu0 0
        %1374 = vmatprep.subr.bf16.mxu0 0
        %1375 = vmatpush1.bf16.msra.mxu0 0
        %1376 = vmatprep.subr.bf16.mxu0 0
        %1377 = vmatpush1.bf16.msra.mxu0 0
        %1378 = vmatprep.subr.bf16.mxu0 0
        %1379 = vmatpush1.bf16.msra.mxu0 0
        %1380 = vmatprep.subr.bf16.mxu0 0
        %1381 = vmatpush1.bf16.msra.mxu0 0
        %1382 = vmatprep.mubr.bf16.mxu0 0
        %1383 = vmatmul.mubr.bf16.gmra.mrb[0].mxu0 %v400
        %v1384 = vpop.f32.mrb[0].mxu0
        %v1385 = vadd.f32 0.0, %v1384
        %v1386 = vpop.f32.mrb[0].mxu0
        %v1387 = vpop.f32.mrb[0].mxu0
        %v1388 = vpop.f32.mrb[0].mxu0
        %1389 = vdwg.mxu0
        %v1394 = vunpack.c.l.b16 %v1262
        %v1395 = vunpack.c.l.b16 %v1263
        %v1396 = vunpack.c.l.b16 %v1264
        %v1397 = vunpack.c.l.b16 %v1265
        %v1398 = vpack.c.b16 %v1395, %v1394
        %v1399 = vpack.c.b16 %v1397, %v1396
        %1402 = vmatprep.subr.bf16.mxu0 0
        %1403 = vmatpush1.bf16.msra.mxu0 %v1398
        %1404 = vmatprep.subr.bf16.mxu0 0
        %1405 = vmatpush1.bf16.msra.mxu0 %v1399
        %1406 = vmatprep.subr.bf16.mxu0 0
        %1407 = vmatpush1.bf16.msra.mxu0 0
        %1408 = vmatprep.subr.bf16.mxu0 0
        %1409 = vmatpush1.bf16.msra.mxu0 0
        %1410 = vmatprep.subr.bf16.mxu0 0
        %1411 = vmatpush1.bf16.msra.mxu0 0
        %1412 = vmatprep.subr.bf16.mxu0 0
        %1413 = vmatpush1.bf16.msra.mxu0 0
        %1414 = vmatprep.subr.bf16.mxu0 0
        %1415 = vmatpush1.bf16.msra.mxu0 0
        %1416 = vmatprep.subr.bf16.mxu0 0
        %1417 = vmatpush1.bf16.msra.mxu0 0
        %1418 = vmatprep.subr.bf16.mxu0 0
        %1419 = vmatpush1.bf16.msra.mxu0 0
        %1420 = vmatprep.subr.bf16.mxu0 0
        %1421 = vmatpush1.bf16.msra.mxu0 0
        %1422 = vmatprep.subr.bf16.mxu0 0
        %1423 = vmatpush1.bf16.msra.mxu0 0
        %1424 = vmatprep.subr.bf16.mxu0 0
        %1425 = vmatpush1.bf16.msra.mxu0 0
        %1426 = vmatprep.subr.bf16.mxu0 0
        %1427 = vmatpush1.bf16.msra.mxu0 0
        %1428 = vmatprep.subr.bf16.mxu0 0
        %1429 = vmatpush1.bf16.msra.mxu0 0
        %1430 = vmatprep.subr.bf16.mxu0 0
        %1431 = vmatpush1.bf16.msra.mxu0 0
        %1432 = vmatprep.subr.bf16.mxu0 0
        %1433 = vmatpush1.bf16.msra.mxu0 0
        %1434 = vmatprep.mubr.bf16.mxu0 0
        %1435 = vmatmul.mubr.bf16.gmra.mrb[0].mxu0 %v400
        %v1436 = vpop.f32.mrb[0].mxu0
        %v1437 = vadd.f32 0.0, %v1436
        %v1438 = vpop.f32.mrb[0].mxu0
        %v1439 = vpop.f32.mrb[0].mxu0
        %v1440 = vpop.f32.mrb[0].mxu0
        %1441 = vdwg.mxu0
        %v1446 = vunpack.c.l.b16 %v1266
        %v1447 = vunpack.c.l.b16 %v1267
        %v1448 = vunpack.c.l.b16 %v1268
        %v1449 = vunpack.c.l.b16 %v1269
        %v1450 = vpack.c.b16 %v1447, %v1446
        %v1451 = vpack.c.b16 %v1449, %v1448
        %1454 = vmatprep.subr.bf16.mxu0 0
        %1455 = vmatpush1.bf16.msra.mxu0 %v1450
        %1456 = vmatprep.subr.bf16.mxu0 0
        %1457 = vmatpush1.bf16.msra.mxu0 %v1451
        %1458 = vmatprep.subr.bf16.mxu0 0
        %1459 = vmatpush1.bf16.msra.mxu0 0
        %1460 = vmatprep.subr.bf16.mxu0 0
        %1461 = vmatpush1.bf16.msra.mxu0 0
        %1462 = vmatprep.subr.bf16.mxu0 0
        %1463 = vmatpush1.bf16.msra.mxu0 0
        %1464 = vmatprep.subr.bf16.mxu0 0
        %1465 = vmatpush1.bf16.msra.mxu0 0
        %1466 = vmatprep.subr.bf16.mxu0 0
        %1467 = vmatpush1.bf16.msra.mxu0 0
        %1468 = vmatprep.subr.bf16.mxu0 0
        %1469 = vmatpush1.bf16.msra.mxu0 0
        %1470 = vmatprep.subr.bf16.mxu0 0
        %1471 = vmatpush1.bf16.msra.mxu0 0
        %1472 = vmatprep.subr.bf16.mxu0 0
        %1473 = vmatpush1.bf16.msra.mxu0 0
        %1474 = vmatprep.subr.bf16.mxu0 0
        %1475 = vmatpush1.bf16.msra.mxu0 0
        %1476 = vmatprep.subr.bf16.mxu0 0
        %1477 = vmatpush1.bf16.msra.mxu0 0
        %1478 = vmatprep.subr.bf16.mxu0 0
        %1479 = vmatpush1.bf16.msra.mxu0 0
        %1480 = vmatprep.subr.bf16.mxu0 0
        %1481 = vmatpush1.bf16.msra.mxu0 0
        %1482 = vmatprep.subr.bf16.mxu0 0
        %1483 = vmatpush1.bf16.msra.mxu0 0
        %1484 = vmatprep.subr.bf16.mxu0 0
        %1485 = vmatpush1.bf16.msra.mxu0 0
        %1486 = vmatprep.mubr.bf16.mxu0 0
        %1487 = vmatmul.mubr.bf16.gmra.mrb[0].mxu0 %v400
        %v1488 = vpop.f32.mrb[0].mxu0
        %v1489 = vadd.f32 0.0, %v1488
        %v1490 = vpop.f32.mrb[0].mxu0
        %v1491 = vpop.f32.mrb[0].mxu0
        %v1492 = vpop.f32.mrb[0].mxu0
        %1493 = vdwg.mxu0
        %v1498 = vunpack.c.l.b16 %v1270
        %v1499 = vunpack.c.l.b16 %v1271
        %v1500 = vunpack.c.l.b16 %v1272
        %v1501 = vunpack.c.l.b16 %v1273
        %v1502 = vpack.c.b16 %v1499, %v1498
        %v1503 = vpack.c.b16 %v1501, %v1500
        %1506 = vmatprep.subr.bf16.mxu0 0
        %1507 = vmatpush1.bf16.msra.mxu0 %v1502
        %1508 = vmatprep.subr.bf16.mxu0 0
        %1509 = vmatpush1.bf16.msra.mxu0 %v1503
        %1510 = vmatprep.subr.bf16.mxu0 0
        %1511 = vmatpush1.bf16.msra.mxu0 0
        %1512 = vmatprep.subr.bf16.mxu0 0
        %1513 = vmatpush1.bf16.msra.mxu0 0
        %1514 = vmatprep.subr.bf16.mxu0 0
        %1515 = vmatpush1.bf16.msra.mxu0 0
        %1516 = vmatprep.subr.bf16.mxu0 0
        %1517 = vmatpush1.bf16.msra.mxu0 0
        %1518 = vmatprep.subr.bf16.mxu0 0
        %1519 = vmatpush1.bf16.msra.mxu0 0
        %1520 = vmatprep.subr.bf16.mxu0 0
        %1521 = vmatpush1.bf16.msra.mxu0 0
        %1522 = vmatprep.subr.bf16.mxu0 0
        %1523 = vmatpush1.bf16.msra.mxu0 0
        %1524 = vmatprep.subr.bf16.mxu0 0
        %1525 = vmatpush1.bf16.msra.mxu0 0
        %1526 = vmatprep.subr.bf16.mxu0 0
        %1527 = vmatpush1.bf16.msra.mxu0 0
        %1528 = vmatprep.subr.bf16.mxu0 0
        %1529 = vmatpush1.bf16.msra.mxu0 0
        %1530 = vmatprep.subr.bf16.mxu0 0
        %1531 = vmatpush1.bf16.msra.mxu0 0
        %1532 = vmatprep.subr.bf16.mxu0 0
        %1533 = vmatpush1.bf16.msra.mxu0 0
        %1534 = vmatprep.subr.bf16.mxu0 0
        %1535 = vmatpush1.bf16.msra.mxu0 0
        %1536 = vmatprep.subr.bf16.mxu0 0
        %1537 = vmatpush1.bf16.msra.mxu0 0
        %1538 = vmatprep.mubr.bf16.mxu0 0
        %1539 = vmatmul.mubr.bf16.gmra.mrb[0].mxu0 %v400
        %v1540 = vpop.f32.mrb[0].mxu0
        %v1541 = vadd.f32 0.0, %v1540
        %v1542 = vpop.f32.mrb[0].mxu0
        %v1543 = vpop.f32.mrb[0].mxu0
        %v1544 = vpop.f32.mrb[0].mxu0
        %1545 = vdwg.mxu0
        %v1550 = vunpack.c.l.b16 %v1274
        %v1551 = vunpack.c.l.b16 %v1275
        %v1552 = vunpack.c.l.b16 %v1276
        %v1553 = vunpack.c.l.b16 %v1277
        %v1554 = vpack.c.b16 %v1551, %v1550
        %v1555 = vpack.c.b16 %v1553, %v1552
        %1558 = vmatprep.subr.bf16.mxu0 0
        %1559 = vmatpush1.bf16.msra.mxu0 %v1554
        %1560 = vmatprep.subr.bf16.mxu0 0
        %1561 = vmatpush1.bf16.msra.mxu0 %v1555
        %1562 = vmatprep.subr.bf16.mxu0 0
        %1563 = vmatpush1.bf16.msra.mxu0 0
        %1564 = vmatprep.subr.bf16.mxu0 0
        %1565 = vmatpush1.bf16.msra.mxu0 0
        %1566 = vmatprep.subr.bf16.mxu0 0
        %1567 = vmatpush1.bf16.msra.mxu0 0
        %1568 = vmatprep.subr.bf16.mxu0 0
        %1569 = vmatpush1.bf16.msra.mxu0 0
        %1570 = vmatprep.subr.bf16.mxu0 0
        %1571 = vmatpush1.bf16.msra.mxu0 0
        %1572 = vmatprep.subr.bf16.mxu0 0
        %1573 = vmatpush1.bf16.msra.mxu0 0
        %1574 = vmatprep.subr.bf16.mxu0 0
        %1575 = vmatpush1.bf16.msra.mxu0 0
        %1576 = vmatprep.subr.bf16.mxu0 0
        %1577 = vmatpush1.bf16.msra.mxu0 0
        %1578 = vmatprep.subr.bf16.mxu0 0
        %1579 = vmatpush1.bf16.msra.mxu0 0
        %1580 = vmatprep.subr.bf16.mxu0 0
        %1581 = vmatpush1.bf16.msra.mxu0 0
        %1582 = vmatprep.subr.bf16.mxu0 0
        %1583 = vmatpush1.bf16.msra.mxu0 0
        %1584 = vmatprep.subr.bf16.mxu0 0
        %1585 = vmatpush1.bf16.msra.mxu0 0
        %1586 = vmatprep.subr.bf16.mxu0 0
        %1587 = vmatpush1.bf16.msra.mxu0 0
        %1588 = vmatprep.subr.bf16.mxu0 0
        %1589 = vmatpush1.bf16.msra.mxu0 0
        %1590 = vmatprep.mubr.bf16.mxu0 0
        %1591 = vmatmul.mubr.bf16.gmra.mrb[0].mxu0 %v400
        %v1592 = vpop.f32.mrb[0].mxu0
        %v1593 = vadd.f32 0.0, %v1592
        %v1594 = vpop.f32.mrb[0].mxu0
        %v1595 = vpop.f32.mrb[0].mxu0
        %v1596 = vpop.f32.mrb[0].mxu0
        %1597 = vdwg.mxu0
        %v1602 = vunpack.c.l.b16 %v1278
        %v1603 = vunpack.c.l.b16 %v1279
        %v1604 = vunpack.c.l.b16 %v1280
        %v1605 = vunpack.c.l.b16 %v1281
        %v1606 = vpack.c.b16 %v1603, %v1602
        %v1607 = vpack.c.b16 %v1605, %v1604
        %1610 = vmatprep.subr.bf16.mxu0 0
        %1611 = vmatpush1.bf16.msra.mxu0 %v1606
        %1612 = vmatprep.subr.bf16.mxu0 0
        %1613 = vmatpush1.bf16.msra.mxu0 %v1607
        %1614 = vmatprep.subr.bf16.mxu0 0
        %1615 = vmatpush1.bf16.msra.mxu0 0
        %1616 = vmatprep.subr.bf16.mxu0 0
        %1617 = vmatpush1.bf16.msra.mxu0 0
        %1618 = vmatprep.subr.bf16.mxu0 0
        %1619 = vmatpush1.bf16.msra.mxu0 0
        %1620 = vmatprep.subr.bf16.mxu0 0
        %1621 = vmatpush1.bf16.msra.mxu0 0
        %1622 = vmatprep.subr.bf16.mxu0 0
        %1623 = vmatpush1.bf16.msra.mxu0 0
        %1624 = vmatprep.subr.bf16.mxu0 0
        %1625 = vmatpush1.bf16.msra.mxu0 0
        %1626 = vmatprep.subr.bf16.mxu0 0
        %1627 = vmatpush1.bf16.msra.mxu0 0
        %1628 = vmatprep.subr.bf16.mxu0 0
        %1629 = vmatpush1.bf16.msra.mxu0 0
        %1630 = vmatprep.subr.bf16.mxu0 0
        %1631 = vmatpush1.bf16.msra.mxu0 0
        %1632 = vmatprep.subr.bf16.mxu0 0
        %1633 = vmatpush1.bf16.msra.mxu0 0
        %1634 = vmatprep.subr.bf16.mxu0 0
        %1635 = vmatpush1.bf16.msra.mxu0 0
        %1636 = vmatprep.subr.bf16.mxu0 0
        %1637 = vmatpush1.bf16.msra.mxu0 0
        %1638 = vmatprep.subr.bf16.mxu0 0
        %1639 = vmatpush1.bf16.msra.mxu0 0
        %1640 = vmatprep.subr.bf16.mxu0 0
        %1641 = vmatpush1.bf16.msra.mxu0 0
        %1642 = vmatprep.mubr.bf16.mxu0 0
        %1643 = vmatmul.mubr.bf16.gmra.mrb[0].mxu0 %v400
        %v1644 = vpop.f32.mrb[0].mxu0
        %v1645 = vadd.f32 0.0, %v1644
        %v1646 = vpop.f32.mrb[0].mxu0
        %v1647 = vpop.f32.mrb[0].mxu0
        %v1648 = vpop.f32.mrb[0].mxu0
        %1649 = vdwg.mxu0
        %v1654 = vunpack.c.l.b16 %v1282
        %v1655 = vunpack.c.l.b16 %v1283
        %v1656 = vunpack.c.l.b16 %v1284
        %v1657 = vunpack.c.l.b16 %v1285
        %v1658 = vpack.c.b16 %v1655, %v1654
        %v1659 = vpack.c.b16 %v1657, %v1656
        %1662 = vmatprep.subr.bf16.mxu0 0
        %1663 = vmatpush1.bf16.msra.mxu0 %v1658
        %1664 = vmatprep.subr.bf16.mxu0 0
        %1665 = vmatpush1.bf16.msra.mxu0 %v1659
        %1666 = vmatprep.subr.bf16.mxu0 0
        %1667 = vmatpush1.bf16.msra.mxu0 0
        %1668 = vmatprep.subr.bf16.mxu0 0
        %1669 = vmatpush1.bf16.msra.mxu0 0
        %1670 = vmatprep.subr.bf16.mxu0 0
        %1671 = vmatpush1.bf16.msra.mxu0 0
        %1672 = vmatprep.subr.bf16.mxu0 0
        %1673 = vmatpush1.bf16.msra.mxu0 0
        %1674 = vmatprep.subr.bf16.mxu0 0
        %1675 = vmatpush1.bf16.msra.mxu0 0
        %1676 = vmatprep.subr.bf16.mxu0 0
        %1677 = vmatpush1.bf16.msra.mxu0 0
        %1678 = vmatprep.subr.bf16.mxu0 0
        %1679 = vmatpush1.bf16.msra.mxu0 0
        %1680 = vmatprep.subr.bf16.mxu0 0
        %1681 = vmatpush1.bf16.msra.mxu0 0
        %1682 = vmatprep.subr.bf16.mxu0 0
        %1683 = vmatpush1.bf16.msra.mxu0 0
        %1684 = vmatprep.subr.bf16.mxu0 0
        %1685 = vmatpush1.bf16.msra.mxu0 0
        %1686 = vmatprep.subr.bf16.mxu0 0
        %1687 = vmatpush1.bf16.msra.mxu0 0
        %1688 = vmatprep.subr.bf16.mxu0 0
        %1689 = vmatpush1.bf16.msra.mxu0 0
        %1690 = vmatprep.subr.bf16.mxu0 0
        %1691 = vmatpush1.bf16.msra.mxu0 0
        %1692 = vmatprep.subr.bf16.mxu0 0
        %1693 = vmatpush1.bf16.msra.mxu0 0
        %1694 = vmatprep.mubr.bf16.mxu0 0
        %1695 = vmatmul.mubr.bf16.gmra.mrb[0].mxu0 %v400
        %v1696 = vpop.f32.mrb[0].mxu0
        %v1697 = vadd.f32 0.0, %v1696
        %v1698 = vpop.f32.mrb[0].mxu0
        %v1699 = vpop.f32.mrb[0].mxu0
        %v1700 = vpop.f32.mrb[0].mxu0
        %1701 = vdwg.mxu0
        %v1703 = vsel %vm398, %v437, 0
        %v1706 = vsel %vm398, %v885, 0
        %1708 = vmatprep.subr.mxu0 0.0
        %1709 = vmatpush1.xpose.msra.mxu0 %v1706
        %1710 = vmatprep.subr.mxu0 0.0
        %1711 = vmatpush1.xpose.msra.mxu0 0.0
        %1712 = vmatprep.subr.mxu0 0.0
        %1713 = vmatpush1.xpose.msra.mxu0 0.0
        %1714 = vmatprep.subr.mxu0 0.0
        %1715 = vmatpush1.xpose.msra.mxu0 0.0
        %1716 = vmatprep.subr.mxu0 0.0
        %1717 = vmatpush1.xpose.msra.mxu0 0.0
        %1718 = vmatprep.subr.mxu0 0.0
        %1719 = vmatpush1.xpose.msra.mxu0 0.0
        %1720 = vmatprep.subr.mxu0 0.0
        %1721 = vmatpush1.xpose.msra.mxu0 0.0
        %1722 = vmatprep.subr.mxu0 0.0
        %1723 = vmatpush1.xpose.msra.mxu0 0.0
        %1724 = vmatprep.subr.mxu0 0.0
        %1725 = vmatpush1.xpose.msra.mxu0 0.0
        %1726 = vmatprep.subr.mxu0 0.0
        %1727 = vmatpush1.xpose.msra.mxu0 0.0
        %1728 = vmatprep.subr.mxu0 0.0
        %1729 = vmatpush1.xpose.msra.mxu0 0.0
        %1730 = vmatprep.subr.mxu0 0.0
        %1731 = vmatpush1.xpose.msra.mxu0 0.0
        %1732 = vmatprep.subr.mxu0 0.0
        %1733 = vmatpush1.xpose.msra.mxu0 0.0
        %1734 = vmatprep.subr.mxu0 0.0
        %1735 = vmatpush1.xpose.msra.mxu0 0.0
        %1736 = vmatprep.subr.mxu0 0.0
        %1737 = vmatpush1.xpose.msra.mxu0 0.0
        %1738 = vmatprep.subr.mxu0 0.0
        %1739 = vmatpush1.xpose.msra.mxu0 0.0
        %1740 = vmatprep.subr.mxu0 0.0
        %1741 = vmatpush1.xpose.msra.mxu0 0.0
        %1742 = vmatprep.subr.mxu0 0.0
        %1743 = vmatpush1.xpose.msra.mxu0 0.0
        %1744 = vmatprep.subr.mxu0 0.0
        %1745 = vmatpush1.xpose.msra.mxu0 0.0
        %1746 = vmatprep.subr.mxu0 0.0
        %1747 = vmatpush1.xpose.msra.mxu0 0.0
        %1748 = vmatprep.subr.mxu0 0.0
        %1749 = vmatpush1.xpose.msra.mxu0 0.0
        %1750 = vmatprep.subr.mxu0 0.0
        %1751 = vmatpush1.xpose.msra.mxu0 0.0
        %1752 = vmatprep.subr.mxu0 0.0
        %1753 = vmatpush1.xpose.msra.mxu0 0.0
        %1754 = vmatprep.subr.mxu0 0.0
        %1755 = vmatpush1.xpose.msra.mxu0 0.0
        %1756 = vmatprep.subr.mxu0 0.0
        %1757 = vmatpush1.xpose.msra.mxu0 0.0
        %1758 = vmatprep.subr.mxu0 0.0
        %1759 = vmatpush1.xpose.msra.mxu0 0.0
        %1760 = vmatprep.subr.mxu0 0.0
        %1761 = vmatpush1.xpose.msra.mxu0 0.0
        %1762 = vmatprep.subr.mxu0 0.0
        %1763 = vmatpush1.xpose.msra.mxu0 0.0
        %1764 = vmatprep.subr.mxu0 0.0
        %1765 = vmatpush1.xpose.msra.mxu0 0.0
        %1766 = vmatprep.subr.mxu0 0.0
        %1767 = vmatpush1.xpose.msra.mxu0 0.0
        %1768 = vmatprep.subr.mxu0 0.0
        %1769 = vmatpush1.xpose.msra.mxu0 0.0
        %1770 = vmatprep.subr.mxu0 0.0
        %1771 = vmatpush1.xpose.msra.mxu0 0.0
        %1772 = vmatprep.mubr.f32.mxu0 0.0
        %1773 = vmatmul.mubr.f32.gmra.mrb[0].mxu0 %v1703
        %v1774 = vpop.f32.mrb[0].mxu0
        %v1775 = vadd.f32 0.0, %v1774
        %v1776 = vpop.f32.mrb[0].mxu0
        %1777 = vdwg.mxu0
        %v1779 = vsel %vm398, %v489, 0
        %v1782 = vsel %vm398, %v937, 0
        %1784 = vmatprep.subr.mxu0 0.0
        %1785 = vmatpush1.xpose.msra.mxu0 %v1782
        %1786 = vmatprep.subr.mxu0 0.0
        %1787 = vmatpush1.xpose.msra.mxu0 0.0
        %1788 = vmatprep.subr.mxu0 0.0
        %1789 = vmatpush1.xpose.msra.mxu0 0.0
        %1790 = vmatprep.subr.mxu0 0.0
        %1791 = vmatpush1.xpose.msra.mxu0 0.0
        %1792 = vmatprep.subr.mxu0 0.0
        %1793 = vmatpush1.xpose.msra.mxu0 0.0
        %1794 = vmatprep.subr.mxu0 0.0
        %1795 = vmatpush1.xpose.msra.mxu0 0.0
        %1796 = vmatprep.subr.mxu0 0.0
        %1797 = vmatpush1.xpose.msra.mxu0 0.0
        %1798 = vmatprep.subr.mxu0 0.0
        %1799 = vmatpush1.xpose.msra.mxu0 0.0
        %1800 = vmatprep.subr.mxu0 0.0
        %1801 = vmatpush1.xpose.msra.mxu0 0.0
        %1802 = vmatprep.subr.mxu0 0.0
        %1803 = vmatpush1.xpose.msra.mxu0 0.0
        %1804 = vmatprep.subr.mxu0 0.0
        %1805 = vmatpush1.xpose.msra.mxu0 0.0
        %1806 = vmatprep.subr.mxu0 0.0
        %1807 = vmatpush1.xpose.msra.mxu0 0.0
        %1808 = vmatprep.subr.mxu0 0.0
        %1809 = vmatpush1.xpose.msra.mxu0 0.0
        %1810 = vmatprep.subr.mxu0 0.0
        %1811 = vmatpush1.xpose.msra.mxu0 0.0
        %1812 = vmatprep.subr.mxu0 0.0
        %1813 = vmatpush1.xpose.msra.mxu0 0.0
        %1814 = vmatprep.subr.mxu0 0.0
        %1815 = vmatpush1.xpose.msra.mxu0 0.0
        %1816 = vmatprep.subr.mxu0 0.0
        %1817 = vmatpush1.xpose.msra.mxu0 0.0
        %1818 = vmatprep.subr.mxu0 0.0
        %1819 = vmatpush1.xpose.msra.mxu0 0.0
        %1820 = vmatprep.subr.mxu0 0.0
        %1821 = vmatpush1.xpose.msra.mxu0 0.0
        %1822 = vmatprep.subr.mxu0 0.0
        %1823 = vmatpush1.xpose.msra.mxu0 0.0
        %1824 = vmatprep.subr.mxu0 0.0
        %1825 = vmatpush1.xpose.msra.mxu0 0.0
        %1826 = vmatprep.subr.mxu0 0.0
        %1827 = vmatpush1.xpose.msra.mxu0 0.0
        %1828 = vmatprep.subr.mxu0 0.0
        %1829 = vmatpush1.xpose.msra.mxu0 0.0
        %1830 = vmatprep.subr.mxu0 0.0
        %1831 = vmatpush1.xpose.msra.mxu0 0.0
        %1832 = vmatprep.subr.mxu0 0.0
        %1833 = vmatpush1.xpose.msra.mxu0 0.0
        %1834 = vmatprep.subr.mxu0 0.0
        %1835 = vmatpush1.xpose.msra.mxu0 0.0
        %1836 = vmatprep.subr.mxu0 0.0
        %1837 = vmatpush1.xpose.msra.mxu0 0.0
        %1838 = vmatprep.subr.mxu0 0.0
        %1839 = vmatpush1.xpose.msra.mxu0 0.0
        %1840 = vmatprep.subr.mxu0 0.0
        %1841 = vmatpush1.xpose.msra.mxu0 0.0
        %1842 = vmatprep.subr.mxu0 0.0
        %1843 = vmatpush1.xpose.msra.mxu0 0.0
        %1844 = vmatprep.subr.mxu0 0.0
        %1845 = vmatpush1.xpose.msra.mxu0 0.0
        %1846 = vmatprep.subr.mxu0 0.0
        %1847 = vmatpush1.xpose.msra.mxu0 0.0
        %1848 = vmatprep.mubr.f32.mxu0 0.0
        %1849 = vmatmul.mubr.f32.gmra.mrb[0].mxu0 %v1779
        %v1850 = vpop.f32.mrb[0].mxu0
        %v1851 = vadd.f32 0.0, %v1850
        %v1852 = vpop.f32.mrb[0].mxu0
        %1853 = vdwg.mxu0
        %v1855 = vsel %vm398, %v541, 0
        %v1858 = vsel %vm398, %v989, 0
        %1860 = vmatprep.subr.mxu0 0.0
        %1861 = vmatpush1.xpose.msra.mxu0 %v1858
        %1862 = vmatprep.subr.mxu0 0.0
        %1863 = vmatpush1.xpose.msra.mxu0 0.0
        %1864 = vmatprep.subr.mxu0 0.0
        %1865 = vmatpush1.xpose.msra.mxu0 0.0
        %1866 = vmatprep.subr.mxu0 0.0
        %1867 = vmatpush1.xpose.msra.mxu0 0.0
        %1868 = vmatprep.subr.mxu0 0.0
        %1869 = vmatpush1.xpose.msra.mxu0 0.0
        %1870 = vmatprep.subr.mxu0 0.0
        %1871 = vmatpush1.xpose.msra.mxu0 0.0
        %1872 = vmatprep.subr.mxu0 0.0
        %1873 = vmatpush1.xpose.msra.mxu0 0.0
        %1874 = vmatprep.subr.mxu0 0.0
        %1875 = vmatpush1.xpose.msra.mxu0 0.0
        %1876 = vmatprep.subr.mxu0 0.0
        %1877 = vmatpush1.xpose.msra.mxu0 0.0
        %1878 = vmatprep.subr.mxu0 0.0
        %1879 = vmatpush1.xpose.msra.mxu0 0.0
        %1880 = vmatprep.subr.mxu0 0.0
        %1881 = vmatpush1.xpose.msra.mxu0 0.0
        %1882 = vmatprep.subr.mxu0 0.0
        %1883 = vmatpush1.xpose.msra.mxu0 0.0
        %1884 = vmatprep.subr.mxu0 0.0
        %1885 = vmatpush1.xpose.msra.mxu0 0.0
        %1886 = vmatprep.subr.mxu0 0.0
        %1887 = vmatpush1.xpose.msra.mxu0 0.0
        %1888 = vmatprep.subr.mxu0 0.0
        %1889 = vmatpush1.xpose.msra.mxu0 0.0
        %1890 = vmatprep.subr.mxu0 0.0
        %1891 = vmatpush1.xpose.msra.mxu0 0.0
        %1892 = vmatprep.subr.mxu0 0.0
        %1893 = vmatpush1.xpose.msra.mxu0 0.0
        %1894 = vmatprep.subr.mxu0 0.0
        %1895 = vmatpush1.xpose.msra.mxu0 0.0
        %1896 = vmatprep.subr.mxu0 0.0
        %1897 = vmatpush1.xpose.msra.mxu0 0.0
        %1898 = vmatprep.subr.mxu0 0.0
        %1899 = vmatpush1.xpose.msra.mxu0 0.0
        %1900 = vmatprep.subr.mxu0 0.0
        %1901 = vmatpush1.xpose.msra.mxu0 0.0
        %1902 = vmatprep.subr.mxu0 0.0
        %1903 = vmatpush1.xpose.msra.mxu0 0.0
        %1904 = vmatprep.subr.mxu0 0.0
        %1905 = vmatpush1.xpose.msra.mxu0 0.0
        %1906 = vmatprep.subr.mxu0 0.0
        %1907 = vmatpush1.xpose.msra.mxu0 0.0
        %1908 = vmatprep.subr.mxu0 0.0
        %1909 = vmatpush1.xpose.msra.mxu0 0.0
        %1910 = vmatprep.subr.mxu0 0.0
        %1911 = vmatpush1.xpose.msra.mxu0 0.0
        %1912 = vmatprep.subr.mxu0 0.0
        %1913 = vmatpush1.xpose.msra.mxu0 0.0
        %1914 = vmatprep.subr.mxu0 0.0
        %1915 = vmatpush1.xpose.msra.mxu0 0.0
        %1916 = vmatprep.subr.mxu0 0.0
        %1917 = vmatpush1.xpose.msra.mxu0 0.0
        %1918 = vmatprep.subr.mxu0 0.0
        %1919 = vmatpush1.xpose.msra.mxu0 0.0
        %1920 = vmatprep.subr.mxu0 0.0
        %1921 = vmatpush1.xpose.msra.mxu0 0.0
        %1922 = vmatprep.subr.mxu0 0.0
        %1923 = vmatpush1.xpose.msra.mxu0 0.0
        %1924 = vmatprep.mubr.f32.mxu0 0.0
        %1925 = vmatmul.mubr.f32.gmra.mrb[0].mxu0 %v1855
        %v1926 = vpop.f32.mrb[0].mxu0
        %v1927 = vadd.f32 0.0, %v1926
        %v1928 = vpop.f32.mrb[0].mxu0
        %1929 = vdwg.mxu0
        %v1931 = vsel %vm398, %v593, 0
        %v1934 = vsel %vm398, %v1041, 0
        %1936 = vmatprep.subr.mxu0 0.0
        %1937 = vmatpush1.xpose.msra.mxu0 %v1934
        %1938 = vmatprep.subr.mxu0 0.0
        %1939 = vmatpush1.xpose.msra.mxu0 0.0
        %1940 = vmatprep.subr.mxu0 0.0
        %1941 = vmatpush1.xpose.msra.mxu0 0.0
        %1942 = vmatprep.subr.mxu0 0.0
        %1943 = vmatpush1.xpose.msra.mxu0 0.0
        %1944 = vmatprep.subr.mxu0 0.0
        %1945 = vmatpush1.xpose.msra.mxu0 0.0
        %1946 = vmatprep.subr.mxu0 0.0
        %1947 = vmatpush1.xpose.msra.mxu0 0.0
        %1948 = vmatprep.subr.mxu0 0.0
        %1949 = vmatpush1.xpose.msra.mxu0 0.0
        %1950 = vmatprep.subr.mxu0 0.0
        %1951 = vmatpush1.xpose.msra.mxu0 0.0
        %1952 = vmatprep.subr.mxu0 0.0
        %1953 = vmatpush1.xpose.msra.mxu0 0.0
        %1954 = vmatprep.subr.mxu0 0.0
        %1955 = vmatpush1.xpose.msra.mxu0 0.0
        %1956 = vmatprep.subr.mxu0 0.0
        %1957 = vmatpush1.xpose.msra.mxu0 0.0
        %1958 = vmatprep.subr.mxu0 0.0
        %1959 = vmatpush1.xpose.msra.mxu0 0.0
        %1960 = vmatprep.subr.mxu0 0.0
        %1961 = vmatpush1.xpose.msra.mxu0 0.0
        %1962 = vmatprep.subr.mxu0 0.0
        %1963 = vmatpush1.xpose.msra.mxu0 0.0
        %1964 = vmatprep.subr.mxu0 0.0
        %1965 = vmatpush1.xpose.msra.mxu0 0.0
        %1966 = vmatprep.subr.mxu0 0.0
        %1967 = vmatpush1.xpose.msra.mxu0 0.0
        %1968 = vmatprep.subr.mxu0 0.0
        %1969 = vmatpush1.xpose.msra.mxu0 0.0
        %1970 = vmatprep.subr.mxu0 0.0
        %1971 = vmatpush1.xpose.msra.mxu0 0.0
        %1972 = vmatprep.subr.mxu0 0.0
        %1973 = vmatpush1.xpose.msra.mxu0 0.0
        %1974 = vmatprep.subr.mxu0 0.0
        %1975 = vmatpush1.xpose.msra.mxu0 0.0
        %1976 = vmatprep.subr.mxu0 0.0
        %1977 = vmatpush1.xpose.msra.mxu0 0.0
        %1978 = vmatprep.subr.mxu0 0.0
        %1979 = vmatpush1.xpose.msra.mxu0 0.0
        %1980 = vmatprep.subr.mxu0 0.0
        %1981 = vmatpush1.xpose.msra.mxu0 0.0
        %1982 = vmatprep.subr.mxu0 0.0
        %1983 = vmatpush1.xpose.msra.mxu0 0.0
        %1984 = vmatprep.subr.mxu0 0.0
        %1985 = vmatpush1.xpose.msra.mxu0 0.0
        %1986 = vmatprep.subr.mxu0 0.0
        %1987 = vmatpush1.xpose.msra.mxu0 0.0
        %1988 = vmatprep.subr.mxu0 0.0
        %1989 = vmatpush1.xpose.msra.mxu0 0.0
        %1990 = vmatprep.subr.mxu0 0.0
        %1991 = vmatpush1.xpose.msra.mxu0 0.0
        %1992 = vmatprep.subr.mxu0 0.0
        %1993 = vmatpush1.xpose.msra.mxu0 0.0
        %1994 = vmatprep.subr.mxu0 0.0
        %1995 = vmatpush1.xpose.msra.mxu0 0.0
        %1996 = vmatprep.subr.mxu0 0.0
        %1997 = vmatpush1.xpose.msra.mxu0 0.0
        %1998 = vmatprep.subr.mxu0 0.0
        %1999 = vmatpush1.xpose.msra.mxu0 0.0
        %2000 = vmatprep.mubr.f32.mxu0 0.0
        %2001 = vmatmul.mubr.f32.gmra.mrb[0].mxu0 %v1931
        %v2002 = vpop.f32.mrb[0].mxu0
        %v2003 = vadd.f32 0.0, %v2002
        %v2004 = vpop.f32.mrb[0].mxu0
        %2005 = vdwg.mxu0
        %v2007 = vsel %vm398, %v645, 0
        %v2010 = vsel %vm398, %v1093, 0
        %2012 = vmatprep.subr.mxu0 0.0
        %2013 = vmatpush1.xpose.msra.mxu0 %v2010
        %2014 = vmatprep.subr.mxu0 0.0
        %2015 = vmatpush1.xpose.msra.mxu0 0.0
        %2016 = vmatprep.subr.mxu0 0.0
        %2017 = vmatpush1.xpose.msra.mxu0 0.0
        %2018 = vmatprep.subr.mxu0 0.0
        %2019 = vmatpush1.xpose.msra.mxu0 0.0
        %2020 = vmatprep.subr.mxu0 0.0
        %2021 = vmatpush1.xpose.msra.mxu0 0.0
        %2022 = vmatprep.subr.mxu0 0.0
        %2023 = vmatpush1.xpose.msra.mxu0 0.0
        %2024 = vmatprep.subr.mxu0 0.0
        %2025 = vmatpush1.xpose.msra.mxu0 0.0
        %2026 = vmatprep.subr.mxu0 0.0
        %2027 = vmatpush1.xpose.msra.mxu0 0.0
        %2028 = vmatprep.subr.mxu0 0.0
        %2029 = vmatpush1.xpose.msra.mxu0 0.0
        %2030 = vmatprep.subr.mxu0 0.0
        %2031 = vmatpush1.xpose.msra.mxu0 0.0
        %2032 = vmatprep.subr.mxu0 0.0
        %2033 = vmatpush1.xpose.msra.mxu0 0.0
        %2034 = vmatprep.subr.mxu0 0.0
        %2035 = vmatpush1.xpose.msra.mxu0 0.0
        %2036 = vmatprep.subr.mxu0 0.0
        %2037 = vmatpush1.xpose.msra.mxu0 0.0
        %2038 = vmatprep.subr.mxu0 0.0
        %2039 = vmatpush1.xpose.msra.mxu0 0.0
        %2040 = vmatprep.subr.mxu0 0.0
        %2041 = vmatpush1.xpose.msra.mxu0 0.0
        %2042 = vmatprep.subr.mxu0 0.0
        %2043 = vmatpush1.xpose.msra.mxu0 0.0
        %2044 = vmatprep.subr.mxu0 0.0
        %2045 = vmatpush1.xpose.msra.mxu0 0.0
        %2046 = vmatprep.subr.mxu0 0.0
        %2047 = vmatpush1.xpose.msra.mxu0 0.0
        %2048 = vmatprep.subr.mxu0 0.0
        %2049 = vmatpush1.xpose.msra.mxu0 0.0
        %2050 = vmatprep.subr.mxu0 0.0
        %2051 = vmatpush1.xpose.msra.mxu0 0.0
        %2052 = vmatprep.subr.mxu0 0.0
        %2053 = vmatpush1.xpose.msra.mxu0 0.0
        %2054 = vmatprep.subr.mxu0 0.0
        %2055 = vmatpush1.xpose.msra.mxu0 0.0
        %2056 = vmatprep.subr.mxu0 0.0
        %2057 = vmatpush1.xpose.msra.mxu0 0.0
        %2058 = vmatprep.subr.mxu0 0.0
        %2059 = vmatpush1.xpose.msra.mxu0 0.0
        %2060 = vmatprep.subr.mxu0 0.0
        %2061 = vmatpush1.xpose.msra.mxu0 0.0
        %2062 = vmatprep.subr.mxu0 0.0
        %2063 = vmatpush1.xpose.msra.mxu0 0.0
        %2064 = vmatprep.subr.mxu0 0.0
        %2065 = vmatpush1.xpose.msra.mxu0 0.0
        %2066 = vmatprep.subr.mxu0 0.0
        %2067 = vmatpush1.xpose.msra.mxu0 0.0
        %2068 = vmatprep.subr.mxu0 0.0
        %2069 = vmatpush1.xpose.msra.mxu0 0.0
        %2070 = vmatprep.subr.mxu0 0.0
        %2071 = vmatpush1.xpose.msra.mxu0 0.0
        %2072 = vmatprep.subr.mxu0 0.0
        %2073 = vmatpush1.xpose.msra.mxu0 0.0
        %2074 = vmatprep.subr.mxu0 0.0
        %2075 = vmatpush1.xpose.msra.mxu0 0.0
        %2076 = vmatprep.mubr.f32.mxu0 0.0
        %2077 = vmatmul.mubr.f32.gmra.mrb[0].mxu0 %v2007
        %v2078 = vpop.f32.mrb[0].mxu0
        %v2079 = vadd.f32 0.0, %v2078
        %v2080 = vpop.f32.mrb[0].mxu0
        %2081 = vdwg.mxu0
        %v2083 = vsel %vm398, %v697, 0
        %v2086 = vsel %vm398, %v1145, 0
        %2088 = vmatprep.subr.mxu0 0.0
        %2089 = vmatpush1.xpose.msra.mxu0 %v2086
        %2090 = vmatprep.subr.mxu0 0.0
        %2091 = vmatpush1.xpose.msra.mxu0 0.0
        %2092 = vmatprep.subr.mxu0 0.0
        %2093 = vmatpush1.xpose.msra.mxu0 0.0
        %2094 = vmatprep.subr.mxu0 0.0
        %2095 = vmatpush1.xpose.msra.mxu0 0.0
        %2096 = vmatprep.subr.mxu0 0.0
        %2097 = vmatpush1.xpose.msra.mxu0 0.0
        %2098 = vmatprep.subr.mxu0 0.0
        %2099 = vmatpush1.xpose.msra.mxu0 0.0
        %2100 = vmatprep.subr.mxu0 0.0
        %2101 = vmatpush1.xpose.msra.mxu0 0.0
        %2102 = vmatprep.subr.mxu0 0.0
        %2103 = vmatpush1.xpose.msra.mxu0 0.0
        %2104 = vmatprep.subr.mxu0 0.0
        %2105 = vmatpush1.xpose.msra.mxu0 0.0
        %2106 = vmatprep.subr.mxu0 0.0
        %2107 = vmatpush1.xpose.msra.mxu0 0.0
        %2108 = vmatprep.subr.mxu0 0.0
        %2109 = vmatpush1.xpose.msra.mxu0 0.0
        %2110 = vmatprep.subr.mxu0 0.0
        %2111 = vmatpush1.xpose.msra.mxu0 0.0
        %2112 = vmatprep.subr.mxu0 0.0
        %2113 = vmatpush1.xpose.msra.mxu0 0.0
        %2114 = vmatprep.subr.mxu0 0.0
        %2115 = vmatpush1.xpose.msra.mxu0 0.0
        %2116 = vmatprep.subr.mxu0 0.0
        %2117 = vmatpush1.xpose.msra.mxu0 0.0
        %2118 = vmatprep.subr.mxu0 0.0
        %2119 = vmatpush1.xpose.msra.mxu0 0.0
        %2120 = vmatprep.subr.mxu0 0.0
        %2121 = vmatpush1.xpose.msra.mxu0 0.0
        %2122 = vmatprep.subr.mxu0 0.0
        %2123 = vmatpush1.xpose.msra.mxu0 0.0
        %2124 = vmatprep.subr.mxu0 0.0
        %2125 = vmatpush1.xpose.msra.mxu0 0.0
        %2126 = vmatprep.subr.mxu0 0.0
        %2127 = vmatpush1.xpose.msra.mxu0 0.0
        %2128 = vmatprep.subr.mxu0 0.0
        %2129 = vmatpush1.xpose.msra.mxu0 0.0
        %2130 = vmatprep.subr.mxu0 0.0
        %2131 = vmatpush1.xpose.msra.mxu0 0.0
        %2132 = vmatprep.subr.mxu0 0.0
        %2133 = vmatpush1.xpose.msra.mxu0 0.0
        %2134 = vmatprep.subr.mxu0 0.0
        %2135 = vmatpush1.xpose.msra.mxu0 0.0
        %2136 = vmatprep.subr.mxu0 0.0
        %2137 = vmatpush1.xpose.msra.mxu0 0.0
        %2138 = vmatprep.subr.mxu0 0.0
        %2139 = vmatpush1.xpose.msra.mxu0 0.0
        %2140 = vmatprep.subr.mxu0 0.0
        %2141 = vmatpush1.xpose.msra.mxu0 0.0
        %2142 = vmatprep.subr.mxu0 0.0
        %2143 = vmatpush1.xpose.msra.mxu0 0.0
        %2144 = vmatprep.subr.mxu0 0.0
        %2145 = vmatpush1.xpose.msra.mxu0 0.0
        %2146 = vmatprep.subr.mxu0 0.0
        %2147 = vmatpush1.xpose.msra.mxu0 0.0
        %2148 = vmatprep.subr.mxu0 0.0
        %2149 = vmatpush1.xpose.msra.mxu0 0.0
        %2150 = vmatprep.subr.mxu0 0.0
        %2151 = vmatpush1.xpose.msra.mxu0 0.0
        %2152 = vmatprep.mubr.f32.mxu0 0.0
        %2153 = vmatmul.mubr.f32.gmra.mrb[0].mxu0 %v2083
        %v2154 = vpop.f32.mrb[0].mxu0
        %v2155 = vadd.f32 0.0, %v2154
        %v2156 = vpop.f32.mrb[0].mxu0
        %2157 = vdwg.mxu0
        %v2159 = vsel %vm398, %v749, 0
        %v2162 = vsel %vm398, %v1197, 0
        %2164 = vmatprep.subr.mxu0 0.0
        %2165 = vmatpush1.xpose.msra.mxu0 %v2162
        %2166 = vmatprep.subr.mxu0 0.0
        %2167 = vmatpush1.xpose.msra.mxu0 0.0
        %2168 = vmatprep.subr.mxu0 0.0
        %2169 = vmatpush1.xpose.msra.mxu0 0.0
        %2170 = vmatprep.subr.mxu0 0.0
        %2171 = vmatpush1.xpose.msra.mxu0 0.0
        %2172 = vmatprep.subr.mxu0 0.0
        %2173 = vmatpush1.xpose.msra.mxu0 0.0
        %2174 = vmatprep.subr.mxu0 0.0
        %2175 = vmatpush1.xpose.msra.mxu0 0.0
        %2176 = vmatprep.subr.mxu0 0.0
        %2177 = vmatpush1.xpose.msra.mxu0 0.0
        %2178 = vmatprep.subr.mxu0 0.0
        %2179 = vmatpush1.xpose.msra.mxu0 0.0
        %2180 = vmatprep.subr.mxu0 0.0
        %2181 = vmatpush1.xpose.msra.mxu0 0.0
        %2182 = vmatprep.subr.mxu0 0.0
        %2183 = vmatpush1.xpose.msra.mxu0 0.0
        %2184 = vmatprep.subr.mxu0 0.0
        %2185 = vmatpush1.xpose.msra.mxu0 0.0
        %2186 = vmatprep.subr.mxu0 0.0
        %2187 = vmatpush1.xpose.msra.mxu0 0.0
        %2188 = vmatprep.subr.mxu0 0.0
        %2189 = vmatpush1.xpose.msra.mxu0 0.0
        %2190 = vmatprep.subr.mxu0 0.0
        %2191 = vmatpush1.xpose.msra.mxu0 0.0
        %2192 = vmatprep.subr.mxu0 0.0
        %2193 = vmatpush1.xpose.msra.mxu0 0.0
        %2194 = vmatprep.subr.mxu0 0.0
        %2195 = vmatpush1.xpose.msra.mxu0 0.0
        %2196 = vmatprep.subr.mxu0 0.0
        %2197 = vmatpush1.xpose.msra.mxu0 0.0
        %2198 = vmatprep.subr.mxu0 0.0
        %2199 = vmatpush1.xpose.msra.mxu0 0.0
        %2200 = vmatprep.subr.mxu0 0.0
        %2201 = vmatpush1.xpose.msra.mxu0 0.0
        %2202 = vmatprep.subr.mxu0 0.0
        %2203 = vmatpush1.xpose.msra.mxu0 0.0
        %2204 = vmatprep.subr.mxu0 0.0
        %2205 = vmatpush1.xpose.msra.mxu0 0.0
        %2206 = vmatprep.subr.mxu0 0.0
        %2207 = vmatpush1.xpose.msra.mxu0 0.0
        %2208 = vmatprep.subr.mxu0 0.0
        %2209 = vmatpush1.xpose.msra.mxu0 0.0
        %2210 = vmatprep.subr.mxu0 0.0
        %2211 = vmatpush1.xpose.msra.mxu0 0.0
        %2212 = vmatprep.subr.mxu0 0.0
        %2213 = vmatpush1.xpose.msra.mxu0 0.0
        %2214 = vmatprep.subr.mxu0 0.0
        %2215 = vmatpush1.xpose.msra.mxu0 0.0
        %2216 = vmatprep.subr.mxu0 0.0
        %2217 = vmatpush1.xpose.msra.mxu0 0.0
        %2218 = vmatprep.subr.mxu0 0.0
        %2219 = vmatpush1.xpose.msra.mxu0 0.0
        %2220 = vmatprep.subr.mxu0 0.0
        %2221 = vmatpush1.xpose.msra.mxu0 0.0
        %2222 = vmatprep.subr.mxu0 0.0
        %2223 = vmatpush1.xpose.msra.mxu0 0.0
        %2224 = vmatprep.subr.mxu0 0.0
        %2225 = vmatpush1.xpose.msra.mxu0 0.0
        %2226 = vmatprep.subr.mxu0 0.0
        %2227 = vmatpush1.xpose.msra.mxu0 0.0
        %2228 = vmatprep.mubr.f32.mxu0 0.0
        %2229 = vmatmul.mubr.f32.gmra.mrb[0].mxu0 %v2159
        %v2230 = vpop.f32.mrb[0].mxu0
        %v2231 = vadd.f32 0.0, %v2230
        %v2232 = vpop.f32.mrb[0].mxu0
        %2233 = vdwg.mxu0
        %v2235 = vsel %vm398, %v801, 0
        %v2238 = vsel %vm398, %v1249, 0
        %2240 = vmatprep.subr.mxu0 0.0
        %2241 = vmatpush1.xpose.msra.mxu0 %v2238
        %2242 = vmatprep.subr.mxu0 0.0
        %2243 = vmatpush1.xpose.msra.mxu0 0.0
        %2244 = vmatprep.subr.mxu0 0.0
        %2245 = vmatpush1.xpose.msra.mxu0 0.0
        %2246 = vmatprep.subr.mxu0 0.0
        %2247 = vmatpush1.xpose.msra.mxu0 0.0
        %2248 = vmatprep.subr.mxu0 0.0
        %2249 = vmatpush1.xpose.msra.mxu0 0.0
        %2250 = vmatprep.subr.mxu0 0.0
        %2251 = vmatpush1.xpose.msra.mxu0 0.0
        %2252 = vmatprep.subr.mxu0 0.0
        %2253 = vmatpush1.xpose.msra.mxu0 0.0
        %2254 = vmatprep.subr.mxu0 0.0
        %2255 = vmatpush1.xpose.msra.mxu0 0.0
        %2256 = vmatprep.subr.mxu0 0.0
        %2257 = vmatpush1.xpose.msra.mxu0 0.0
        %2258 = vmatprep.subr.mxu0 0.0
        %2259 = vmatpush1.xpose.msra.mxu0 0.0
        %2260 = vmatprep.subr.mxu0 0.0
        %2261 = vmatpush1.xpose.msra.mxu0 0.0
        %2262 = vmatprep.subr.mxu0 0.0
        %2263 = vmatpush1.xpose.msra.mxu0 0.0
        %2264 = vmatprep.subr.mxu0 0.0
        %2265 = vmatpush1.xpose.msra.mxu0 0.0
        %2266 = vmatprep.subr.mxu0 0.0
        %2267 = vmatpush1.xpose.msra.mxu0 0.0
        %2268 = vmatprep.subr.mxu0 0.0
        %2269 = vmatpush1.xpose.msra.mxu0 0.0
        %2270 = vmatprep.subr.mxu0 0.0
        %2271 = vmatpush1.xpose.msra.mxu0 0.0
        %2272 = vmatprep.subr.mxu0 0.0
        %2273 = vmatpush1.xpose.msra.mxu0 0.0
        %2274 = vmatprep.subr.mxu0 0.0
        %2275 = vmatpush1.xpose.msra.mxu0 0.0
        %2276 = vmatprep.subr.mxu0 0.0
        %2277 = vmatpush1.xpose.msra.mxu0 0.0
        %2278 = vmatprep.subr.mxu0 0.0
        %2279 = vmatpush1.xpose.msra.mxu0 0.0
        %2280 = vmatprep.subr.mxu0 0.0
        %2281 = vmatpush1.xpose.msra.mxu0 0.0
        %2282 = vmatprep.subr.mxu0 0.0
        %2283 = vmatpush1.xpose.msra.mxu0 0.0
        %2284 = vmatprep.subr.mxu0 0.0
        %2285 = vmatpush1.xpose.msra.mxu0 0.0
        %2286 = vmatprep.subr.mxu0 0.0
        %2287 = vmatpush1.xpose.msra.mxu0 0.0
        %2288 = vmatprep.subr.mxu0 0.0
        %2289 = vmatpush1.xpose.msra.mxu0 0.0
        %2290 = vmatprep.subr.mxu0 0.0
        %2291 = vmatpush1.xpose.msra.mxu0 0.0
        %2292 = vmatprep.subr.mxu0 0.0
        %2293 = vmatpush1.xpose.msra.mxu0 0.0
        %2294 = vmatprep.subr.mxu0 0.0
        %2295 = vmatpush1.xpose.msra.mxu0 0.0
        %2296 = vmatprep.subr.mxu0 0.0
        %2297 = vmatpush1.xpose.msra.mxu0 0.0
        %2298 = vmatprep.subr.mxu0 0.0
        %2299 = vmatpush1.xpose.msra.mxu0 0.0
        %2300 = vmatprep.subr.mxu0 0.0
        %2301 = vmatpush1.xpose.msra.mxu0 0.0
        %2302 = vmatprep.subr.mxu0 0.0
        %2303 = vmatpush1.xpose.msra.mxu0 0.0
        %2304 = vmatprep.mubr.f32.mxu0 0.0
        %2305 = vmatmul.mubr.f32.gmra.mrb[0].mxu0 %v2235
        %v2306 = vpop.f32.mrb[0].mxu0
        %v2307 = vadd.f32 0.0, %v2306
        %v2308 = vpop.f32.mrb[0].mxu0
        %2309 = vdwg.mxu0
        %v2310 = vld [vmem:[%s6] sm:$0xff]
        %vm2311 = vcmp.eq.f32.partialorder %v2310, 0.0
        %v2312 = vsel %vm2311, %v1775, %v2310
        %v2313 = vsel %vm2311, %v1851, %v2310
        %v2314 = vsel %vm2311, %v1927, %v2310
        %v2315 = vsel %vm2311, %v2003, %v2310
        %v2316 = vsel %vm2311, %v2079, %v2310
        %v2317 = vsel %vm2311, %v2155, %v2310
        %v2318 = vsel %vm2311, %v2231, %v2310
        %v2319 = vsel %vm2311, %v2307, %v2310
        %vm2320 = vcmask 64512
        %v2321 = vsel %vm2320, %v2312, -inf
        %2322 = vmax.xlane.f32.xlu0 %v2321
        %v2323 = vpop.xlane.xlu0 %2322
        %v2324 = vsel %vm2320, %v2313, -inf
        %2325 = vmax.xlane.f32.xlu0 %v2324
        %v2326 = vpop.xlane.xlu0 %2325
        %v2327 = vsel %vm2320, %v2314, -inf
        %2328 = vmax.xlane.f32.xlu0 %v2327
        %v2329 = vpop.xlane.xlu0 %2328
        %v2330 = vsel %vm2320, %v2315, -inf
        %2331 = vmax.xlane.f32.xlu0 %v2330
        %v2332 = vpop.xlane.xlu0 %2331
        %v2333 = vsel %vm2320, %v2316, -inf
        %2334 = vmax.xlane.f32.xlu0 %v2333
        %v2335 = vpop.xlane.xlu0 %2334
        %v2336 = vsel %vm2320, %v2317, -inf
        %2337 = vmax.xlane.f32.xlu0 %v2336
        %v2338 = vpop.xlane.xlu0 %2337
        %v2339 = vsel %vm2320, %v2318, -inf
        %2340 = vmax.xlane.f32.xlu0 %v2339
        %v2341 = vpop.xlane.xlu0 %2340
        %v2342 = vsel %vm2320, %v2319, -inf
        %2343 = vmax.xlane.f32.xlu0 %v2342
        %v2344 = vpop.xlane.xlu0 %2343
        %v2345 = vsub.f32 %v2312, %v2323
        %v2346 = vsub.f32 %v2313, %v2326
        %v2347 = vsub.f32 %v2314, %v2329
        %v2348 = vsub.f32 %v2315, %v2332
        %v2349 = vsub.f32 %v2316, %v2335
        %v2350 = vsub.f32 %v2317, %v2338
        %v2351 = vsub.f32 %v2318, %v2341
        %v2352 = vsub.f32 %v2319, %v2344
        %v2353 = vmul.f32 %v2345, 1.442695
        %v2354 = vpow.pop %v2353
        %v2355 = vmul.f32 %v2346, 1.442695
        %v2356 = vpow.pop %v2355
        %v2357 = vmul.f32 %v2347, 1.442695
        %v2358 = vpow.pop %v2357
        %v2359 = vmul.f32 %v2348, 1.442695
        %v2360 = vpow.pop %v2359
        %v2361 = vmul.f32 %v2349, 1.442695
        %v2362 = vpow.pop %v2361
        %v2363 = vmul.f32 %v2350, 1.442695
        %v2364 = vpow.pop %v2363
        %v2365 = vmul.f32 %v2351, 1.442695
        %v2366 = vpow.pop %v2365
        %v2367 = vmul.f32 %v2352, 1.442695
        %v2368 = vpow.pop %v2367
        %v2369 = vsel %vm2320, %v2354, 0.0
        %2370 = vadd.xlane.f32.xlu0 %v2369
        %v2371 = vpop.xlane.xlu0 %2370
        %v2372 = vsel %vm2320, %v2356, 0.0
        %2373 = vadd.xlane.f32.xlu0 %v2372
        %v2374 = vpop.xlane.xlu0 %2373
        %v2375 = vsel %vm2320, %v2358, 0.0
        %2376 = vadd.xlane.f32.xlu0 %v2375
        %v2377 = vpop.xlane.xlu0 %2376
        %v2378 = vsel %vm2320, %v2360, 0.0
        %2379 = vadd.xlane.f32.xlu0 %v2378
        %v2380 = vpop.xlane.xlu0 %2379
        %v2381 = vsel %vm2320, %v2362, 0.0
        %2382 = vadd.xlane.f32.xlu0 %v2381
        %v2383 = vpop.xlane.xlu0 %2382
        %v2384 = vsel %vm2320, %v2364, 0.0
        %2385 = vadd.xlane.f32.xlu0 %v2384
        %v2386 = vpop.xlane.xlu0 %2385
        %v2387 = vsel %vm2320, %v2366, 0.0
        %2388 = vadd.xlane.f32.xlu0 %v2387
        %v2389 = vpop.xlane.xlu0 %2388
        %v2390 = vsel %vm2320, %v2368, 0.0
        %2391 = vadd.xlane.f32.xlu0 %v2390
        %v2392 = vpop.xlane.xlu0 %2391
        %v2393 = vrcp.pop %v2371
        %v2394 = vrcp.pop %v2374
        %v2395 = vrcp.pop %v2377
        %v2396 = vrcp.pop %v2380
        %v2397 = vrcp.pop %v2383
        %v2398 = vrcp.pop %v2386
        %v2399 = vrcp.pop %v2389
        %v2400 = vrcp.pop %v2392
        %v2401 = vmul.f32 %v2354, %v2393
        %v2402 = vmul.f32 %v2356, %v2394
        %v2403 = vmul.f32 %v2358, %v2395
        %v2404 = vmul.f32 %v2360, %v2396
        %v2405 = vmul.f32 %v2362, %v2397
        %v2406 = vmul.f32 %v2364, %v2398
        %v2407 = vmul.f32 %v2366, %v2399
        %v2408 = vmul.f32 %v2368, %v2400
        %v2410 = vsel %vm2320, %v2401, 0
        %2412 = vmatprep.subr.mxu0 0.0
        %2413 = vmatpush1.msra.mxu0 %v1333
        %2414 = vmatprep.subr.mxu0 0.0
        %2415 = vmatpush1.msra.mxu0 0.0
        %2416 = vmatprep.subr.mxu0 0.0
        %2417 = vmatpush1.msra.mxu0 0.0
        %2418 = vmatprep.subr.mxu0 0.0
        %2419 = vmatpush1.msra.mxu0 0.0
        %2420 = vmatprep.subr.mxu0 0.0
        %2421 = vmatpush1.msra.mxu0 0.0
        %2422 = vmatprep.subr.mxu0 0.0
        %2423 = vmatpush1.msra.mxu0 0.0
        %2424 = vmatprep.subr.mxu0 0.0
        %2425 = vmatpush1.msra.mxu0 0.0
        %2426 = vmatprep.subr.mxu0 0.0
        %2427 = vmatpush1.msra.mxu0 0.0
        %2428 = vmatprep.subr.mxu0 0.0
        %2429 = vmatpush1.msra.mxu0 0.0
        %2430 = vmatprep.subr.mxu0 0.0
        %2431 = vmatpush1.msra.mxu0 0.0
        %2432 = vmatprep.subr.mxu0 0.0
        %2433 = vmatpush1.msra.mxu0 0.0
        %2434 = vmatprep.subr.mxu0 0.0
        %2435 = vmatpush1.msra.mxu0 0.0
        %2436 = vmatprep.subr.mxu0 0.0
        %2437 = vmatpush1.msra.mxu0 0.0
        %2438 = vmatprep.subr.mxu0 0.0
        %2439 = vmatpush1.msra.mxu0 0.0
        %2440 = vmatprep.subr.mxu0 0.0
        %2441 = vmatpush1.msra.mxu0 0.0
        %2442 = vmatprep.subr.mxu0 0.0
        %2443 = vmatpush1.msra.mxu0 0.0
        %2444 = vmatprep.subr.mxu0 0.0
        %2445 = vmatpush1.msra.mxu0 0.0
        %2446 = vmatprep.subr.mxu0 0.0
        %2447 = vmatpush1.msra.mxu0 0.0
        %2448 = vmatprep.subr.mxu0 0.0
        %2449 = vmatpush1.msra.mxu0 0.0
        %2450 = vmatprep.subr.mxu0 0.0
        %2451 = vmatpush1.msra.mxu0 0.0
        %2452 = vmatprep.subr.mxu0 0.0
        %2453 = vmatpush1.msra.mxu0 0.0
        %2454 = vmatprep.subr.mxu0 0.0
        %2455 = vmatpush1.msra.mxu0 0.0
        %2456 = vmatprep.subr.mxu0 0.0
        %2457 = vmatpush1.msra.mxu0 0.0
        %2458 = vmatprep.subr.mxu0 0.0
        %2459 = vmatpush1.msra.mxu0 0.0
        %2460 = vmatprep.subr.mxu0 0.0
        %2461 = vmatpush1.msra.mxu0 0.0
        %2462 = vmatprep.subr.mxu0 0.0
        %2463 = vmatpush1.msra.mxu0 0.0
        %2464 = vmatprep.subr.mxu0 0.0
        %2465 = vmatpush1.msra.mxu0 0.0
        %2466 = vmatprep.subr.mxu0 0.0
        %2467 = vmatpush1.msra.mxu0 0.0
        %2468 = vmatprep.subr.mxu0 0.0
        %2469 = vmatpush1.msra.mxu0 0.0
        %2470 = vmatprep.subr.mxu0 0.0
        %2471 = vmatpush1.msra.mxu0 0.0
        %2472 = vmatprep.subr.mxu0 0.0
        %2473 = vmatpush1.msra.mxu0 0.0
        %2474 = vmatprep.subr.mxu0 0.0
        %2475 = vmatpush1.msra.mxu0 0.0
        %2476 = vmatprep.mubr.f32.mxu0 0.0
        %2477 = vmatmul.mubr.f32.gmra.mrb[0].mxu0 %v2410
        %v2478 = vpop.f32.mrb[0].mxu0
        %v2479 = vadd.f32 0.0, %v2478
        %v2480 = vpop.f32.mrb[0].mxu0
        %2481 = vdwg.mxu0
        %v2483 = vsel %vm2320, %v2402, 0
        %2485 = vmatprep.subr.mxu0 0.0
        %2486 = vmatpush1.msra.mxu0 %v1385
        %2487 = vmatprep.subr.mxu0 0.0
        %2488 = vmatpush1.msra.mxu0 0.0
        %2489 = vmatprep.subr.mxu0 0.0
        %2490 = vmatpush1.msra.mxu0 0.0
        %2491 = vmatprep.subr.mxu0 0.0
        %2492 = vmatpush1.msra.mxu0 0.0
        %2493 = vmatprep.subr.mxu0 0.0
        %2494 = vmatpush1.msra.mxu0 0.0
        %2495 = vmatprep.subr.mxu0 0.0
        %2496 = vmatpush1.msra.mxu0 0.0
        %2497 = vmatprep.subr.mxu0 0.0
        %2498 = vmatpush1.msra.mxu0 0.0
        %2499 = vmatprep.subr.mxu0 0.0
        %2500 = vmatpush1.msra.mxu0 0.0
        %2501 = vmatprep.subr.mxu0 0.0
        %2502 = vmatpush1.msra.mxu0 0.0
        %2503 = vmatprep.subr.mxu0 0.0
        %2504 = vmatpush1.msra.mxu0 0.0
        %2505 = vmatprep.subr.mxu0 0.0
        %2506 = vmatpush1.msra.mxu0 0.0
        %2507 = vmatprep.subr.mxu0 0.0
        %2508 = vmatpush1.msra.mxu0 0.0
        %2509 = vmatprep.subr.mxu0 0.0
        %2510 = vmatpush1.msra.mxu0 0.0
        %2511 = vmatprep.subr.mxu0 0.0
        %2512 = vmatpush1.msra.mxu0 0.0
        %2513 = vmatprep.subr.mxu0 0.0
        %2514 = vmatpush1.msra.mxu0 0.0
        %2515 = vmatprep.subr.mxu0 0.0
        %2516 = vmatpush1.msra.mxu0 0.0
        %2517 = vmatprep.subr.mxu0 0.0
        %2518 = vmatpush1.msra.mxu0 0.0
        %2519 = vmatprep.subr.mxu0 0.0
        %2520 = vmatpush1.msra.mxu0 0.0
        %2521 = vmatprep.subr.mxu0 0.0
        %2522 = vmatpush1.msra.mxu0 0.0
        %2523 = vmatprep.subr.mxu0 0.0
        %2524 = vmatpush1.msra.mxu0 0.0
        %2525 = vmatprep.subr.mxu0 0.0
        %2526 = vmatpush1.msra.mxu0 0.0
        %2527 = vmatprep.subr.mxu0 0.0
        %2528 = vmatpush1.msra.mxu0 0.0
        %2529 = vmatprep.subr.mxu0 0.0
        %2530 = vmatpush1.msra.mxu0 0.0
        %2531 = vmatprep.subr.mxu0 0.0
        %2532 = vmatpush1.msra.mxu0 0.0
        %2533 = vmatprep.subr.mxu0 0.0
        %2534 = vmatpush1.msra.mxu0 0.0
        %2535 = vmatprep.subr.mxu0 0.0
        %2536 = vmatpush1.msra.mxu0 0.0
        %2537 = vmatprep.subr.mxu0 0.0
        %2538 = vmatpush1.msra.mxu0 0.0
        %2539 = vmatprep.subr.mxu0 0.0
        %2540 = vmatpush1.msra.mxu0 0.0
        %2541 = vmatprep.subr.mxu0 0.0
        %2542 = vmatpush1.msra.mxu0 0.0
        %2543 = vmatprep.subr.mxu0 0.0
        %2544 = vmatpush1.msra.mxu0 0.0
        %2545 = vmatprep.subr.mxu0 0.0
        %2546 = vmatpush1.msra.mxu0 0.0
        %2547 = vmatprep.subr.mxu0 0.0
        %2548 = vmatpush1.msra.mxu0 0.0
        %2549 = vmatprep.mubr.f32.mxu0 0.0
        %2550 = vmatmul.mubr.f32.gmra.mrb[0].mxu0 %v2483
        %v2551 = vpop.f32.mrb[0].mxu0
        %v2552 = vadd.f32 0.0, %v2551
        %v2553 = vpop.f32.mrb[0].mxu0
        %2554 = vdwg.mxu0
        %v2556 = vsel %vm2320, %v2403, 0
        %2558 = vmatprep.subr.mxu0 0.0
        %2559 = vmatpush1.msra.mxu0 %v1437
        %2560 = vmatprep.subr.mxu0 0.0
        %2561 = vmatpush1.msra.mxu0 0.0
        %2562 = vmatprep.subr.mxu0 0.0
        %2563 = vmatpush1.msra.mxu0 0.0
        %2564 = vmatprep.subr.mxu0 0.0
        %2565 = vmatpush1.msra.mxu0 0.0
        %2566 = vmatprep.subr.mxu0 0.0
        %2567 = vmatpush1.msra.mxu0 0.0
        %2568 = vmatprep.subr.mxu0 0.0
        %2569 = vmatpush1.msra.mxu0 0.0
        %2570 = vmatprep.subr.mxu0 0.0
        %2571 = vmatpush1.msra.mxu0 0.0
        %2572 = vmatprep.subr.mxu0 0.0
        %2573 = vmatpush1.msra.mxu0 0.0
        %2574 = vmatprep.subr.mxu0 0.0
        %2575 = vmatpush1.msra.mxu0 0.0
        %2576 = vmatprep.subr.mxu0 0.0
        %2577 = vmatpush1.msra.mxu0 0.0
        %2578 = vmatprep.subr.mxu0 0.0
        %2579 = vmatpush1.msra.mxu0 0.0
        %2580 = vmatprep.subr.mxu0 0.0
        %2581 = vmatpush1.msra.mxu0 0.0
        %2582 = vmatprep.subr.mxu0 0.0
        %2583 = vmatpush1.msra.mxu0 0.0
        %2584 = vmatprep.subr.mxu0 0.0
        %2585 = vmatpush1.msra.mxu0 0.0
        %2586 = vmatprep.subr.mxu0 0.0
        %2587 = vmatpush1.msra.mxu0 0.0
        %2588 = vmatprep.subr.mxu0 0.0
        %2589 = vmatpush1.msra.mxu0 0.0
        %2590 = vmatprep.subr.mxu0 0.0
        %2591 = vmatpush1.msra.mxu0 0.0
        %2592 = vmatprep.subr.mxu0 0.0
        %2593 = vmatpush1.msra.mxu0 0.0
        %2594 = vmatprep.subr.mxu0 0.0
        %2595 = vmatpush1.msra.mxu0 0.0
        %2596 = vmatprep.subr.mxu0 0.0
        %2597 = vmatpush1.msra.mxu0 0.0
        %2598 = vmatprep.subr.mxu0 0.0
        %2599 = vmatpush1.msra.mxu0 0.0
        %2600 = vmatprep.subr.mxu0 0.0
        %2601 = vmatpush1.msra.mxu0 0.0
        %2602 = vmatprep.subr.mxu0 0.0
        %2603 = vmatpush1.msra.mxu0 0.0
        %2604 = vmatprep.subr.mxu0 0.0
        %2605 = vmatpush1.msra.mxu0 0.0
        %2606 = vmatprep.subr.mxu0 0.0
        %2607 = vmatpush1.msra.mxu0 0.0
        %2608 = vmatprep.subr.mxu0 0.0
        %2609 = vmatpush1.msra.mxu0 0.0
        %2610 = vmatprep.subr.mxu0 0.0
        %2611 = vmatpush1.msra.mxu0 0.0
        %2612 = vmatprep.subr.mxu0 0.0
        %2613 = vmatpush1.msra.mxu0 0.0
        %2614 = vmatprep.subr.mxu0 0.0
        %2615 = vmatpush1.msra.mxu0 0.0
        %2616 = vmatprep.subr.mxu0 0.0
        %2617 = vmatpush1.msra.mxu0 0.0
        %2618 = vmatprep.subr.mxu0 0.0
        %2619 = vmatpush1.msra.mxu0 0.0
        %2620 = vmatprep.subr.mxu0 0.0
        %2621 = vmatpush1.msra.mxu0 0.0
        %2622 = vmatprep.mubr.f32.mxu0 0.0
        %2623 = vmatmul.mubr.f32.gmra.mrb[0].mxu0 %v2556
        %v2624 = vpop.f32.mrb[0].mxu0
        %v2625 = vadd.f32 0.0, %v2624
        %v2626 = vpop.f32.mrb[0].mxu0
        %2627 = vdwg.mxu0
        %v2629 = vsel %vm2320, %v2404, 0
        %2631 = vmatprep.subr.mxu0 0.0
        %2632 = vmatpush1.msra.mxu0 %v1489
        %2633 = vmatprep.subr.mxu0 0.0
        %2634 = vmatpush1.msra.mxu0 0.0
        %2635 = vmatprep.subr.mxu0 0.0
        %2636 = vmatpush1.msra.mxu0 0.0
        %2637 = vmatprep.subr.mxu0 0.0
        %2638 = vmatpush1.msra.mxu0 0.0
        %2639 = vmatprep.subr.mxu0 0.0
        %2640 = vmatpush1.msra.mxu0 0.0
        %2641 = vmatprep.subr.mxu0 0.0
        %2642 = vmatpush1.msra.mxu0 0.0
        %2643 = vmatprep.subr.mxu0 0.0
        %2644 = vmatpush1.msra.mxu0 0.0
        %2645 = vmatprep.subr.mxu0 0.0
        %2646 = vmatpush1.msra.mxu0 0.0
        %2647 = vmatprep.subr.mxu0 0.0
        %2648 = vmatpush1.msra.mxu0 0.0
        %2649 = vmatprep.subr.mxu0 0.0
        %2650 = vmatpush1.msra.mxu0 0.0
        %2651 = vmatprep.subr.mxu0 0.0
        %2652 = vmatpush1.msra.mxu0 0.0
        %2653 = vmatprep.subr.mxu0 0.0
        %2654 = vmatpush1.msra.mxu0 0.0
        %2655 = vmatprep.subr.mxu0 0.0
        %2656 = vmatpush1.msra.mxu0 0.0
        %2657 = vmatprep.subr.mxu0 0.0
        %2658 = vmatpush1.msra.mxu0 0.0
        %2659 = vmatprep.subr.mxu0 0.0
        %2660 = vmatpush1.msra.mxu0 0.0
        %2661 = vmatprep.subr.mxu0 0.0
        %2662 = vmatpush1.msra.mxu0 0.0
        %2663 = vmatprep.subr.mxu0 0.0
        %2664 = vmatpush1.msra.mxu0 0.0
        %2665 = vmatprep.subr.mxu0 0.0
        %2666 = vmatpush1.msra.mxu0 0.0
        %2667 = vmatprep.subr.mxu0 0.0
        %2668 = vmatpush1.msra.mxu0 0.0
        %2669 = vmatprep.subr.mxu0 0.0
        %2670 = vmatpush1.msra.mxu0 0.0
        %2671 = vmatprep.subr.mxu0 0.0
        %2672 = vmatpush1.msra.mxu0 0.0
        %2673 = vmatprep.subr.mxu0 0.0
        %2674 = vmatpush1.msra.mxu0 0.0
        %2675 = vmatprep.subr.mxu0 0.0
        %2676 = vmatpush1.msra.mxu0 0.0
        %2677 = vmatprep.subr.mxu0 0.0
        %2678 = vmatpush1.msra.mxu0 0.0
        %2679 = vmatprep.subr.mxu0 0.0
        %2680 = vmatpush1.msra.mxu0 0.0
        %2681 = vmatprep.subr.mxu0 0.0
        %2682 = vmatpush1.msra.mxu0 0.0
        %2683 = vmatprep.subr.mxu0 0.0
        %2684 = vmatpush1.msra.mxu0 0.0
        %2685 = vmatprep.subr.mxu0 0.0
        %2686 = vmatpush1.msra.mxu0 0.0
        %2687 = vmatprep.subr.mxu0 0.0
        %2688 = vmatpush1.msra.mxu0 0.0
        %2689 = vmatprep.subr.mxu0 0.0
        %2690 = vmatpush1.msra.mxu0 0.0
        %2691 = vmatprep.subr.mxu0 0.0
        %2692 = vmatpush1.msra.mxu0 0.0
        %2693 = vmatprep.subr.mxu0 0.0
        %2694 = vmatpush1.msra.mxu0 0.0
        %2695 = vmatprep.mubr.f32.mxu0 0.0
        %2696 = vmatmul.mubr.f32.gmra.mrb[0].mxu0 %v2629
        %v2697 = vpop.f32.mrb[0].mxu0
        %v2698 = vadd.f32 0.0, %v2697
        %v2699 = vpop.f32.mrb[0].mxu0
        %2700 = vdwg.mxu0
        %v2702 = vsel %vm2320, %v2405, 0
        %2704 = vmatprep.subr.mxu0 0.0
        %2705 = vmatpush1.msra.mxu0 %v1541
        %2706 = vmatprep.subr.mxu0 0.0
        %2707 = vmatpush1.msra.mxu0 0.0
        %2708 = vmatprep.subr.mxu0 0.0
        %2709 = vmatpush1.msra.mxu0 0.0
        %2710 = vmatprep.subr.mxu0 0.0
        %2711 = vmatpush1.msra.mxu0 0.0
        %2712 = vmatprep.subr.mxu0 0.0
        %2713 = vmatpush1.msra.mxu0 0.0
        %2714 = vmatprep.subr.mxu0 0.0
        %2715 = vmatpush1.msra.mxu0 0.0
        %2716 = vmatprep.subr.mxu0 0.0
        %2717 = vmatpush1.msra.mxu0 0.0
        %2718 = vmatprep.subr.mxu0 0.0
        %2719 = vmatpush1.msra.mxu0 0.0
        %2720 = vmatprep.subr.mxu0 0.0
        %2721 = vmatpush1.msra.mxu0 0.0
        %2722 = vmatprep.subr.mxu0 0.0
        %2723 = vmatpush1.msra.mxu0 0.0
        %2724 = vmatprep.subr.mxu0 0.0
        %2725 = vmatpush1.msra.mxu0 0.0
        %2726 = vmatprep.subr.mxu0 0.0
        %2727 = vmatpush1.msra.mxu0 0.0
        %2728 = vmatprep.subr.mxu0 0.0
        %2729 = vmatpush1.msra.mxu0 0.0
        %2730 = vmatprep.subr.mxu0 0.0
        %2731 = vmatpush1.msra.mxu0 0.0
        %2732 = vmatprep.subr.mxu0 0.0
        %2733 = vmatpush1.msra.mxu0 0.0
        %2734 = vmatprep.subr.mxu0 0.0
        %2735 = vmatpush1.msra.mxu0 0.0
        %2736 = vmatprep.subr.mxu0 0.0
        %2737 = vmatpush1.msra.mxu0 0.0
        %2738 = vmatprep.subr.mxu0 0.0
        %2739 = vmatpush1.msra.mxu0 0.0
        %2740 = vmatprep.subr.mxu0 0.0
        %2741 = vmatpush1.msra.mxu0 0.0
        %2742 = vmatprep.subr.mxu0 0.0
        %2743 = vmatpush1.msra.mxu0 0.0
        %2744 = vmatprep.subr.mxu0 0.0
        %2745 = vmatpush1.msra.mxu0 0.0
        %2746 = vmatprep.subr.mxu0 0.0
        %2747 = vmatpush1.msra.mxu0 0.0
        %2748 = vmatprep.subr.mxu0 0.0
        %2749 = vmatpush1.msra.mxu0 0.0
        %2750 = vmatprep.subr.mxu0 0.0
        %2751 = vmatpush1.msra.mxu0 0.0
        %2752 = vmatprep.subr.mxu0 0.0
        %2753 = vmatpush1.msra.mxu0 0.0
        %2754 = vmatprep.subr.mxu0 0.0
        %2755 = vmatpush1.msra.mxu0 0.0
        %2756 = vmatprep.subr.mxu0 0.0
        %2757 = vmatpush1.msra.mxu0 0.0
        %2758 = vmatprep.subr.mxu0 0.0
        %2759 = vmatpush1.msra.mxu0 0.0
        %2760 = vmatprep.subr.mxu0 0.0
        %2761 = vmatpush1.msra.mxu0 0.0
        %2762 = vmatprep.subr.mxu0 0.0
        %2763 = vmatpush1.msra.mxu0 0.0
        %2764 = vmatprep.subr.mxu0 0.0
        %2765 = vmatpush1.msra.mxu0 0.0
        %2766 = vmatprep.subr.mxu0 0.0
        %2767 = vmatpush1.msra.mxu0 0.0
        %2768 = vmatprep.mubr.f32.mxu0 0.0
        %2769 = vmatmul.mubr.f32.gmra.mrb[0].mxu0 %v2702
        %v2770 = vpop.f32.mrb[0].mxu0
        %v2771 = vadd.f32 0.0, %v2770
        %v2772 = vpop.f32.mrb[0].mxu0
        %2773 = vdwg.mxu0
        %v2775 = vsel %vm2320, %v2406, 0
        %2777 = vmatprep.subr.mxu0 0.0
        %2778 = vmatpush1.msra.mxu0 %v1593
        %2779 = vmatprep.subr.mxu0 0.0
        %2780 = vmatpush1.msra.mxu0 0.0
        %2781 = vmatprep.subr.mxu0 0.0
        %2782 = vmatpush1.msra.mxu0 0.0
        %2783 = vmatprep.subr.mxu0 0.0
        %2784 = vmatpush1.msra.mxu0 0.0
        %2785 = vmatprep.subr.mxu0 0.0
        %2786 = vmatpush1.msra.mxu0 0.0
        %2787 = vmatprep.subr.mxu0 0.0
        %2788 = vmatpush1.msra.mxu0 0.0
        %2789 = vmatprep.subr.mxu0 0.0
        %2790 = vmatpush1.msra.mxu0 0.0
        %2791 = vmatprep.subr.mxu0 0.0
        %2792 = vmatpush1.msra.mxu0 0.0
        %2793 = vmatprep.subr.mxu0 0.0
        %2794 = vmatpush1.msra.mxu0 0.0
        %2795 = vmatprep.subr.mxu0 0.0
        %2796 = vmatpush1.msra.mxu0 0.0
        %2797 = vmatprep.subr.mxu0 0.0
        %2798 = vmatpush1.msra.mxu0 0.0
        %2799 = vmatprep.subr.mxu0 0.0
        %2800 = vmatpush1.msra.mxu0 0.0
        %2801 = vmatprep.subr.mxu0 0.0
        %2802 = vmatpush1.msra.mxu0 0.0
        %2803 = vmatprep.subr.mxu0 0.0
        %2804 = vmatpush1.msra.mxu0 0.0
        %2805 = vmatprep.subr.mxu0 0.0
        %2806 = vmatpush1.msra.mxu0 0.0
        %2807 = vmatprep.subr.mxu0 0.0
        %2808 = vmatpush1.msra.mxu0 0.0
        %2809 = vmatprep.subr.mxu0 0.0
        %2810 = vmatpush1.msra.mxu0 0.0
        %2811 = vmatprep.subr.mxu0 0.0
        %2812 = vmatpush1.msra.mxu0 0.0
        %2813 = vmatprep.subr.mxu0 0.0
        %2814 = vmatpush1.msra.mxu0 0.0
        %2815 = vmatprep.subr.mxu0 0.0
        %2816 = vmatpush1.msra.mxu0 0.0
        %2817 = vmatprep.subr.mxu0 0.0
        %2818 = vmatpush1.msra.mxu0 0.0
        %2819 = vmatprep.subr.mxu0 0.0
        %2820 = vmatpush1.msra.mxu0 0.0
        %2821 = vmatprep.subr.mxu0 0.0
        %2822 = vmatpush1.msra.mxu0 0.0
        %2823 = vmatprep.subr.mxu0 0.0
        %2824 = vmatpush1.msra.mxu0 0.0
        %2825 = vmatprep.subr.mxu0 0.0
        %2826 = vmatpush1.msra.mxu0 0.0
        %2827 = vmatprep.subr.mxu0 0.0
        %2828 = vmatpush1.msra.mxu0 0.0
        %2829 = vmatprep.subr.mxu0 0.0
        %2830 = vmatpush1.msra.mxu0 0.0
        %2831 = vmatprep.subr.mxu0 0.0
        %2832 = vmatpush1.msra.mxu0 0.0
        %2833 = vmatprep.subr.mxu0 0.0
        %2834 = vmatpush1.msra.mxu0 0.0
        %2835 = vmatprep.subr.mxu0 0.0
        %2836 = vmatpush1.msra.mxu0 0.0
        %2837 = vmatprep.subr.mxu0 0.0
        %2838 = vmatpush1.msra.mxu0 0.0
        %2839 = vmatprep.subr.mxu0 0.0
        %2840 = vmatpush1.msra.mxu0 0.0
        %2841 = vmatprep.mubr.f32.mxu0 0.0
        %2842 = vmatmul.mubr.f32.gmra.mrb[0].mxu0 %v2775
        %v2843 = vpop.f32.mrb[0].mxu0
        %v2844 = vadd.f32 0.0, %v2843
        %v2845 = vpop.f32.mrb[0].mxu0
        %2846 = vdwg.mxu0
        %v2848 = vsel %vm2320, %v2407, 0
        %2850 = vmatprep.subr.mxu0 0.0
        %2851 = vmatpush1.msra.mxu0 %v1645
        %2852 = vmatprep.subr.mxu0 0.0
        %2853 = vmatpush1.msra.mxu0 0.0
        %2854 = vmatprep.subr.mxu0 0.0
        %2855 = vmatpush1.msra.mxu0 0.0
        %2856 = vmatprep.subr.mxu0 0.0
        %2857 = vmatpush1.msra.mxu0 0.0
        %2858 = vmatprep.subr.mxu0 0.0
        %2859 = vmatpush1.msra.mxu0 0.0
        %2860 = vmatprep.subr.mxu0 0.0
        %2861 = vmatpush1.msra.mxu0 0.0
        %2862 = vmatprep.subr.mxu0 0.0
        %2863 = vmatpush1.msra.mxu0 0.0
        %2864 = vmatprep.subr.mxu0 0.0
        %2865 = vmatpush1.msra.mxu0 0.0
        %2866 = vmatprep.subr.mxu0 0.0
        %2867 = vmatpush1.msra.mxu0 0.0
        %2868 = vmatprep.subr.mxu0 0.0
        %2869 = vmatpush1.msra.mxu0 0.0
        %2870 = vmatprep.subr.mxu0 0.0
        %2871 = vmatpush1.msra.mxu0 0.0
        %2872 = vmatprep.subr.mxu0 0.0
        %2873 = vmatpush1.msra.mxu0 0.0
        %2874 = vmatprep.subr.mxu0 0.0
        %2875 = vmatpush1.msra.mxu0 0.0
        %2876 = vmatprep.subr.mxu0 0.0
        %2877 = vmatpush1.msra.mxu0 0.0
        %2878 = vmatprep.subr.mxu0 0.0
        %2879 = vmatpush1.msra.mxu0 0.0
        %2880 = vmatprep.subr.mxu0 0.0
        %2881 = vmatpush1.msra.mxu0 0.0
        %2882 = vmatprep.subr.mxu0 0.0
        %2883 = vmatpush1.msra.mxu0 0.0
        %2884 = vmatprep.subr.mxu0 0.0
        %2885 = vmatpush1.msra.mxu0 0.0
        %2886 = vmatprep.subr.mxu0 0.0
        %2887 = vmatpush1.msra.mxu0 0.0
        %2888 = vmatprep.subr.mxu0 0.0
        %2889 = vmatpush1.msra.mxu0 0.0
        %2890 = vmatprep.subr.mxu0 0.0
        %2891 = vmatpush1.msra.mxu0 0.0
        %2892 = vmatprep.subr.mxu0 0.0
        %2893 = vmatpush1.msra.mxu0 0.0
        %2894 = vmatprep.subr.mxu0 0.0
        %2895 = vmatpush1.msra.mxu0 0.0
        %2896 = vmatprep.subr.mxu0 0.0
        %2897 = vmatpush1.msra.mxu0 0.0
        %2898 = vmatprep.subr.mxu0 0.0
        %2899 = vmatpush1.msra.mxu0 0.0
        %2900 = vmatprep.subr.mxu0 0.0
        %2901 = vmatpush1.msra.mxu0 0.0
        %2902 = vmatprep.subr.mxu0 0.0
        %2903 = vmatpush1.msra.mxu0 0.0
        %2904 = vmatprep.subr.mxu0 0.0
        %2905 = vmatpush1.msra.mxu0 0.0
        %2906 = vmatprep.subr.mxu0 0.0
        %2907 = vmatpush1.msra.mxu0 0.0
        %2908 = vmatprep.subr.mxu0 0.0
        %2909 = vmatpush1.msra.mxu0 0.0
        %2910 = vmatprep.subr.mxu0 0.0
        %2911 = vmatpush1.msra.mxu0 0.0
        %2912 = vmatprep.subr.mxu0 0.0
        %2913 = vmatpush1.msra.mxu0 0.0
        %2914 = vmatprep.mubr.f32.mxu0 0.0
        %2915 = vmatmul.mubr.f32.gmra.mrb[0].mxu0 %v2848
        %v2916 = vpop.f32.mrb[0].mxu0
        %v2917 = vadd.f32 0.0, %v2916
        %v2918 = vpop.f32.mrb[0].mxu0
        %2919 = vdwg.mxu0
        %v2921 = vsel %vm2320, %v2408, 0
        %2923 = vmatprep.subr.mxu0 0.0
        %2924 = vmatpush1.msra.mxu0 %v1697
        %2925 = vmatprep.subr.mxu0 0.0
        %2926 = vmatpush1.msra.mxu0 0.0
        %2927 = vmatprep.subr.mxu0 0.0
        %2928 = vmatpush1.msra.mxu0 0.0
        %2929 = vmatprep.subr.mxu0 0.0
        %2930 = vmatpush1.msra.mxu0 0.0
        %2931 = vmatprep.subr.mxu0 0.0
        %2932 = vmatpush1.msra.mxu0 0.0
        %2933 = vmatprep.subr.mxu0 0.0
        %2934 = vmatpush1.msra.mxu0 0.0
        %2935 = vmatprep.subr.mxu0 0.0
        %2936 = vmatpush1.msra.mxu0 0.0
        %2937 = vmatprep.subr.mxu0 0.0
        %2938 = vmatpush1.msra.mxu0 0.0
        %2939 = vmatprep.subr.mxu0 0.0
        %2940 = vmatpush1.msra.mxu0 0.0
        %2941 = vmatprep.subr.mxu0 0.0
        %2942 = vmatpush1.msra.mxu0 0.0
        %2943 = vmatprep.subr.mxu0 0.0
        %2944 = vmatpush1.msra.mxu0 0.0
        %2945 = vmatprep.subr.mxu0 0.0
        %2946 = vmatpush1.msra.mxu0 0.0
        %2947 = vmatprep.subr.mxu0 0.0
        %2948 = vmatpush1.msra.mxu0 0.0
        %2949 = vmatprep.subr.mxu0 0.0
        %2950 = vmatpush1.msra.mxu0 0.0
        %2951 = vmatprep.subr.mxu0 0.0
        %2952 = vmatpush1.msra.mxu0 0.0
        %2953 = vmatprep.subr.mxu0 0.0
        %2954 = vmatpush1.msra.mxu0 0.0
        %2955 = vmatprep.subr.mxu0 0.0
        %2956 = vmatpush1.msra.mxu0 0.0
        %2957 = vmatprep.subr.mxu0 0.0
        %2958 = vmatpush1.msra.mxu0 0.0
        %2959 = vmatprep.subr.mxu0 0.0
        %2960 = vmatpush1.msra.mxu0 0.0
        %2961 = vmatprep.subr.mxu0 0.0
        %2962 = vmatpush1.msra.mxu0 0.0
        %2963 = vmatprep.subr.mxu0 0.0
        %2964 = vmatpush1.msra.mxu0 0.0
        %2965 = vmatprep.subr.mxu0 0.0
        %2966 = vmatpush1.msra.mxu0 0.0
        %2967 = vmatprep.subr.mxu0 0.0
        %2968 = vmatpush1.msra.mxu0 0.0
        %2969 = vmatprep.subr.mxu0 0.0
        %2970 = vmatpush1.msra.mxu0 0.0
        %2971 = vmatprep.subr.mxu0 0.0
        %2972 = vmatpush1.msra.mxu0 0.0
        %2973 = vmatprep.subr.mxu0 0.0
        %2974 = vmatpush1.msra.mxu0 0.0
        %2975 = vmatprep.subr.mxu0 0.0
        %2976 = vmatpush1.msra.mxu0 0.0
        %2977 = vmatprep.subr.mxu0 0.0
        %2978 = vmatpush1.msra.mxu0 0.0
        %2979 = vmatprep.subr.mxu0 0.0
        %2980 = vmatpush1.msra.mxu0 0.0
        %2981 = vmatprep.subr.mxu0 0.0
        %2982 = vmatpush1.msra.mxu0 0.0
        %2983 = vmatprep.subr.mxu0 0.0
        %2984 = vmatpush1.msra.mxu0 0.0
        %2985 = vmatprep.subr.mxu0 0.0
        %2986 = vmatpush1.msra.mxu0 0.0
        %2987 = vmatprep.mubr.f32.mxu0 0.0
        %2988 = vmatmul.mubr.f32.gmra.mrb[0].mxu0 %v2921
        %v2989 = vpop.f32.mrb[0].mxu0
        %v2990 = vadd.f32 0.0, %v2989
        %v2991 = vpop.f32.mrb[0].mxu0
        %2992 = vdwg.mxu0
        %v2993 = vld [vmem:[#allocation10] sm:$0xff]
        %v2994 = vld [vmem:[#allocation10 + $0x8] sm:$0xff]
        %v2995 = vld [vmem:[#allocation10 + $0x10] sm:$0xff]
        %v2996 = vld [vmem:[#allocation10 + $0x18] sm:$0xff]
        %v2997 = vld [vmem:[#allocation10 + $0x20] sm:$0xff]
        %v2998 = vld [vmem:[#allocation10 + $0x28] sm:$0xff]
        %v2999 = vld [vmem:[#allocation10 + $0x30] sm:$0xff]
        %v3000 = vld [vmem:[#allocation10 + $0x38] sm:$0xff]
        %v3001 = vld [vmem:[#allocation10 + $0x40] sm:$0xff]
        %v3002 = vld [vmem:[#allocation10 + $0x48] sm:$0xff]
        %v3003 = vld [vmem:[#allocation10 + $0x50] sm:$0xff]
        %v3004 = vld [vmem:[#allocation10 + $0x58] sm:$0xff]
        %v3005 = vld [vmem:[#allocation10 + $0x60] sm:$0xff]
        %v3006 = vld [vmem:[#allocation10 + $0x68] sm:$0xff]
        %v3007 = vld [vmem:[#allocation10 + $0x70] sm:$0xff]
        %v3008 = vld [vmem:[#allocation10 + $0x78] sm:$0xff]
        %v3009 = vld [vmem:[#allocation10 + $0x80] sm:$0xff]
        %v3010 = vld [vmem:[#allocation10 + $0x88] sm:$0xff]
        %v3011 = vld [vmem:[#allocation10 + $0x90] sm:$0xff]
        %v3012 = vld [vmem:[#allocation10 + $0x98] sm:$0xff]
        %v3013 = vld [vmem:[#allocation10 + $0xa0] sm:$0xff]
        %v3014 = vld [vmem:[#allocation10 + $0xa8] sm:$0xff]
        %v3015 = vld [vmem:[#allocation10 + $0xb0] sm:$0xff]
        %v3016 = vld [vmem:[#allocation10 + $0xb8] sm:$0xff]
        %v3017 = vld [vmem:[#allocation10 + $0xc0] sm:$0xff]
        %v3018 = vld [vmem:[#allocation10 + $0xc8] sm:$0xff]
        %v3019 = vld [vmem:[#allocation10 + $0xd0] sm:$0xff]
        %v3020 = vld [vmem:[#allocation10 + $0xd8] sm:$0xff]
        %v3021 = vld [vmem:[#allocation10 + $0xe0] sm:$0xff]
        %v3022 = vld [vmem:[#allocation10 + $0xe8] sm:$0xff]
        %v3023 = vld [vmem:[#allocation10 + $0xf0] sm:$0xff]
        %v3024 = vld [vmem:[#allocation10 + $0xf8] sm:$0xff]
        %v3026 = vsel %vm398, %v2479, 0
        %3028 = vmatprep.subr.mxu0 0.0
        %3029 = vmatpush1.msra.mxu0 %v2993
        %3030 = vmatprep.subr.mxu0 0.0
        %3031 = vmatpush1.msra.mxu0 %v2994
        %3032 = vmatprep.subr.mxu0 0.0
        %3033 = vmatpush1.msra.mxu0 %v2995
        %3034 = vmatprep.subr.mxu0 0.0
        %3035 = vmatpush1.msra.mxu0 %v2996
        %3036 = vmatprep.subr.mxu0 0.0
        %3037 = vmatpush1.msra.mxu0 0.0
        %3038 = vmatprep.subr.mxu0 0.0
        %3039 = vmatpush1.msra.mxu0 0.0
        %3040 = vmatprep.subr.mxu0 0.0
        %3041 = vmatpush1.msra.mxu0 0.0
        %3042 = vmatprep.subr.mxu0 0.0
        %3043 = vmatpush1.msra.mxu0 0.0
        %3044 = vmatprep.subr.mxu0 0.0
        %3045 = vmatpush1.msra.mxu0 0.0
        %3046 = vmatprep.subr.mxu0 0.0
        %3047 = vmatpush1.msra.mxu0 0.0
        %3048 = vmatprep.subr.mxu0 0.0
        %3049 = vmatpush1.msra.mxu0 0.0
        %3050 = vmatprep.subr.mxu0 0.0
        %3051 = vmatpush1.msra.mxu0 0.0
        %3052 = vmatprep.subr.mxu0 0.0
        %3053 = vmatpush1.msra.mxu0 0.0
        %3054 = vmatprep.subr.mxu0 0.0
        %3055 = vmatpush1.msra.mxu0 0.0
        %3056 = vmatprep.subr.mxu0 0.0
        %3057 = vmatpush1.msra.mxu0 0.0
        %3058 = vmatprep.subr.mxu0 0.0
        %3059 = vmatpush1.msra.mxu0 0.0
        %3060 = vmatprep.subr.mxu0 0.0
        %3061 = vmatpush1.msra.mxu0 0.0
        %3062 = vmatprep.subr.mxu0 0.0
        %3063 = vmatpush1.msra.mxu0 0.0
        %3064 = vmatprep.subr.mxu0 0.0
        %3065 = vmatpush1.msra.mxu0 0.0
        %3066 = vmatprep.subr.mxu0 0.0
        %3067 = vmatpush1.msra.mxu0 0.0
        %3068 = vmatprep.subr.mxu0 0.0
        %3069 = vmatpush1.msra.mxu0 0.0
        %3070 = vmatprep.subr.mxu0 0.0
        %3071 = vmatpush1.msra.mxu0 0.0
        %3072 = vmatprep.subr.mxu0 0.0
        %3073 = vmatpush1.msra.mxu0 0.0
        %3074 = vmatprep.subr.mxu0 0.0
        %3075 = vmatpush1.msra.mxu0 0.0
        %3076 = vmatprep.subr.mxu0 0.0
        %3077 = vmatpush1.msra.mxu0 0.0
        %3078 = vmatprep.subr.mxu0 0.0
        %3079 = vmatpush1.msra.mxu0 0.0
        %3080 = vmatprep.subr.mxu0 0.0
        %3081 = vmatpush1.msra.mxu0 0.0
        %3082 = vmatprep.subr.mxu0 0.0
        %3083 = vmatpush1.msra.mxu0 0.0
        %3084 = vmatprep.subr.mxu0 0.0
        %3085 = vmatpush1.msra.mxu0 0.0
        %3086 = vmatprep.subr.mxu0 0.0
        %3087 = vmatpush1.msra.mxu0 0.0
        %3088 = vmatprep.subr.mxu0 0.0
        %3089 = vmatpush1.msra.mxu0 0.0
        %3090 = vmatprep.subr.mxu0 0.0
        %3091 = vmatpush1.msra.mxu0 0.0
        %3092 = vmatprep.mubr.f32.mxu0 0.0
        %3093 = vmatmul.mubr.f32.gmra.mrb[0].mxu0 %v3026
        %v3094 = vpop.f32.mrb[0].mxu0
        %v3095 = vadd.f32 0.0, %v3094
        %v3096 = vpop.f32.mrb[0].mxu0
        %3097 = vdwg.mxu0
        %v3099 = vsel %vm398, %v2552, 0
        %3101 = vmatprep.subr.mxu0 0.0
        %3102 = vmatpush1.msra.mxu0 %v2997
        %3103 = vmatprep.subr.mxu0 0.0
        %3104 = vmatpush1.msra.mxu0 %v2998
        %3105 = vmatprep.subr.mxu0 0.0
        %3106 = vmatpush1.msra.mxu0 %v2999
        %3107 = vmatprep.subr.mxu0 0.0
        %3108 = vmatpush1.msra.mxu0 %v3000
        %3109 = vmatprep.subr.mxu0 0.0
        %3110 = vmatpush1.msra.mxu0 0.0
        %3111 = vmatprep.subr.mxu0 0.0
        %3112 = vmatpush1.msra.mxu0 0.0
        %3113 = vmatprep.subr.mxu0 0.0
        %3114 = vmatpush1.msra.mxu0 0.0
        %3115 = vmatprep.subr.mxu0 0.0
        %3116 = vmatpush1.msra.mxu0 0.0
        %3117 = vmatprep.subr.mxu0 0.0
        %3118 = vmatpush1.msra.mxu0 0.0
        %3119 = vmatprep.subr.mxu0 0.0
        %3120 = vmatpush1.msra.mxu0 0.0
        %3121 = vmatprep.subr.mxu0 0.0
        %3122 = vmatpush1.msra.mxu0 0.0
        %3123 = vmatprep.subr.mxu0 0.0
        %3124 = vmatpush1.msra.mxu0 0.0
        %3125 = vmatprep.subr.mxu0 0.0
        %3126 = vmatpush1.msra.mxu0 0.0
        %3127 = vmatprep.subr.mxu0 0.0
        %3128 = vmatpush1.msra.mxu0 0.0
        %3129 = vmatprep.subr.mxu0 0.0
        %3130 = vmatpush1.msra.mxu0 0.0
        %3131 = vmatprep.subr.mxu0 0.0
        %3132 = vmatpush1.msra.mxu0 0.0
        %3133 = vmatprep.subr.mxu0 0.0
        %3134 = vmatpush1.msra.mxu0 0.0
        %3135 = vmatprep.subr.mxu0 0.0
        %3136 = vmatpush1.msra.mxu0 0.0
        %3137 = vmatprep.subr.mxu0 0.0
        %3138 = vmatpush1.msra.mxu0 0.0
        %3139 = vmatprep.subr.mxu0 0.0
        %3140 = vmatpush1.msra.mxu0 0.0
        %3141 = vmatprep.subr.mxu0 0.0
        %3142 = vmatpush1.msra.mxu0 0.0
        %3143 = vmatprep.subr.mxu0 0.0
        %3144 = vmatpush1.msra.mxu0 0.0
        %3145 = vmatprep.subr.mxu0 0.0
        %3146 = vmatpush1.msra.mxu0 0.0
        %3147 = vmatprep.subr.mxu0 0.0
        %3148 = vmatpush1.msra.mxu0 0.0
        %3149 = vmatprep.subr.mxu0 0.0
        %3150 = vmatpush1.msra.mxu0 0.0
        %3151 = vmatprep.subr.mxu0 0.0
        %3152 = vmatpush1.msra.mxu0 0.0
        %3153 = vmatprep.subr.mxu0 0.0
        %3154 = vmatpush1.msra.mxu0 0.0
        %3155 = vmatprep.subr.mxu0 0.0
        %3156 = vmatpush1.msra.mxu0 0.0
        %3157 = vmatprep.subr.mxu0 0.0
        %3158 = vmatpush1.msra.mxu0 0.0
        %3159 = vmatprep.subr.mxu0 0.0
        %3160 = vmatpush1.msra.mxu0 0.0
        %3161 = vmatprep.subr.mxu0 0.0
        %3162 = vmatpush1.msra.mxu0 0.0
        %3163 = vmatprep.subr.mxu0 0.0
        %3164 = vmatpush1.msra.mxu0 0.0
        %3165 = vmatprep.mubr.f32.mxu0 0.0
        %3166 = vmatmul.mubr.f32.gmra.mrb[0].mxu0 %v3099
        %v3167 = vpop.f32.mrb[0].mxu0
        %v3168 = vadd.f32 0.0, %v3167
        %v3169 = vpop.f32.mrb[0].mxu0
        %3170 = vdwg.mxu0
        %v3172 = vsel %vm398, %v2625, 0
        %3174 = vmatprep.subr.mxu0 0.0
        %3175 = vmatpush1.msra.mxu0 %v3001
        %3176 = vmatprep.subr.mxu0 0.0
        %3177 = vmatpush1.msra.mxu0 %v3002
        %3178 = vmatprep.subr.mxu0 0.0
        %3179 = vmatpush1.msra.mxu0 %v3003
        %3180 = vmatprep.subr.mxu0 0.0
        %3181 = vmatpush1.msra.mxu0 %v3004
        %3182 = vmatprep.subr.mxu0 0.0
        %3183 = vmatpush1.msra.mxu0 0.0
        %3184 = vmatprep.subr.mxu0 0.0
        %3185 = vmatpush1.msra.mxu0 0.0
        %3186 = vmatprep.subr.mxu0 0.0
        %3187 = vmatpush1.msra.mxu0 0.0
        %3188 = vmatprep.subr.mxu0 0.0
        %3189 = vmatpush1.msra.mxu0 0.0
        %3190 = vmatprep.subr.mxu0 0.0
        %3191 = vmatpush1.msra.mxu0 0.0
        %3192 = vmatprep.subr.mxu0 0.0
        %3193 = vmatpush1.msra.mxu0 0.0
        %3194 = vmatprep.subr.mxu0 0.0
        %3195 = vmatpush1.msra.mxu0 0.0
        %3196 = vmatprep.subr.mxu0 0.0
        %3197 = vmatpush1.msra.mxu0 0.0
        %3198 = vmatprep.subr.mxu0 0.0
        %3199 = vmatpush1.msra.mxu0 0.0
        %3200 = vmatprep.subr.mxu0 0.0
        %3201 = vmatpush1.msra.mxu0 0.0
        %3202 = vmatprep.subr.mxu0 0.0
        %3203 = vmatpush1.msra.mxu0 0.0
        %3204 = vmatprep.subr.mxu0 0.0
        %3205 = vmatpush1.msra.mxu0 0.0
        %3206 = vmatprep.subr.mxu0 0.0
        %3207 = vmatpush1.msra.mxu0 0.0
        %3208 = vmatprep.subr.mxu0 0.0
        %3209 = vmatpush1.msra.mxu0 0.0
        %3210 = vmatprep.subr.mxu0 0.0
        %3211 = vmatpush1.msra.mxu0 0.0
        %3212 = vmatprep.subr.mxu0 0.0
        %3213 = vmatpush1.msra.mxu0 0.0
        %3214 = vmatprep.subr.mxu0 0.0
        %3215 = vmatpush1.msra.mxu0 0.0
        %3216 = vmatprep.subr.mxu0 0.0
        %3217 = vmatpush1.msra.mxu0 0.0
        %3218 = vmatprep.subr.mxu0 0.0
        %3219 = vmatpush1.msra.mxu0 0.0
        %3220 = vmatprep.subr.mxu0 0.0
        %3221 = vmatpush1.msra.mxu0 0.0
        %3222 = vmatprep.subr.mxu0 0.0
        %3223 = vmatpush1.msra.mxu0 0.0
        %3224 = vmatprep.subr.mxu0 0.0
        %3225 = vmatpush1.msra.mxu0 0.0
        %3226 = vmatprep.subr.mxu0 0.0
        %3227 = vmatpush1.msra.mxu0 0.0
        %3228 = vmatprep.subr.mxu0 0.0
        %3229 = vmatpush1.msra.mxu0 0.0
        %3230 = vmatprep.subr.mxu0 0.0
        %3231 = vmatpush1.msra.mxu0 0.0
        %3232 = vmatprep.subr.mxu0 0.0
        %3233 = vmatpush1.msra.mxu0 0.0
        %3234 = vmatprep.subr.mxu0 0.0
        %3235 = vmatpush1.msra.mxu0 0.0
        %3236 = vmatprep.subr.mxu0 0.0
        %3237 = vmatpush1.msra.mxu0 0.0
        %3238 = vmatprep.mubr.f32.mxu0 0.0
        %3239 = vmatmul.mubr.f32.gmra.mrb[0].mxu0 %v3172
        %v3240 = vpop.f32.mrb[0].mxu0
        %v3241 = vadd.f32 0.0, %v3240
        %v3242 = vpop.f32.mrb[0].mxu0
        %3243 = vdwg.mxu0
        %v3245 = vsel %vm398, %v2698, 0
        %3247 = vmatprep.subr.mxu0 0.0
        %3248 = vmatpush1.msra.mxu0 %v3005
        %3249 = vmatprep.subr.mxu0 0.0
        %3250 = vmatpush1.msra.mxu0 %v3006
        %3251 = vmatprep.subr.mxu0 0.0
        %3252 = vmatpush1.msra.mxu0 %v3007
        %3253 = vmatprep.subr.mxu0 0.0
        %3254 = vmatpush1.msra.mxu0 %v3008
        %3255 = vmatprep.subr.mxu0 0.0
        %3256 = vmatpush1.msra.mxu0 0.0
        %3257 = vmatprep.subr.mxu0 0.0
        %3258 = vmatpush1.msra.mxu0 0.0
        %3259 = vmatprep.subr.mxu0 0.0
        %3260 = vmatpush1.msra.mxu0 0.0
        %3261 = vmatprep.subr.mxu0 0.0
        %3262 = vmatpush1.msra.mxu0 0.0
        %3263 = vmatprep.subr.mxu0 0.0
        %3264 = vmatpush1.msra.mxu0 0.0
        %3265 = vmatprep.subr.mxu0 0.0
        %3266 = vmatpush1.msra.mxu0 0.0
        %3267 = vmatprep.subr.mxu0 0.0
        %3268 = vmatpush1.msra.mxu0 0.0
        %3269 = vmatprep.subr.mxu0 0.0
        %3270 = vmatpush1.msra.mxu0 0.0
        %3271 = vmatprep.subr.mxu0 0.0
        %3272 = vmatpush1.msra.mxu0 0.0
        %3273 = vmatprep.subr.mxu0 0.0
        %3274 = vmatpush1.msra.mxu0 0.0
        %3275 = vmatprep.subr.mxu0 0.0
        %3276 = vmatpush1.msra.mxu0 0.0
        %3277 = vmatprep.subr.mxu0 0.0
        %3278 = vmatpush1.msra.mxu0 0.0
        %3279 = vmatprep.subr.mxu0 0.0
        %3280 = vmatpush1.msra.mxu0 0.0
        %3281 = vmatprep.subr.mxu0 0.0
        %3282 = vmatpush1.msra.mxu0 0.0
        %3283 = vmatprep.subr.mxu0 0.0
        %3284 = vmatpush1.msra.mxu0 0.0
        %3285 = vmatprep.subr.mxu0 0.0
        %3286 = vmatpush1.msra.mxu0 0.0
        %3287 = vmatprep.subr.mxu0 0.0
        %3288 = vmatpush1.msra.mxu0 0.0
        %3289 = vmatprep.subr.mxu0 0.0
        %3290 = vmatpush1.msra.mxu0 0.0
        %3291 = vmatprep.subr.mxu0 0.0
        %3292 = vmatpush1.msra.mxu0 0.0
        %3293 = vmatprep.subr.mxu0 0.0
        %3294 = vmatpush1.msra.mxu0 0.0
        %3295 = vmatprep.subr.mxu0 0.0
        %3296 = vmatpush1.msra.mxu0 0.0
        %3297 = vmatprep.subr.mxu0 0.0
        %3298 = vmatpush1.msra.mxu0 0.0
        %3299 = vmatprep.subr.mxu0 0.0
        %3300 = vmatpush1.msra.mxu0 0.0
        %3301 = vmatprep.subr.mxu0 0.0
        %3302 = vmatpush1.msra.mxu0 0.0
        %3303 = vmatprep.subr.mxu0 0.0
        %3304 = vmatpush1.msra.mxu0 0.0
        %3305 = vmatprep.subr.mxu0 0.0
        %3306 = vmatpush1.msra.mxu0 0.0
        %3307 = vmatprep.subr.mxu0 0.0
        %3308 = vmatpush1.msra.mxu0 0.0
        %3309 = vmatprep.subr.mxu0 0.0
        %3310 = vmatpush1.msra.mxu0 0.0
        %3311 = vmatprep.mubr.f32.mxu0 0.0
        %3312 = vmatmul.mubr.f32.gmra.mrb[0].mxu0 %v3245
        %v3313 = vpop.f32.mrb[0].mxu0
        %v3314 = vadd.f32 0.0, %v3313
        %v3315 = vpop.f32.mrb[0].mxu0
        %3316 = vdwg.mxu0
        %v3318 = vsel %vm398, %v2771, 0
        %3320 = vmatprep.subr.mxu0 0.0
        %3321 = vmatpush1.msra.mxu0 %v3009
        %3322 = vmatprep.subr.mxu0 0.0
        %3323 = vmatpush1.msra.mxu0 %v3010
        %3324 = vmatprep.subr.mxu0 0.0
        %3325 = vmatpush1.msra.mxu0 %v3011
        %3326 = vmatprep.subr.mxu0 0.0
        %3327 = vmatpush1.msra.mxu0 %v3012
        %3328 = vmatprep.subr.mxu0 0.0
        %3329 = vmatpush1.msra.mxu0 0.0
        %3330 = vmatprep.subr.mxu0 0.0
        %3331 = vmatpush1.msra.mxu0 0.0
        %3332 = vmatprep.subr.mxu0 0.0
        %3333 = vmatpush1.msra.mxu0 0.0
        %3334 = vmatprep.subr.mxu0 0.0
        %3335 = vmatpush1.msra.mxu0 0.0
        %3336 = vmatprep.subr.mxu0 0.0
        %3337 = vmatpush1.msra.mxu0 0.0
        %3338 = vmatprep.subr.mxu0 0.0
        %3339 = vmatpush1.msra.mxu0 0.0
        %3340 = vmatprep.subr.mxu0 0.0
        %3341 = vmatpush1.msra.mxu0 0.0
        %3342 = vmatprep.subr.mxu0 0.0
        %3343 = vmatpush1.msra.mxu0 0.0
        %3344 = vmatprep.subr.mxu0 0.0
        %3345 = vmatpush1.msra.mxu0 0.0
        %3346 = vmatprep.subr.mxu0 0.0
        %3347 = vmatpush1.msra.mxu0 0.0
        %3348 = vmatprep.subr.mxu0 0.0
        %3349 = vmatpush1.msra.mxu0 0.0
        %3350 = vmatprep.subr.mxu0 0.0
        %3351 = vmatpush1.msra.mxu0 0.0
        %3352 = vmatprep.subr.mxu0 0.0
        %3353 = vmatpush1.msra.mxu0 0.0
        %3354 = vmatprep.subr.mxu0 0.0
        %3355 = vmatpush1.msra.mxu0 0.0
        %3356 = vmatprep.subr.mxu0 0.0
        %3357 = vmatpush1.msra.mxu0 0.0
        %3358 = vmatprep.subr.mxu0 0.0
        %3359 = vmatpush1.msra.mxu0 0.0
        %3360 = vmatprep.subr.mxu0 0.0
        %3361 = vmatpush1.msra.mxu0 0.0
        %3362 = vmatprep.subr.mxu0 0.0
        %3363 = vmatpush1.msra.mxu0 0.0
        %3364 = vmatprep.subr.mxu0 0.0
        %3365 = vmatpush1.msra.mxu0 0.0
        %3366 = vmatprep.subr.mxu0 0.0
        %3367 = vmatpush1.msra.mxu0 0.0
        %3368 = vmatprep.subr.mxu0 0.0
        %3369 = vmatpush1.msra.mxu0 0.0
        %3370 = vmatprep.subr.mxu0 0.0
        %3371 = vmatpush1.msra.mxu0 0.0
        %3372 = vmatprep.subr.mxu0 0.0
        %3373 = vmatpush1.msra.mxu0 0.0
        %3374 = vmatprep.subr.mxu0 0.0
        %3375 = vmatpush1.msra.mxu0 0.0
        %3376 = vmatprep.subr.mxu0 0.0
        %3377 = vmatpush1.msra.mxu0 0.0
        %3378 = vmatprep.subr.mxu0 0.0
        %3379 = vmatpush1.msra.mxu0 0.0
        %3380 = vmatprep.subr.mxu0 0.0
        %3381 = vmatpush1.msra.mxu0 0.0
        %3382 = vmatprep.subr.mxu0 0.0
        %3383 = vmatpush1.msra.mxu0 0.0
        %3384 = vmatprep.mubr.f32.mxu0 0.0
        %3385 = vmatmul.mubr.f32.gmra.mrb[0].mxu0 %v3318
        %v3386 = vpop.f32.mrb[0].mxu0
        %v3387 = vadd.f32 0.0, %v3386
        %v3388 = vpop.f32.mrb[0].mxu0
        %3389 = vdwg.mxu0
        %v3391 = vsel %vm398, %v2844, 0
        %3393 = vmatprep.subr.mxu0 0.0
        %3394 = vmatpush1.msra.mxu0 %v3013
        %3395 = vmatprep.subr.mxu0 0.0
        %3396 = vmatpush1.msra.mxu0 %v3014
        %3397 = vmatprep.subr.mxu0 0.0
        %3398 = vmatpush1.msra.mxu0 %v3015
        %3399 = vmatprep.subr.mxu0 0.0
        %3400 = vmatpush1.msra.mxu0 %v3016
        %3401 = vmatprep.subr.mxu0 0.0
        %3402 = vmatpush1.msra.mxu0 0.0
        %3403 = vmatprep.subr.mxu0 0.0
        %3404 = vmatpush1.msra.mxu0 0.0
        %3405 = vmatprep.subr.mxu0 0.0
        %3406 = vmatpush1.msra.mxu0 0.0
        %3407 = vmatprep.subr.mxu0 0.0
        %3408 = vmatpush1.msra.mxu0 0.0
        %3409 = vmatprep.subr.mxu0 0.0
        %3410 = vmatpush1.msra.mxu0 0.0
        %3411 = vmatprep.subr.mxu0 0.0
        %3412 = vmatpush1.msra.mxu0 0.0
        %3413 = vmatprep.subr.mxu0 0.0
        %3414 = vmatpush1.msra.mxu0 0.0
        %3415 = vmatprep.subr.mxu0 0.0
        %3416 = vmatpush1.msra.mxu0 0.0
        %3417 = vmatprep.subr.mxu0 0.0
        %3418 = vmatpush1.msra.mxu0 0.0
        %3419 = vmatprep.subr.mxu0 0.0
        %3420 = vmatpush1.msra.mxu0 0.0
        %3421 = vmatprep.subr.mxu0 0.0
        %3422 = vmatpush1.msra.mxu0 0.0
        %3423 = vmatprep.subr.mxu0 0.0
        %3424 = vmatpush1.msra.mxu0 0.0
        %3425 = vmatprep.subr.mxu0 0.0
        %3426 = vmatpush1.msra.mxu0 0.0
        %3427 = vmatprep.subr.mxu0 0.0
        %3428 = vmatpush1.msra.mxu0 0.0
        %3429 = vmatprep.subr.mxu0 0.0
        %3430 = vmatpush1.msra.mxu0 0.0
        %3431 = vmatprep.subr.mxu0 0.0
        %3432 = vmatpush1.msra.mxu0 0.0
        %3433 = vmatprep.subr.mxu0 0.0
        %3434 = vmatpush1.msra.mxu0 0.0
        %3435 = vmatprep.subr.mxu0 0.0
        %3436 = vmatpush1.msra.mxu0 0.0
        %3437 = vmatprep.subr.mxu0 0.0
        %3438 = vmatpush1.msra.mxu0 0.0
        %3439 = vmatprep.subr.mxu0 0.0
        %3440 = vmatpush1.msra.mxu0 0.0
        %3441 = vmatprep.subr.mxu0 0.0
        %3442 = vmatpush1.msra.mxu0 0.0
        %3443 = vmatprep.subr.mxu0 0.0
        %3444 = vmatpush1.msra.mxu0 0.0
        %3445 = vmatprep.subr.mxu0 0.0
        %3446 = vmatpush1.msra.mxu0 0.0
        %3447 = vmatprep.subr.mxu0 0.0
        %3448 = vmatpush1.msra.mxu0 0.0
        %3449 = vmatprep.subr.mxu0 0.0
        %3450 = vmatpush1.msra.mxu0 0.0
        %3451 = vmatprep.subr.mxu0 0.0
        %3452 = vmatpush1.msra.mxu0 0.0
        %3453 = vmatprep.subr.mxu0 0.0
        %3454 = vmatpush1.msra.mxu0 0.0
        %3455 = vmatprep.subr.mxu0 0.0
        %3456 = vmatpush1.msra.mxu0 0.0
        %3457 = vmatprep.mubr.f32.mxu0 0.0
        %3458 = vmatmul.mubr.f32.gmra.mrb[0].mxu0 %v3391
        %v3459 = vpop.f32.mrb[0].mxu0
        %v3460 = vadd.f32 0.0, %v3459
        %v3461 = vpop.f32.mrb[0].mxu0
        %3462 = vdwg.mxu0
        %v3464 = vsel %vm398, %v2917, 0
        %3466 = vmatprep.subr.mxu0 0.0
        %3467 = vmatpush1.msra.mxu0 %v3017
        %3468 = vmatprep.subr.mxu0 0.0
        %3469 = vmatpush1.msra.mxu0 %v3018
        %3470 = vmatprep.subr.mxu0 0.0
        %3471 = vmatpush1.msra.mxu0 %v3019
        %3472 = vmatprep.subr.mxu0 0.0
        %3473 = vmatpush1.msra.mxu0 %v3020
        %3474 = vmatprep.subr.mxu0 0.0
        %3475 = vmatpush1.msra.mxu0 0.0
        %3476 = vmatprep.subr.mxu0 0.0
        %3477 = vmatpush1.msra.mxu0 0.0
        %3478 = vmatprep.subr.mxu0 0.0
        %3479 = vmatpush1.msra.mxu0 0.0
        %3480 = vmatprep.subr.mxu0 0.0
        %3481 = vmatpush1.msra.mxu0 0.0
        %3482 = vmatprep.subr.mxu0 0.0
        %3483 = vmatpush1.msra.mxu0 0.0
        %3484 = vmatprep.subr.mxu0 0.0
        %3485 = vmatpush1.msra.mxu0 0.0
        %3486 = vmatprep.subr.mxu0 0.0
        %3487 = vmatpush1.msra.mxu0 0.0
        %3488 = vmatprep.subr.mxu0 0.0
        %3489 = vmatpush1.msra.mxu0 0.0
        %3490 = vmatprep.subr.mxu0 0.0
        %3491 = vmatpush1.msra.mxu0 0.0
        %3492 = vmatprep.subr.mxu0 0.0
        %3493 = vmatpush1.msra.mxu0 0.0
        %3494 = vmatprep.subr.mxu0 0.0
        %3495 = vmatpush1.msra.mxu0 0.0
        %3496 = vmatprep.subr.mxu0 0.0
        %3497 = vmatpush1.msra.mxu0 0.0
        %3498 = vmatprep.subr.mxu0 0.0
        %3499 = vmatpush1.msra.mxu0 0.0
        %3500 = vmatprep.subr.mxu0 0.0
        %3501 = vmatpush1.msra.mxu0 0.0
        %3502 = vmatprep.subr.mxu0 0.0
        %3503 = vmatpush1.msra.mxu0 0.0
        %3504 = vmatprep.subr.mxu0 0.0
        %3505 = vmatpush1.msra.mxu0 0.0
        %3506 = vmatprep.subr.mxu0 0.0
        %3507 = vmatpush1.msra.mxu0 0.0
        %3508 = vmatprep.subr.mxu0 0.0
        %3509 = vmatpush1.msra.mxu0 0.0
        %3510 = vmatprep.subr.mxu0 0.0
        %3511 = vmatpush1.msra.mxu0 0.0
        %3512 = vmatprep.subr.mxu0 0.0
        %3513 = vmatpush1.msra.mxu0 0.0
        %3514 = vmatprep.subr.mxu0 0.0
        %3515 = vmatpush1.msra.mxu0 0.0
        %3516 = vmatprep.subr.mxu0 0.0
        %3517 = vmatpush1.msra.mxu0 0.0
        %3518 = vmatprep.subr.mxu0 0.0
        %3519 = vmatpush1.msra.mxu0 0.0
        %3520 = vmatprep.subr.mxu0 0.0
        %3521 = vmatpush1.msra.mxu0 0.0
        %3522 = vmatprep.subr.mxu0 0.0
        %3523 = vmatpush1.msra.mxu0 0.0
        %3524 = vmatprep.subr.mxu0 0.0
        %3525 = vmatpush1.msra.mxu0 0.0
        %3526 = vmatprep.subr.mxu0 0.0
        %3527 = vmatpush1.msra.mxu0 0.0
        %3528 = vmatprep.subr.mxu0 0.0
        %3529 = vmatpush1.msra.mxu0 0.0
        %3530 = vmatprep.mubr.f32.mxu0 0.0
        %3531 = vmatmul.mubr.f32.gmra.mrb[0].mxu0 %v3464
        %v3532 = vpop.f32.mrb[0].mxu0
        %v3533 = vadd.f32 0.0, %v3532
        %v3534 = vpop.f32.mrb[0].mxu0
        %3535 = vdwg.mxu0
        %v3537 = vsel %vm398, %v2990, 0
        %3539 = vmatprep.subr.mxu0 0.0
        %3540 = vmatpush1.msra.mxu0 %v3021
        %3541 = vmatprep.subr.mxu0 0.0
        %3542 = vmatpush1.msra.mxu0 %v3022
        %3543 = vmatprep.subr.mxu0 0.0
        %3544 = vmatpush1.msra.mxu0 %v3023
        %3545 = vmatprep.subr.mxu0 0.0
        %3546 = vmatpush1.msra.mxu0 %v3024
        %3547 = vmatprep.subr.mxu0 0.0
        %3548 = vmatpush1.msra.mxu0 0.0
        %3549 = vmatprep.subr.mxu0 0.0
        %3550 = vmatpush1.msra.mxu0 0.0
        %3551 = vmatprep.subr.mxu0 0.0
        %3552 = vmatpush1.msra.mxu0 0.0
        %3553 = vmatprep.subr.mxu0 0.0
        %3554 = vmatpush1.msra.mxu0 0.0
        %3555 = vmatprep.subr.mxu0 0.0
        %3556 = vmatpush1.msra.mxu0 0.0
        %3557 = vmatprep.subr.mxu0 0.0
        %3558 = vmatpush1.msra.mxu0 0.0
        %3559 = vmatprep.subr.mxu0 0.0
        %3560 = vmatpush1.msra.mxu0 0.0
        %3561 = vmatprep.subr.mxu0 0.0
        %3562 = vmatpush1.msra.mxu0 0.0
        %3563 = vmatprep.subr.mxu0 0.0
        %3564 = vmatpush1.msra.mxu0 0.0
        %3565 = vmatprep.subr.mxu0 0.0
        %3566 = vmatpush1.msra.mxu0 0.0
        %3567 = vmatprep.subr.mxu0 0.0
        %3568 = vmatpush1.msra.mxu0 0.0
        %3569 = vmatprep.subr.mxu0 0.0
        %3570 = vmatpush1.msra.mxu0 0.0
        %3571 = vmatprep.subr.mxu0 0.0
        %3572 = vmatpush1.msra.mxu0 0.0
        %3573 = vmatprep.subr.mxu0 0.0
        %3574 = vmatpush1.msra.mxu0 0.0
        %3575 = vmatprep.subr.mxu0 0.0
        %3576 = vmatpush1.msra.mxu0 0.0
        %3577 = vmatprep.subr.mxu0 0.0
        %3578 = vmatpush1.msra.mxu0 0.0
        %3579 = vmatprep.subr.mxu0 0.0
        %3580 = vmatpush1.msra.mxu0 0.0
        %3581 = vmatprep.subr.mxu0 0.0
        %3582 = vmatpush1.msra.mxu0 0.0
        %3583 = vmatprep.subr.mxu0 0.0
        %3584 = vmatpush1.msra.mxu0 0.0
        %3585 = vmatprep.subr.mxu0 0.0
        %3586 = vmatpush1.msra.mxu0 0.0
        %3587 = vmatprep.subr.mxu0 0.0
        %3588 = vmatpush1.msra.mxu0 0.0
        %3589 = vmatprep.subr.mxu0 0.0
        %3590 = vmatpush1.msra.mxu0 0.0
        %3591 = vmatprep.subr.mxu0 0.0
        %3592 = vmatpush1.msra.mxu0 0.0
        %3593 = vmatprep.subr.mxu0 0.0
        %3594 = vmatpush1.msra.mxu0 0.0
        %3595 = vmatprep.subr.mxu0 0.0
        %3596 = vmatpush1.msra.mxu0 0.0
        %3597 = vmatprep.subr.mxu0 0.0
        %3598 = vmatpush1.msra.mxu0 0.0
        %3599 = vmatprep.subr.mxu0 0.0
        %3600 = vmatpush1.msra.mxu0 0.0
        %3601 = vmatprep.subr.mxu0 0.0
        %3602 = vmatpush1.msra.mxu0 0.0
        %3603 = vmatprep.mubr.f32.mxu0 0.0
        %3604 = vmatmul.mubr.f32.gmra.mrb[0].mxu0 %v3537
        %v3605 = vpop.f32.mrb[0].mxu0
        %v3606 = vadd.f32 0.0, %v3605
        %v3607 = vpop.f32.mrb[0].mxu0
        %3608 = vdwg.mxu0
        %v3609 = vsel %vm398, %v3095, 0.0
        %v3610 = vsel %vm398, %v3168, 0.0
        %v3611 = vadd.f32 %v3609, %v3610
        %v3612 = vsel %vm398, %v3241, 0.0
        %v3613 = vadd.f32 %v3611, %v3612
        %v3614 = vsel %vm398, %v3314, 0.0
        %v3615 = vadd.f32 %v3613, %v3614
        %v3616 = vsel %vm398, %v3387, 0.0
        %v3617 = vadd.f32 %v3615, %v3616
        %v3618 = vsel %vm398, %v3460, 0.0
        %v3619 = vadd.f32 %v3617, %v3618
        %v3620 = vsel %vm398, %v3533, 0.0
        %v3621 = vadd.f32 %v3619, %v3620
        %v3622 = vsel %vm398, %v3606, 0.0
        %v3623 = vadd.f32 %v3621, %v3622
        %v3624 = vld [vmem:[%s5] sm:$0x1]
        %v3626 = vlaneseq
        %v3627 = vshrl.u32 %v3626, 7
        %v3628 = vsub.s32 0, %v3627
        %v3629 = vrot.slane %v3624, %v3628
        %v3631 = vadd.f32 %v3623, %v3629
        %3632 = vst.msk [vmem:[%s351] sm:$0xff] %vm398, %v3631
        %s3633 = sand.u32 %s186, 1
        %s3634 = scalar_lea.sflag [#allocation4], %s3633
        %s3635 = sand.u32 %s186, 1
        %s3636 = smul.addr %s3635, 8
        %s3637 = scalar_lea.vmem [#allocation11], %s3636
        // Predicated region
        $region69: #{tpu_custom_call.1} parent=47 // pred_check
          %p3638 = pneg %p196
        $region70: #{tpu_custom_call.1} parent=47 // pred_check_branch
          %3640 = sbr.rel (%p3638) target = $region72
        $region71: #{tpu_custom_call.1} parent=47 // pred_region
          %s3642 = ssub.s32 128, 128
          %3643 = vsyncadd %s3634, %s3642
          %s3644 = smul.addr %s26, 128
          %s3645 = scalar_lea.hbm %s7, %s3644
          %s3647 = sshll.u32 %s3637, 4
          %s3648 = int_to_ptr.vmem [resolvable:$true] %s3647
          %3650 = dma.vmem_to_hbm [thread:$0]  %s3648, 128, %s3645, %s3634
        $region72: #{tpu_custom_call.1} parent=47 // pred_fallthru
          _
      $region48: #{tpu_custom_call.1} parent=5 // pred_fallthru
        _
      %p3651 = scmp.le.s32.totalorder 2, %s21
      // Predicated region
      $region73: #{tpu_custom_call.1} parent=5 // pred_check
        %p3652 = pneg %p3651
      $region74: #{tpu_custom_call.1} parent=5 // pred_check_branch
        %3654 = sbr.rel (%p3652) target = $region76
      $region75: #{tpu_custom_call.1} parent=5 // pred_region
        %s3655 = ssub.s32 %s21, 2
        // Predicated region
        $region77: #{tpu_custom_call.1} parent=75 // pred_check
          %p3656 = pneg %p202
        $region78: #{tpu_custom_call.1} parent=75 // pred_check_branch
          %3658 = sbr.rel (%p3656) target = $region80
        $region79: #{tpu_custom_call.1} parent=75 // pred_region
          %s3659 = sand.u32 %s187, 1
          %s3660 = scalar_lea.sflag [#allocation4], %s3659
          %s3661 = sand.u32 %s187, 1
          %s3662 = smul.addr %s3661, 8
          %s3663 = scalar_lea.vmem [#allocation11], %s3662
          %3664 = dma.done %s3660, 128
        $region80: #{tpu_custom_call.1} parent=75 // pred_fallthru
          _
      $region76: #{tpu_custom_call.1} parent=5 // pred_fallthru
        _
    $region6: #{tpu_custom_call.1} parent=1 // loop_footer
      %s25 = sadd.s32 1, %s21
    $region7: #{tpu_custom_call.1} parent=1 // loop_footer_branch
      %20 = sbr.rel target = $region3
    $region8: #{tpu_custom_call.1} parent=1 // loop_exit
      _
    %3665 = vsyncpa [#allocation3], 1
    %s3666 = scalar_lea.sflag [#allocation3], 1
    %3667 = vsyncpa %s3666, 1
    %3668 = vsyncpa [#allocation6], 1
    %3669 = vsyncpa [#allocation9], 1
    %3670 = vsyncpa [#allocation4], 1
    %s3671 = scalar_lea.sflag [#allocation4], 1
    %3672 = vsyncpa %s3671, 1

</llo_original>
